<compile_context>
chip_gen: v5e
topology: v5e:2x2
jax: 0.10.0
libtpu: 0.0.40
codegen_flags: <defaults>
</compile_context>

<pallas_src>
import numpy as np
import jax
import jax.numpy as jnp
from jax.experimental import pallas as pl
from jax.experimental.pallas import tpu as pltpu


# ----------------------------------------------------------------------------
# Module hyper-parameters (PyTorch spec, kernel height == 1 everywhere)
# ----------------------------------------------------------------------------
C0, C1, C2, C3 = 24, 48, 96, 192
KW1, KW2, KW3 = 5, 10, 20
SH1, SW1 = 4, 1
SW2, SW3 = 5, 10
PH1, PW1 = 1, 2
PW2, PW3 = 7, 6

LANE = 128                      # vreg lane width; K-fused tap slabs are 128-lane blocks


def _ru(n, m):
    return (n + m - 1) // m * m


# ----------------------------------------------------------------------------
# Parameters (raw OIHW weights; matmul packing is done per input shape)
# ----------------------------------------------------------------------------
def init_params(key):
    def conv_init(k, cout, cin, kw):
        kw_, kb_ = jax.random.split(k)
        scale = 1.0 / float(np.sqrt(cin * kw))
        w = jax.random.uniform(kw_, (cout, cin, 1, kw), jnp.float32, -scale, scale)
        b = jax.random.uniform(kb_, (cout,), jnp.float32, -scale, scale)
        return {"w": w, "b": b}

    k1, k2, k3 = jax.random.split(key, 3)
    return {
        "conv1": conv_init(k1, C1, C0, KW1),
        "conv2": conv_init(k2, C2, C1, KW2),
        "conv3": conv_init(k3, C3, C2, KW3),
    }


def _pack_dense(w_oihw, pad_k, pad_cout):
    """(Cout,Cin,1,Kw) -> (pad_k, pad_cout) bf16, taps packed densely along K."""
    cout, cin, _, kwd = w_oihw.shape
    w = jnp.transpose(w_oihw[:, :, 0, :], (2, 1, 0)).reshape(kwd * cin, cout)
    w = jnp.pad(w, ((0, pad_k - kwd * cin), (0, pad_cout - cout)))
    return w.astype(jnp.bfloat16)


def _pack_kfused(w_oihw, tap_start, tap_count, pad_cout):
    """(Cout,Cin,1,Kw) -> (tap_count*LANE, pad_cout) bf16, each tap's Cin rows
    zero-padded to a 128-lane block (matches the in-kernel im2col layout)."""
    cout, cin, _, _ = w_oihw.shape
    w = jnp.transpose(w_oihw[:, :, 0, :], (2, 1, 0))        # (Kw, Cin, Cout)
    w = w[tap_start:tap_start + tap_count]                  # (T, Cin, Cout)
    w = jnp.pad(w, ((0, 0), (0, LANE - cin), (0, 0)))       # (T, LANE, Cout)
    w = w.reshape(tap_count * LANE, cout)
    if pad_cout > cout:
        w = jnp.pad(w, ((0, 0), (0, pad_cout - cout)))
    return w.astype(jnp.bfloat16)


# ----------------------------------------------------------------------------
# Fused forward: one pallas_call for all three convs
# ----------------------------------------------------------------------------
def model_forward(params, x):
    N, Cin, H, W = x.shape
    assert N == 1 and Cin == C0

    # PyTorch conv output arithmetic (kernel height == 1)
    H1 = (H + 2 * PH1 - 1) // SH1 + 1                 # conv1 H_out
    W1 = (W + 2 * PW1 - KW1) // SW1 + 1               # conv1 W_out  (SW1 == 1)
    W2 = (W1 + 2 * PW2 - KW2) // SW2 + 1              # conv2 W_out
    W3 = (W2 + 2 * PW3 - KW3) // SW3 + 1              # conv3 W_out
    assert W1 >= 1 and W2 >= 1 and W3 == 1, (W1, W2, W3)
    assert SW1 == 1 and KW1 - 1 <= PW2                # conv1 outputs land at conv2 slots

    HP = _ru(H1, 8)                                   # sublane-padded row count (16)
    BLK = _ru(W1 + 2 * PW2, SW2)                      # conv2 padded width, mult of SW2 (50)
    NB2 = BLK // SW2                                  # conv2 stride-5 slots per block (10)
    W1P = W + 2 * PW1                                 # conv1 padded width (40)
    assert W2 <= NB2 and PW2 + W1P <= BLK
    M2 = HP * NB2                                     # conv2 output rows incl. junk col (160)
    A1R = _ru(SW2 * (M2 - 1) + KW2, 16)               # conv1 output rows needed (816)
    assert A1R >= HP * BLK
    X1R = A1R + KW1 - 1                               # conv1 input rows (820)

    # ---- one-time layout glue (wrapper side): NCHW -> flat block layout ----
    x_hw = jnp.transpose(x, (0, 2, 3, 1))[0]                          # (H, W, C0)
    x_hw = jnp.pad(x_hw, ((PH1, PH1), (0, 0), (0, 0)))[::SH1]         # (H1, W, C0)
    x_hw = jnp.pad(x_hw, ((0, HP - H1),
                          (PW2 + PW1, BLK - PW2 - PW1 - W),
                          (0, 0)))                                    # (HP, BLK, C0)
    x1f = x_hw.reshape(HP * BLK, C0)
    x1f = jnp.pad(x1f, ((0, X1R - HP * BLK), (0, 0)))                 # (X1R, C0)
    # conv1 K-fused im2col (layout plumbing only): tap k at lane offset C0*k
    x1cat = jnp.concatenate([x1f[k:k + A1R] for k in range(KW1)], axis=1)
    x1cat = jnp.pad(x1cat, ((0, 0), (0, LANE - KW1 * C0))).astype(jnp.bfloat16)

    # conv1-output validity mask in the block layout: zero conv2's W-padding,
    # the sublane-padding rows (h >= H1) and the alignment/overhang rows.
    m = np.arange(A1R)
    p = m % BLK
    h = m // BLK
    valid = (m < HP * BLK) & (h < H1) & (p >= PW2) & (p < PW2 + W1)
    mask = jnp.asarray(valid.astype(np.float32))[:, None]             # (A1R, 1)

    # K-fused, lane-padded matmul weights (bf16 operands, f32 accumulate)
    w1c = _pack_dense(params["conv1"]["w"], LANE, LANE)               # (128, 128)
    b1p = jnp.pad(params["conv1"]["b"], (0, LANE - C1)).reshape(1, LANE)
    w2c = _pack_kfused(params["conv2"]["w"], 0, KW2, LANE)            # (1280, 128)
    b2p = jnp.pad(params["conv2"]["b"], (0, LANE - C2)).reshape(1, LANE)
    w3c = _pack_kfused(params["conv3"]["w"], PW3, W2, C3)             # (1152, 192)
    b3p = params["conv3"]["b"].reshape(1, C3)

    def fused_kernel(x1_ref, mask_ref, w1_ref, b1_ref, w2_ref, b2_ref,
                     w3_ref, b3_ref, o_ref, a1_ref, x2_ref, a2_ref, x3_ref):
        f32, bf16 = jnp.float32, jnp.bfloat16

        # ---- conv1: ONE K-fused matmul (K = KW1*C0 -> 128), bias + mask.
        #      Cout padded to 128 lanes so a1's extra lanes are exact zeros.
        acc1 = jnp.dot(x1_ref[...], w1_ref[...], preferred_element_type=f32)
        a1_ref[...] = (acc1 + b1_ref[...]) * mask_ref[...]

        # ---- conv2: stride-SW2 gather, no stride-1 over-compute.
        #      Output row m' = h*NB2 + j; tap k reads a1 row SW2*m' + k
        #      (BLK == NB2*SW2, so this is one uniform strided read per tap).
        for k in range(KW2):
            x2_ref[:, LANE * k:LANE * (k + 1)] = (
                a1_ref[pl.ds(k, M2, stride=SW2), :].astype(bf16))
        acc2 = jnp.dot(x2_ref[...], w2_ref[...], preferred_element_type=f32)
        a2_ref[...] = acc2 + b2_ref[...]

        # ---- conv3 (W3_out == 1): only taps PW3..PW3+W2-1 hit valid columns.
        #      Column j lives at rows h*NB2 + j -> one strided read per tap,
        #      folded into a single K-fused matmul.
        for j in range(W2):
            x3_ref[:, LANE * j:LANE * (j + 1)] = (
                a2_ref[pl.ds(j, HP, stride=NB2), :].astype(bf16))
        acc3 = jnp.dot(x3_ref[...], w3_ref[...], preferred_element_type=f32)
        o_ref[...] = acc3 + b3_ref[...]

    out2d = pl.pallas_call(
        fused_kernel,
        out_shape=jax.ShapeDtypeStruct((HP, C3), jnp.float32),
        in_specs=[pl.BlockSpec(memory_space=pltpu.MemorySpace.VMEM)] * 8,
        out_specs=pl.BlockSpec(memory_space=pltpu.MemorySpace.VMEM),
        scratch_shapes=[
            pltpu.VMEM((A1R, LANE), jnp.float32),         # conv1 output, block layout
            pltpu.VMEM((M2, KW2 * LANE), jnp.bfloat16),   # conv2 K-fused im2col
            pltpu.VMEM((M2, LANE), jnp.float32),          # conv2 output
            pltpu.VMEM((HP, W2 * LANE), jnp.bfloat16),    # conv3 K-fused im2col
        ],
    )(x1cat, mask, w1c, b1p, w2c, b2p, w3c, b3p)

    # (HP, C3) -> valid rows -> NCHW (1, C3, H1, 1)
    return out2d[:H1].T[None, :, :, None]


# ----------------------------------------------------------------------------
# Pure-XLA f32 reference (silent correctness check)
# ----------------------------------------------------------------------------
def _ref_conv(x, w, b, stride, padding):
    y = jax.lax.conv_general_dilated(
        x, w, window_strides=stride,
        padding=[(padding[0], padding[0]), (padding[1], padding[1])],
        dimension_numbers=("NCHW", "OIHW", "NCHW"),
        precision=jax.lax.Precision.HIGHEST)
    return y + b[None, :, None, None]


def _ref_forward(params, x):
    v1 = _ref_conv(x, params["conv1"]["w"], params["conv1"]["b"], (SH1, SW1), (PH1, PW1))
    v2 = _ref_conv(v1, params["conv2"]["w"], params["conv2"]["b"], (1, SW2), (0, PW2))
    v3 = _ref_conv(v2, params["conv3"]["w"], params["conv3"]["b"], (1, SW3), (0, PW3))
    return v3


if __name__ == "__main__":
    key = jax.random.PRNGKey(0)
    kx, kp = jax.random.split(key)
    # W=36 instead of the original 26 (which is invalid for conv3 even in PyTorch)
    x = jax.random.normal(kx, (1, 24, 47, 36), dtype=jnp.float32)
    params = init_params(kp)

    fwd = jax.jit(model_forward)
    out = jax.block_until_ready(fwd(params, x))

    ref = jax.block_until_ready(_ref_forward(params, x))
    assert out.shape == (1, 192, 13, 1), out.shape
    # bf16 MXU operands with f32 accumulation -> relaxed tolerance vs f32 reference
    err = float(jnp.max(jnp.abs(out - ref)))
    assert jnp.allclose(out, ref, atol=2e-2, rtol=2e-2), err

    print("KERNEL_OK")
</pallas_src>

<mosaic_0001>
module attributes {stable_mosaic.version = 11 : i64} {
  func.func @fused_kernel(%arg0: memref<816x128xbf16, #tpu.memory_space<vmem>>, %arg1: memref<816x1xf32, #tpu.memory_space<vmem>>, %arg2: memref<128x128xbf16, #tpu.memory_space<vmem>>, %arg3: memref<1x128xf32, #tpu.memory_space<vmem>>, %arg4: memref<1280x128xbf16, #tpu.memory_space<vmem>>, %arg5: memref<1x128xf32, #tpu.memory_space<vmem>>, %arg6: memref<1152x192xbf16, #tpu.memory_space<vmem>>, %arg7: memref<1x192xf32, #tpu.memory_space<vmem>>, %arg8: memref<16x192xf32, #tpu.memory_space<vmem>>, %arg9: memref<816x128xf32, #tpu.memory_space<vmem>>, %arg10: memref<160x1280xbf16, #tpu.memory_space<vmem>>, %arg11: memref<160x128xf32, #tpu.memory_space<vmem>>, %arg12: memref<16x1152xbf16, #tpu.memory_space<vmem>>) attributes {dimension_semantics = [], scalar_prefetch = 0 : i64, scratch_operands = 4 : i64, tpu.core_type = #tpu.core_type<tc>} {
    %c0 = arith.constant 0 : index
    %c0_0 = arith.constant 0 : index
    %0 = vector.load %arg0[%c0, %c0_0] : memref<816x128xbf16, #tpu.memory_space<vmem>>, vector<816x128xbf16>
    %c0_1 = arith.constant 0 : index
    %c0_2 = arith.constant 0 : index
    %1 = vector.load %arg2[%c0_1, %c0_2] : memref<128x128xbf16, #tpu.memory_space<vmem>>, vector<128x128xbf16>
    %cst = arith.constant dense<0.000000e+00> : vector<816x128xf32>
    %2 = tpu.matmul %0, %1, %cst {dimension_numbers = #tpu.dot_dimension_numbers<[1], [0], [0], [1], [0, 0, 1, 1], [], []>} : vector<816x128xbf16>, vector<128x128xbf16>, vector<816x128xf32> -> vector<816x128xf32>
    %c0_3 = arith.constant 0 : index
    %c0_4 = arith.constant 0 : index
    %3 = vector.load %arg3[%c0_3, %c0_4] : memref<1x128xf32, #tpu.memory_space<vmem>>, vector<1x128xf32>
    %4 = vector.broadcast %3 : vector<1x128xf32> to vector<816x128xf32>
    %5 = arith.addf %2, %4 : vector<816x128xf32>
    %c0_5 = arith.constant 0 : index
    %c0_6 = arith.constant 0 : index
    %6 = vector.load %arg1[%c0_5, %c0_6] : memref<816x1xf32, #tpu.memory_space<vmem>>, vector<816x1xf32>
    %7 = vector.broadcast %6 : vector<816x1xf32> to vector<816x128xf32>
    %8 = arith.mulf %5, %7 : vector<816x128xf32>
    %c0_7 = arith.constant 0 : index
    %c0_8 = arith.constant 0 : index
    %9 = vector.load %arg9[%c0_7, %c0_8] : memref<816x128xf32, #tpu.memory_space<vmem>>, vector<816x128xf32>
    tpu.vector_store %arg9[%c0_7, %c0_8], %8 {strides = array<i32>} : memref<816x128xf32, #tpu.memory_space<vmem>>, vector<816x128xf32>,
    %c0_9 = arith.constant 0 : index
    %c0_10 = arith.constant 0 : index
    %10 = tpu.strided_load %arg9[%c0_9, %c0_10] {strides = array<i32: 5, 1>} : memref<816x128xf32, #tpu.memory_space<vmem>>, vector<160x128xf32>
    %11 = arith.truncf %10 : vector<160x128xf32> to vector<160x128xbf16>
    %c0_11 = arith.constant 0 : index
    %c0_12 = arith.constant 0 : index
    %12 = vector.load %arg10[%c0_11, %c0_12] : memref<160x1280xbf16, #tpu.memory_space<vmem>>, vector<160x128xbf16>
    tpu.vector_store %arg10[%c0_11, %c0_12], %11 {strides = array<i32>} : memref<160x1280xbf16, #tpu.memory_space<vmem>>, vector<160x128xbf16>,
    %c1 = arith.constant 1 : index
    %c0_13 = arith.constant 0 : index
    %13 = tpu.strided_load %arg9[%c1, %c0_13] {strides = array<i32: 5, 1>} : memref<816x128xf32, #tpu.memory_space<vmem>>, vector<160x128xf32>
    %14 = arith.truncf %13 : vector<160x128xf32> to vector<160x128xbf16>
    %c0_14 = arith.constant 0 : index
    %c128 = arith.constant 128 : index
    %15 = vector.load %arg10[%c0_14, %c128] : memref<160x1280xbf16, #tpu.memory_space<vmem>>, vector<160x128xbf16>
    tpu.vector_store %arg10[%c0_14, %c128], %14 {strides = array<i32>} : memref<160x1280xbf16, #tpu.memory_space<vmem>>, vector<160x128xbf16>,
    %c2 = arith.constant 2 : index
    %c0_15 = arith.constant 0 : index
    %16 = tpu.strided_load %arg9[%c2, %c0_15] {strides = array<i32: 5, 1>} : memref<816x128xf32, #tpu.memory_space<vmem>>, vector<160x128xf32>
    %17 = arith.truncf %16 : vector<160x128xf32> to vector<160x128xbf16>
    %c0_16 = arith.constant 0 : index
    %c256 = arith.constant 256 : index
    %18 = vector.load %arg10[%c0_16, %c256] : memref<160x1280xbf16, #tpu.memory_space<vmem>>, vector<160x128xbf16>
    tpu.vector_store %arg10[%c0_16, %c256], %17 {strides = array<i32>} : memref<160x1280xbf16, #tpu.memory_space<vmem>>, vector<160x128xbf16>,
    %c3 = arith.constant 3 : index
    %c0_17 = arith.constant 0 : index
    %19 = tpu.strided_load %arg9[%c3, %c0_17] {strides = array<i32: 5, 1>} : memref<816x128xf32, #tpu.memory_space<vmem>>, vector<160x128xf32>
    %20 = arith.truncf %19 : vector<160x128xf32> to vector<160x128xbf16>
    %c0_18 = arith.constant 0 : index
    %c384 = arith.constant 384 : index
    %21 = vector.load %arg10[%c0_18, %c384] : memref<160x1280xbf16, #tpu.memory_space<vmem>>, vector<160x128xbf16>
    tpu.vector_store %arg10[%c0_18, %c384], %20 {strides = array<i32>} : memref<160x1280xbf16, #tpu.memory_space<vmem>>, vector<160x128xbf16>,
    %c4 = arith.constant 4 : index
    %c0_19 = arith.constant 0 : index
    %22 = tpu.strided_load %arg9[%c4, %c0_19] {strides = array<i32: 5, 1>} : memref<816x128xf32, #tpu.memory_space<vmem>>, vector<160x128xf32>
    %23 = arith.truncf %22 : vector<160x128xf32> to vector<160x128xbf16>
    %c0_20 = arith.constant 0 : index
    %c512 = arith.constant 512 : index
    %24 = vector.load %arg10[%c0_20, %c512] : memref<160x1280xbf16, #tpu.memory_space<vmem>>, vector<160x128xbf16>
    tpu.vector_store %arg10[%c0_20, %c512], %23 {strides = array<i32>} : memref<160x1280xbf16, #tpu.memory_space<vmem>>, vector<160x128xbf16>,
    %c5 = arith.constant 5 : index
    %c0_21 = arith.constant 0 : index
    %25 = tpu.strided_load %arg9[%c5, %c0_21] {strides = array<i32: 5, 1>} : memref<816x128xf32, #tpu.memory_space<vmem>>, vector<160x128xf32>
    %26 = arith.truncf %25 : vector<160x128xf32> to vector<160x128xbf16>
    %c0_22 = arith.constant 0 : index
    %c640 = arith.constant 640 : index
    %27 = vector.load %arg10[%c0_22, %c640] : memref<160x1280xbf16, #tpu.memory_space<vmem>>, vector<160x128xbf16>
    tpu.vector_store %arg10[%c0_22, %c640], %26 {strides = array<i32>} : memref<160x1280xbf16, #tpu.memory_space<vmem>>, vector<160x128xbf16>,
    %c6 = arith.constant 6 : index
    %c0_23 = arith.constant 0 : index
    %28 = tpu.strided_load %arg9[%c6, %c0_23] {strides = array<i32: 5, 1>} : memref<816x128xf32, #tpu.memory_space<vmem>>, vector<160x128xf32>
    %29 = arith.truncf %28 : vector<160x128xf32> to vector<160x128xbf16>
    %c0_24 = arith.constant 0 : index
    %c768 = arith.constant 768 : index
    %30 = vector.load %arg10[%c0_24, %c768] : memref<160x1280xbf16, #tpu.memory_space<vmem>>, vector<160x128xbf16>
    tpu.vector_store %arg10[%c0_24, %c768], %29 {strides = array<i32>} : memref<160x1280xbf16, #tpu.memory_space<vmem>>, vector<160x128xbf16>,
    %c7 = arith.constant 7 : index
    %c0_25 = arith.constant 0 : index
    %31 = tpu.strided_load %arg9[%c7, %c0_25] {strides = array<i32: 5, 1>} : memref<816x128xf32, #tpu.memory_space<vmem>>, vector<160x128xf32>
    %32 = arith.truncf %31 : vector<160x128xf32> to vector<160x128xbf16>
    %c0_26 = arith.constant 0 : index
    %c896 = arith.constant 896 : index
    %33 = vector.load %arg10[%c0_26, %c896] : memref<160x1280xbf16, #tpu.memory_space<vmem>>, vector<160x128xbf16>
    tpu.vector_store %arg10[%c0_26, %c896], %32 {strides = array<i32>} : memref<160x1280xbf16, #tpu.memory_space<vmem>>, vector<160x128xbf16>,
    %c8 = arith.constant 8 : index
    %c0_27 = arith.constant 0 : index
    %34 = tpu.strided_load %arg9[%c8, %c0_27] {strides = array<i32: 5, 1>} : memref<816x128xf32, #tpu.memory_space<vmem>>, vector<160x128xf32>
    %35 = arith.truncf %34 : vector<160x128xf32> to vector<160x128xbf16>
    %c0_28 = arith.constant 0 : index
    %c1024 = arith.constant 1024 : index
    %36 = vector.load %arg10[%c0_28, %c1024] : memref<160x1280xbf16, #tpu.memory_space<vmem>>, vector<160x128xbf16>
    tpu.vector_store %arg10[%c0_28, %c1024], %35 {strides = array<i32>} : memref<160x1280xbf16, #tpu.memory_space<vmem>>, vector<160x128xbf16>,
    %c9 = arith.constant 9 : index
    %c0_29 = arith.constant 0 : index
    %37 = tpu.strided_load %arg9[%c9, %c0_29] {strides = array<i32: 5, 1>} : memref<816x128xf32, #tpu.memory_space<vmem>>, vector<160x128xf32>
    %38 = arith.truncf %37 : vector<160x128xf32> to vector<160x128xbf16>
    %c0_30 = arith.constant 0 : index
    %c1152 = arith.constant 1152 : index
    %39 = vector.load %arg10[%c0_30, %c1152] : memref<160x1280xbf16, #tpu.memory_space<vmem>>, vector<160x128xbf16>
    tpu.vector_store %arg10[%c0_30, %c1152], %38 {strides = array<i32>} : memref<160x1280xbf16, #tpu.memory_space<vmem>>, vector<160x128xbf16>,
    %c0_31 = arith.constant 0 : index
    %c0_32 = arith.constant 0 : index
    %40 = vector.load %arg10[%c0_31, %c0_32] : memref<160x1280xbf16, #tpu.memory_space<vmem>>, vector<160x1280xbf16>
    %c0_33 = arith.constant 0 : index
    %c0_34 = arith.constant 0 : index
    %41 = vector.load %arg4[%c0_33, %c0_34] : memref<1280x128xbf16, #tpu.memory_space<vmem>>, vector<1280x128xbf16>
    %cst_35 = arith.constant dense<0.000000e+00> : vector<160x128xf32>
    %42 = tpu.matmul %40, %41, %cst_35 {dimension_numbers = #tpu.dot_dimension_numbers<[1], [0], [0], [1], [0, 0, 1, 1], [], []>} : vector<160x1280xbf16>, vector<1280x128xbf16>, vector<160x128xf32> -> vector<160x128xf32>
    %c0_36 = arith.constant 0 : index
    %c0_37 = arith.constant 0 : index
    %43 = vector.load %arg5[%c0_36, %c0_37] : memref<1x128xf32, #tpu.memory_space<vmem>>, vector<1x128xf32>
    %44 = vector.broadcast %43 : vector<1x128xf32> to vector<160x128xf32>
    %45 = arith.addf %42, %44 : vector<160x128xf32>
    %c0_38 = arith.constant 0 : index
    %c0_39 = arith.constant 0 : index
    %46 = vector.load %arg11[%c0_38, %c0_39] : memref<160x128xf32, #tpu.memory_space<vmem>>, vector<160x128xf32>
    tpu.vector_store %arg11[%c0_38, %c0_39], %45 {strides = array<i32>} : memref<160x128xf32, #tpu.memory_space<vmem>>, vector<160x128xf32>,
    %c0_40 = arith.constant 0 : index
    %c0_41 = arith.constant 0 : index
    %47 = tpu.strided_load %arg11[%c0_40, %c0_41] {strides = array<i32: 10, 1>} : memref<160x128xf32, #tpu.memory_space<vmem>>, vector<16x128xf32>
    %48 = arith.truncf %47 : vector<16x128xf32> to vector<16x128xbf16>
    %c0_42 = arith.constant 0 : index
    %c0_43 = arith.constant 0 : index
    %49 = vector.load %arg12[%c0_42, %c0_43] : memref<16x1152xbf16, #tpu.memory_space<vmem>>, vector<16x128xbf16>
    tpu.vector_store %arg12[%c0_42, %c0_43], %48 {strides = array<i32>} : memref<16x1152xbf16, #tpu.memory_space<vmem>>, vector<16x128xbf16>,
    %c1_44 = arith.constant 1 : index
    %c0_45 = arith.constant 0 : index
    %50 = tpu.strided_load %arg11[%c1_44, %c0_45] {strides = array<i32: 10, 1>} : memref<160x128xf32, #tpu.memory_space<vmem>>, vector<16x128xf32>
    %51 = arith.truncf %50 : vector<16x128xf32> to vector<16x128xbf16>
    %c0_46 = arith.constant 0 : index
    %c128_47 = arith.constant 128 : index
    %52 = vector.load %arg12[%c0_46, %c128_47] : memref<16x1152xbf16, #tpu.memory_space<vmem>>, vector<16x128xbf16>
    tpu.vector_store %arg12[%c0_46, %c128_47], %51 {strides = array<i32>} : memref<16x1152xbf16, #tpu.memory_space<vmem>>, vector<16x128xbf16>,
    %c2_48 = arith.constant 2 : index
    %c0_49 = arith.constant 0 : index
    %53 = tpu.strided_load %arg11[%c2_48, %c0_49] {strides = array<i32: 10, 1>} : memref<160x128xf32, #tpu.memory_space<vmem>>, vector<16x128xf32>
    %54 = arith.truncf %53 : vector<16x128xf32> to vector<16x128xbf16>
    %c0_50 = arith.constant 0 : index
    %c256_51 = arith.constant 256 : index
    %55 = vector.load %arg12[%c0_50, %c256_51] : memref<16x1152xbf16, #tpu.memory_space<vmem>>, vector<16x128xbf16>
    tpu.vector_store %arg12[%c0_50, %c256_51], %54 {strides = array<i32>} : memref<16x1152xbf16, #tpu.memory_space<vmem>>, vector<16x128xbf16>,
    %c3_52 = arith.constant 3 : index
    %c0_53 = arith.constant 0 : index
    %56 = tpu.strided_load %arg11[%c3_52, %c0_53] {strides = array<i32: 10, 1>} : memref<160x128xf32, #tpu.memory_space<vmem>>, vector<16x128xf32>
    %57 = arith.truncf %56 : vector<16x128xf32> to vector<16x128xbf16>
    %c0_54 = arith.constant 0 : index
    %c384_55 = arith.constant 384 : index
    %58 = vector.load %arg12[%c0_54, %c384_55] : memref<16x1152xbf16, #tpu.memory_space<vmem>>, vector<16x128xbf16>
    tpu.vector_store %arg12[%c0_54, %c384_55], %57 {strides = array<i32>} : memref<16x1152xbf16, #tpu.memory_space<vmem>>, vector<16x128xbf16>,
    %c4_56 = arith.constant 4 : index
    %c0_57 = arith.constant 0 : index
    %59 = tpu.strided_load %arg11[%c4_56, %c0_57] {strides = array<i32: 10, 1>} : memref<160x128xf32, #tpu.memory_space<vmem>>, vector<16x128xf32>
    %60 = arith.truncf %59 : vector<16x128xf32> to vector<16x128xbf16>
    %c0_58 = arith.constant 0 : index
    %c512_59 = arith.constant 512 : index
    %61 = vector.load %arg12[%c0_58, %c512_59] : memref<16x1152xbf16, #tpu.memory_space<vmem>>, vector<16x128xbf16>
    tpu.vector_store %arg12[%c0_58, %c512_59], %60 {strides = array<i32>} : memref<16x1152xbf16, #tpu.memory_space<vmem>>, vector<16x128xbf16>,
    %c5_60 = arith.constant 5 : index
    %c0_61 = arith.constant 0 : index
    %62 = tpu.strided_load %arg11[%c5_60, %c0_61] {strides = array<i32: 10, 1>} : memref<160x128xf32, #tpu.memory_space<vmem>>, vector<16x128xf32>
    %63 = arith.truncf %62 : vector<16x128xf32> to vector<16x128xbf16>
    %c0_62 = arith.constant 0 : index
    %c640_63 = arith.constant 640 : index
    %64 = vector.load %arg12[%c0_62, %c640_63] : memref<16x1152xbf16, #tpu.memory_space<vmem>>, vector<16x128xbf16>
    tpu.vector_store %arg12[%c0_62, %c640_63], %63 {strides = array<i32>} : memref<16x1152xbf16, #tpu.memory_space<vmem>>, vector<16x128xbf16>,
    %c6_64 = arith.constant 6 : index
    %c0_65 = arith.constant 0 : index
    %65 = tpu.strided_load %arg11[%c6_64, %c0_65] {strides = array<i32: 10, 1>} : memref<160x128xf32, #tpu.memory_space<vmem>>, vector<16x128xf32>
    %66 = arith.truncf %65 : vector<16x128xf32> to vector<16x128xbf16>
    %c0_66 = arith.constant 0 : index
    %c768_67 = arith.constant 768 : index
    %67 = vector.load %arg12[%c0_66, %c768_67] : memref<16x1152xbf16, #tpu.memory_space<vmem>>, vector<16x128xbf16>
    tpu.vector_store %arg12[%c0_66, %c768_67], %66 {strides = array<i32>} : memref<16x1152xbf16, #tpu.memory_space<vmem>>, vector<16x128xbf16>,
    %c7_68 = arith.constant 7 : index
    %c0_69 = arith.constant 0 : index
    %68 = tpu.strided_load %arg11[%c7_68, %c0_69] {strides = array<i32: 10, 1>} : memref<160x128xf32, #tpu.memory_space<vmem>>, vector<16x128xf32>
    %69 = arith.truncf %68 : vector<16x128xf32> to vector<16x128xbf16>
    %c0_70 = arith.constant 0 : index
    %c896_71 = arith.constant 896 : index
    %70 = vector.load %arg12[%c0_70, %c896_71] : memref<16x1152xbf16, #tpu.memory_space<vmem>>, vector<16x128xbf16>
    tpu.vector_store %arg12[%c0_70, %c896_71], %69 {strides = array<i32>} : memref<16x1152xbf16, #tpu.memory_space<vmem>>, vector<16x128xbf16>,
    %c8_72 = arith.constant 8 : index
    %c0_73 = arith.constant 0 : index
    %71 = tpu.strided_load %arg11[%c8_72, %c0_73] {strides = array<i32: 10, 1>} : memref<160x128xf32, #tpu.memory_space<vmem>>, vector<16x128xf32>
    %72 = arith.truncf %71 : vector<16x128xf32> to vector<16x128xbf16>
    %c0_74 = arith.constant 0 : index
    %c1024_75 = arith.constant 1024 : index
    %73 = vector.load %arg12[%c0_74, %c1024_75] : memref<16x1152xbf16, #tpu.memory_space<vmem>>, vector<16x128xbf16>
    tpu.vector_store %arg12[%c0_74, %c1024_75], %72 {strides = array<i32>} : memref<16x1152xbf16, #tpu.memory_space<vmem>>, vector<16x128xbf16>,
    %c0_76 = arith.constant 0 : index
    %c0_77 = arith.constant 0 : index
    %74 = vector.load %arg12[%c0_76, %c0_77] : memref<16x1152xbf16, #tpu.memory_space<vmem>>, vector<16x1152xbf16>
    %c0_78 = arith.constant 0 : index
    %c0_79 = arith.constant 0 : index
    %75 = vector.load %arg6[%c0_78, %c0_79] : memref<1152x192xbf16, #tpu.memory_space<vmem>>, vector<1152x192xbf16>
    %cst_80 = arith.constant dense<0.000000e+00> : vector<16x192xf32>
    %76 = tpu.matmul %74, %75, %cst_80 {dimension_numbers = #tpu.dot_dimension_numbers<[1], [0], [0], [1], [0, 0, 1, 1], [], []>} : vector<16x1152xbf16>, vector<1152x192xbf16>, vector<16x192xf32> -> vector<16x192xf32>
    %c0_81 = arith.constant 0 : index
    %c0_82 = arith.constant 0 : index
    %77 = vector.load %arg7[%c0_81, %c0_82] : memref<1x192xf32, #tpu.memory_space<vmem>>, vector<1x192xf32>
    %78 = vector.broadcast %77 : vector<1x192xf32> to vector<16x192xf32>
    %79 = arith.addf %76, %78 : vector<16x192xf32>
    %c0_83 = arith.constant 0 : index
    %c0_84 = arith.constant 0 : index
    %80 = vector.load %arg8[%c0_83, %c0_84] : memref<16x192xf32, #tpu.memory_space<vmem>>, vector<16x192xf32>
    tpu.vector_store %arg8[%c0_83, %c0_84], %79 {strides = array<i32>} : memref<16x192xf32, #tpu.memory_space<vmem>>, vector<16x192xf32>,
    return
  }
}

</mosaic_0001>

<llo_original>
// kernel: model_forward.1
$region0: #{model_forward.1}
  #allocation0 [shape = 'u32[]', space=smem, size = 0x4, offset = 0x4, fixed_abs, tag = 'smem constant byte address 0x4 - core index']
  #allocation1 [shape = 'u32[72,128]{1,0:T(1,128)}', space=vmem, size = 0x9000, scoped, tag = 'internal scratch']
  #allocation2 [shape = 'f32[816,128]{1,0:T(8,128)}', space=vmem, size = 0x66000, scoped, tag = 'scratch operand']
  #allocation3 [shape = 'bf16[160,1280]{1,0:T(8,128)(2,1)}', space=vmem, size = 0x64000, scoped, tag = 'scratch operand']
  #allocation4 [shape = 'f32[160,128]{1,0:T(8,128)}', space=vmem, size = 0x14000, scoped, tag = 'scratch operand']
  #allocation5 [shape = 'bf16[16,1152]{1,0:T(8,128)(2,1)}', space=vmem, size = 0x9000, scoped, tag = 'scratch operand']
  %s0 = inlined_call_operand.vmem [shape: bf16[816,128], index: 0, kind: input, shape index: {}]
  %s1 = inlined_call_operand.vmem [shape: f32[816,1], index: 1, kind: input, shape index: {}]
  %s2 = inlined_call_operand.vmem [shape: bf16[128,128], index: 2, kind: input, shape index: {}]
  %s3 = inlined_call_operand.vmem [shape: f32[1,128], index: 3, kind: input, shape index: {}]
  %s4 = inlined_call_operand.vmem [shape: bf16[1280,128], index: 4, kind: input, shape index: {}]
  %s5 = inlined_call_operand.vmem [shape: f32[1,128], index: 5, kind: input, shape index: {}]
  %s6 = inlined_call_operand.vmem [shape: bf16[1152,192], index: 6, kind: input, shape index: {}]
  %s7 = inlined_call_operand.vmem [shape: f32[1,192], index: 7, kind: input, shape index: {}]
  %s8 = inlined_call_operand.vmem [shape: f32[16,192], index: 8, kind: output, shape index: {}]
  %s9 = sld [smem:[#allocation0]]
  $region42: #{model_forward.1} parent=0
    _
  %s11 = ssub.s32 1, %s9
  %s12 = scalar_select 0, %s11, %s9
  // Predicated region
  $region2: #{model_forward.1} parent=0 // pred_check
    _
  $region3: #{model_forward.1} parent=0 // pred_check_branch
    %14 = sbr.rel (0) target = $region5
  $region4: #{model_forward.1} parent=0 // pred_region
    _
  $region5: #{model_forward.1} parent=0 // pred_fallthru
    _
  // Predicated region
  $region6: #{model_forward.1} parent=0 // pred_check
    _
  $region7: #{model_forward.1} parent=0 // pred_check_branch
    %16 = sbr.rel (0) target = $region9
  $region8: #{model_forward.1} parent=0 // pred_region
    _
  $region9: #{model_forward.1} parent=0 // pred_fallthru
    _
  // Predicated region
  $region10: #{model_forward.1} parent=0 // pred_check
    _
  $region11: #{model_forward.1} parent=0 // pred_check_branch
    %18 = sbr.rel (0) target = $region13
  $region12: #{model_forward.1} parent=0 // pred_region
    _
  $region13: #{model_forward.1} parent=0 // pred_fallthru
    _
  // Predicated region
  $region14: #{model_forward.1} parent=0 // pred_check
    _
  $region15: #{model_forward.1} parent=0 // pred_check_branch
    %20 = sbr.rel (0) target = $region17
  $region16: #{model_forward.1} parent=0 // pred_region
    _
  $region17: #{model_forward.1} parent=0 // pred_fallthru
    _
  // Predicated region
  $region18: #{model_forward.1} parent=0 // pred_check
    _
  $region19: #{model_forward.1} parent=0 // pred_check_branch
    %22 = sbr.rel (0) target = $region21
  $region20: #{model_forward.1} parent=0 // pred_region
    _
  $region21: #{model_forward.1} parent=0 // pred_fallthru
    _
  // Predicated region
  $region22: #{model_forward.1} parent=0 // pred_check
    _
  $region23: #{model_forward.1} parent=0 // pred_check_branch
    %24 = sbr.rel (0) target = $region25
  $region24: #{model_forward.1} parent=0 // pred_region
    _
  $region25: #{model_forward.1} parent=0 // pred_fallthru
    _
  // Predicated region
  $region26: #{model_forward.1} parent=0 // pred_check
    _
  $region27: #{model_forward.1} parent=0 // pred_check_branch
    %26 = sbr.rel (0) target = $region29
  $region28: #{model_forward.1} parent=0 // pred_region
    _
  $region29: #{model_forward.1} parent=0 // pred_fallthru
    _
  // Predicated region
  $region30: #{model_forward.1} parent=0 // pred_check
    _
  $region31: #{model_forward.1} parent=0 // pred_check_branch
    %28 = sbr.rel (0) target = $region33
  $region32: #{model_forward.1} parent=0 // pred_region
    _
  $region33: #{model_forward.1} parent=0 // pred_fallthru
    _
  %v29 = vld [vmem:[%s0] sm:$0xf]
  %v30 = vld [vmem:[%s0 + $0x4] sm:$0xf]
  %v31 = vld [vmem:[%s0 + $0x8] sm:$0xf]
  %v32 = vld [vmem:[%s0 + $0xc] sm:$0xf]
  %v33 = vld [vmem:[%s0 + $0x10] sm:$0xf]
  %v34 = vld [vmem:[%s0 + $0x14] sm:$0xf]
  %v35 = vld [vmem:[%s0 + $0x18] sm:$0xf]
  %v36 = vld [vmem:[%s0 + $0x1c] sm:$0xf]
  %v37 = vld [vmem:[%s0 + $0x20] sm:$0xf]
  %v38 = vld [vmem:[%s0 + $0x24] sm:$0xf]
  %v39 = vld [vmem:[%s0 + $0x28] sm:$0xf]
  %v40 = vld [vmem:[%s0 + $0x2c] sm:$0xf]
  %v41 = vld [vmem:[%s0 + $0x30] sm:$0xf]
  %v42 = vld [vmem:[%s0 + $0x34] sm:$0xf]
  %v43 = vld [vmem:[%s0 + $0x38] sm:$0xf]
  %v44 = vld [vmem:[%s0 + $0x3c] sm:$0xf]
  %v45 = vld [vmem:[%s0 + $0x40] sm:$0xf]
  %v46 = vld [vmem:[%s0 + $0x44] sm:$0xf]
  %v47 = vld [vmem:[%s0 + $0x48] sm:$0xf]
  %v48 = vld [vmem:[%s0 + $0x4c] sm:$0xf]
  %v49 = vld [vmem:[%s0 + $0x50] sm:$0xf]
  %v50 = vld [vmem:[%s0 + $0x54] sm:$0xf]
  %v51 = vld [vmem:[%s0 + $0x58] sm:$0xf]
  %v52 = vld [vmem:[%s0 + $0x5c] sm:$0xf]
  %v53 = vld [vmem:[%s0 + $0x60] sm:$0xf]
  %v54 = vld [vmem:[%s0 + $0x64] sm:$0xf]
  %v55 = vld [vmem:[%s0 + $0x68] sm:$0xf]
  %v56 = vld [vmem:[%s0 + $0x6c] sm:$0xf]
  %v57 = vld [vmem:[%s0 + $0x70] sm:$0xf]
  %v58 = vld [vmem:[%s0 + $0x74] sm:$0xf]
  %v59 = vld [vmem:[%s0 + $0x78] sm:$0xf]
  %v60 = vld [vmem:[%s0 + $0x7c] sm:$0xf]
  %v61 = vld [vmem:[%s0 + $0x80] sm:$0xf]
  %v62 = vld [vmem:[%s0 + $0x84] sm:$0xf]
  %v63 = vld [vmem:[%s0 + $0x88] sm:$0xf]
  %v64 = vld [vmem:[%s0 + $0x8c] sm:$0xf]
  %v65 = vld [vmem:[%s0 + $0x90] sm:$0xf]
  %v66 = vld [vmem:[%s0 + $0x94] sm:$0xf]
  %v67 = vld [vmem:[%s0 + $0x98] sm:$0xf]
  %v68 = vld [vmem:[%s0 + $0x9c] sm:$0xf]
  %v69 = vld [vmem:[%s0 + $0xa0] sm:$0xf]
  %v70 = vld [vmem:[%s0 + $0xa4] sm:$0xf]
  %v71 = vld [vmem:[%s0 + $0xa8] sm:$0xf]
  %v72 = vld [vmem:[%s0 + $0xac] sm:$0xf]
  %v73 = vld [vmem:[%s0 + $0xb0] sm:$0xf]
  %v74 = vld [vmem:[%s0 + $0xb4] sm:$0xf]
  %v75 = vld [vmem:[%s0 + $0xb8] sm:$0xf]
  %v76 = vld [vmem:[%s0 + $0xbc] sm:$0xf]
  %v77 = vld [vmem:[%s0 + $0xc0] sm:$0xf]
  %v78 = vld [vmem:[%s0 + $0xc4] sm:$0xf]
  %v79 = vld [vmem:[%s0 + $0xc8] sm:$0xf]
  %v80 = vld [vmem:[%s0 + $0xcc] sm:$0xf]
  %v81 = vld [vmem:[%s0 + $0xd0] sm:$0xf]
  %v82 = vld [vmem:[%s0 + $0xd4] sm:$0xf]
  %v83 = vld [vmem:[%s0 + $0xd8] sm:$0xf]
  %v84 = vld [vmem:[%s0 + $0xdc] sm:$0xf]
  %v85 = vld [vmem:[%s0 + $0xe0] sm:$0xf]
  %v86 = vld [vmem:[%s0 + $0xe4] sm:$0xf]
  %v87 = vld [vmem:[%s0 + $0xe8] sm:$0xf]
  %v88 = vld [vmem:[%s0 + $0xec] sm:$0xf]
  %v89 = vld [vmem:[%s0 + $0xf0] sm:$0xf]
  %v90 = vld [vmem:[%s0 + $0xf4] sm:$0xf]
  %v91 = vld [vmem:[%s0 + $0xf8] sm:$0xf]
  %v92 = vld [vmem:[%s0 + $0xfc] sm:$0xf]
  %v93 = vld [vmem:[%s0 + $0x100] sm:$0xf]
  %v94 = vld [vmem:[%s0 + $0x104] sm:$0xf]
  %v95 = vld [vmem:[%s0 + $0x108] sm:$0xf]
  %v96 = vld [vmem:[%s0 + $0x10c] sm:$0xf]
  %v97 = vld [vmem:[%s0 + $0x110] sm:$0xf]
  %v98 = vld [vmem:[%s0 + $0x114] sm:$0xf]
  %v99 = vld [vmem:[%s0 + $0x118] sm:$0xf]
  %v100 = vld [vmem:[%s0 + $0x11c] sm:$0xf]
  %v101 = vld [vmem:[%s0 + $0x120] sm:$0xf]
  %v102 = vld [vmem:[%s0 + $0x124] sm:$0xf]
  %v103 = vld [vmem:[%s0 + $0x128] sm:$0xf]
  %v104 = vld [vmem:[%s0 + $0x12c] sm:$0xf]
  %v105 = vld [vmem:[%s0 + $0x130] sm:$0xf]
  %v106 = vld [vmem:[%s0 + $0x134] sm:$0xf]
  %v107 = vld [vmem:[%s0 + $0x138] sm:$0xf]
  %v108 = vld [vmem:[%s0 + $0x13c] sm:$0xf]
  %v109 = vld [vmem:[%s0 + $0x140] sm:$0xf]
  %v110 = vld [vmem:[%s0 + $0x144] sm:$0xf]
  %v111 = vld [vmem:[%s0 + $0x148] sm:$0xf]
  %v112 = vld [vmem:[%s0 + $0x14c] sm:$0xf]
  %v113 = vld [vmem:[%s0 + $0x150] sm:$0xf]
  %v114 = vld [vmem:[%s0 + $0x154] sm:$0xf]
  %v115 = vld [vmem:[%s0 + $0x158] sm:$0xf]
  %v116 = vld [vmem:[%s0 + $0x15c] sm:$0xf]
  %v117 = vld [vmem:[%s0 + $0x160] sm:$0xf]
  %v118 = vld [vmem:[%s0 + $0x164] sm:$0xf]
  %v119 = vld [vmem:[%s0 + $0x168] sm:$0xf]
  %v120 = vld [vmem:[%s0 + $0x16c] sm:$0xf]
  %v121 = vld [vmem:[%s0 + $0x170] sm:$0xf]
  %v122 = vld [vmem:[%s0 + $0x174] sm:$0xf]
  %v123 = vld [vmem:[%s0 + $0x178] sm:$0xf]
  %v124 = vld [vmem:[%s0 + $0x17c] sm:$0xf]
  %v125 = vld [vmem:[%s0 + $0x180] sm:$0xf]
  %v126 = vld [vmem:[%s0 + $0x184] sm:$0xf]
  %v127 = vld [vmem:[%s0 + $0x188] sm:$0xf]
  %v128 = vld [vmem:[%s0 + $0x18c] sm:$0xf]
  %v129 = vld [vmem:[%s0 + $0x190] sm:$0xf]
  %v130 = vld [vmem:[%s0 + $0x194] sm:$0xf]
  %v131 = vld [vmem:[%s2] sm:$0xf]
  %v132 = vld [vmem:[%s2 + $0x4] sm:$0xf]
  %v133 = vld [vmem:[%s2 + $0x8] sm:$0xf]
  %v134 = vld [vmem:[%s2 + $0xc] sm:$0xf]
  %v135 = vld [vmem:[%s2 + $0x10] sm:$0xf]
  %v136 = vld [vmem:[%s2 + $0x14] sm:$0xf]
  %v137 = vld [vmem:[%s2 + $0x18] sm:$0xf]
  %v138 = vld [vmem:[%s2 + $0x1c] sm:$0xf]
  %v139 = vld [vmem:[%s2 + $0x20] sm:$0xf]
  %v140 = vld [vmem:[%s2 + $0x24] sm:$0xf]
  %v141 = vld [vmem:[%s2 + $0x28] sm:$0xf]
  %v142 = vld [vmem:[%s2 + $0x2c] sm:$0xf]
  %v143 = vld [vmem:[%s2 + $0x30] sm:$0xf]
  %v144 = vld [vmem:[%s2 + $0x34] sm:$0xf]
  %v145 = vld [vmem:[%s2 + $0x38] sm:$0xf]
  %v146 = vld [vmem:[%s2 + $0x3c] sm:$0xf]
  %v147 = vld [vmem:[%s3] sm:$0x1]
  %v149 = vperm.slane %v147, 0
  %v253 = vunpack.c.l.b16 %v29
  %v254 = vunpack.c.l.b16 %v30
  %v255 = vunpack.c.l.b16 %v31
  %v256 = vunpack.c.l.b16 %v32
  %v257 = vunpack.c.l.b16 %v33
  %v258 = vunpack.c.l.b16 %v34
  %v259 = vunpack.c.l.b16 %v35
  %v260 = vunpack.c.l.b16 %v36
  %v261 = vunpack.c.l.b16 %v37
  %v262 = vunpack.c.l.b16 %v38
  %v263 = vunpack.c.l.b16 %v39
  %v264 = vunpack.c.l.b16 %v40
  %v265 = vunpack.c.l.b16 %v41
  %v266 = vunpack.c.l.b16 %v42
  %v267 = vunpack.c.l.b16 %v43
  %v268 = vunpack.c.l.b16 %v44
  %v269 = vunpack.c.l.b16 %v45
  %v270 = vunpack.c.l.b16 %v46
  %v271 = vunpack.c.l.b16 %v47
  %v272 = vunpack.c.l.b16 %v48
  %v273 = vunpack.c.l.b16 %v49
  %v274 = vunpack.c.l.b16 %v50
  %v275 = vunpack.c.l.b16 %v51
  %v276 = vunpack.c.l.b16 %v52
  %v277 = vunpack.c.l.b16 %v53
  %v278 = vunpack.c.l.b16 %v54
  %v279 = vunpack.c.l.b16 %v55
  %v280 = vunpack.c.l.b16 %v56
  %v281 = vunpack.c.l.b16 %v57
  %v282 = vunpack.c.l.b16 %v58
  %v283 = vunpack.c.l.b16 %v59
  %v284 = vunpack.c.l.b16 %v60
  %v285 = vunpack.c.l.b16 %v61
  %v286 = vunpack.c.l.b16 %v62
  %v287 = vunpack.c.l.b16 %v63
  %v288 = vunpack.c.l.b16 %v64
  %v289 = vunpack.c.l.b16 %v65
  %v290 = vunpack.c.l.b16 %v66
  %v291 = vunpack.c.l.b16 %v67
  %v292 = vunpack.c.l.b16 %v68
  %v293 = vunpack.c.l.b16 %v69
  %v294 = vunpack.c.l.b16 %v70
  %v295 = vunpack.c.l.b16 %v71
  %v296 = vunpack.c.l.b16 %v72
  %v297 = vunpack.c.l.b16 %v73
  %v298 = vunpack.c.l.b16 %v74
  %v299 = vunpack.c.l.b16 %v75
  %v300 = vunpack.c.l.b16 %v76
  %v301 = vunpack.c.l.b16 %v77
  %v302 = vunpack.c.l.b16 %v78
  %v303 = vunpack.c.l.b16 %v79
  %v304 = vunpack.c.l.b16 %v80
  %v305 = vunpack.c.l.b16 %v81
  %v306 = vunpack.c.l.b16 %v82
  %v307 = vunpack.c.l.b16 %v83
  %v308 = vunpack.c.l.b16 %v84
  %v309 = vunpack.c.l.b16 %v85
  %v310 = vunpack.c.l.b16 %v86
  %v311 = vunpack.c.l.b16 %v87
  %v312 = vunpack.c.l.b16 %v88
  %v313 = vunpack.c.l.b16 %v89
  %v314 = vunpack.c.l.b16 %v90
  %v315 = vunpack.c.l.b16 %v91
  %v316 = vunpack.c.l.b16 %v92
  %v317 = vunpack.c.l.b16 %v93
  %v318 = vunpack.c.l.b16 %v94
  %v319 = vunpack.c.l.b16 %v95
  %v320 = vunpack.c.l.b16 %v96
  %v321 = vunpack.c.l.b16 %v97
  %v322 = vunpack.c.l.b16 %v98
  %v323 = vunpack.c.l.b16 %v99
  %v324 = vunpack.c.l.b16 %v100
  %v325 = vunpack.c.l.b16 %v101
  %v326 = vunpack.c.l.b16 %v102
  %v327 = vunpack.c.l.b16 %v103
  %v328 = vunpack.c.l.b16 %v104
  %v329 = vunpack.c.l.b16 %v105
  %v330 = vunpack.c.l.b16 %v106
  %v331 = vunpack.c.l.b16 %v107
  %v332 = vunpack.c.l.b16 %v108
  %v333 = vunpack.c.l.b16 %v109
  %v334 = vunpack.c.l.b16 %v110
  %v335 = vunpack.c.l.b16 %v111
  %v336 = vunpack.c.l.b16 %v112
  %v337 = vunpack.c.l.b16 %v113
  %v338 = vunpack.c.l.b16 %v114
  %v339 = vunpack.c.l.b16 %v115
  %v340 = vunpack.c.l.b16 %v116
  %v341 = vunpack.c.l.b16 %v117
  %v342 = vunpack.c.l.b16 %v118
  %v343 = vunpack.c.l.b16 %v119
  %v344 = vunpack.c.l.b16 %v120
  %v345 = vunpack.c.l.b16 %v121
  %v346 = vunpack.c.l.b16 %v122
  %v347 = vunpack.c.l.b16 %v123
  %v348 = vunpack.c.l.b16 %v124
  %v349 = vunpack.c.l.b16 %v125
  %v350 = vunpack.c.l.b16 %v126
  %v351 = vunpack.c.l.b16 %v127
  %v352 = vunpack.c.l.b16 %v128
  %v353 = vunpack.c.l.b16 %v129
  %v354 = vunpack.c.l.b16 %v130
  %v355 = vpack.c.b16 %v254, %v253
  %v356 = vpack.c.b16 %v256, %v255
  %v357 = vpack.c.b16 %v258, %v257
  %v358 = vpack.c.b16 %v260, %v259
  %v359 = vpack.c.b16 %v262, %v261
  %v360 = vpack.c.b16 %v264, %v263
  %v361 = vpack.c.b16 %v266, %v265
  %v362 = vpack.c.b16 %v268, %v267
  %v363 = vpack.c.b16 %v270, %v269
  %v364 = vpack.c.b16 %v272, %v271
  %v365 = vpack.c.b16 %v274, %v273
  %v366 = vpack.c.b16 %v276, %v275
  %v367 = vpack.c.b16 %v278, %v277
  %v368 = vpack.c.b16 %v280, %v279
  %v369 = vpack.c.b16 %v282, %v281
  %v370 = vpack.c.b16 %v284, %v283
  %v371 = vpack.c.b16 %v286, %v285
  %v372 = vpack.c.b16 %v288, %v287
  %v373 = vpack.c.b16 %v290, %v289
  %v374 = vpack.c.b16 %v292, %v291
  %v375 = vpack.c.b16 %v294, %v293
  %v376 = vpack.c.b16 %v296, %v295
  %v377 = vpack.c.b16 %v298, %v297
  %v378 = vpack.c.b16 %v300, %v299
  %v379 = vpack.c.b16 %v302, %v301
  %v380 = vpack.c.b16 %v304, %v303
  %v381 = vpack.c.b16 %v306, %v305
  %v382 = vpack.c.b16 %v308, %v307
  %v383 = vpack.c.b16 %v310, %v309
  %v384 = vpack.c.b16 %v312, %v311
  %v385 = vpack.c.b16 %v314, %v313
  %v386 = vpack.c.b16 %v316, %v315
  %v387 = vpack.c.b16 %v318, %v317
  %v388 = vpack.c.b16 %v320, %v319
  %v389 = vpack.c.b16 %v322, %v321
  %v390 = vpack.c.b16 %v324, %v323
  %v391 = vpack.c.b16 %v326, %v325
  %v392 = vpack.c.b16 %v328, %v327
  %v393 = vpack.c.b16 %v330, %v329
  %v394 = vpack.c.b16 %v332, %v331
  %v395 = vpack.c.b16 %v334, %v333
  %v396 = vpack.c.b16 %v336, %v335
  %v397 = vpack.c.b16 %v338, %v337
  %v398 = vpack.c.b16 %v340, %v339
  %v399 = vpack.c.b16 %v342, %v341
  %v400 = vpack.c.b16 %v344, %v343
  %v401 = vpack.c.b16 %v346, %v345
  %v402 = vpack.c.b16 %v348, %v347
  %v403 = vpack.c.b16 %v350, %v349
  %v404 = vpack.c.b16 %v352, %v351
  %v405 = vpack.c.b16 %v354, %v353
  %v473 = vunpack.c.l.b16 %v131
  %v474 = vunpack.c.l.b16 %v132
  %v475 = vunpack.c.l.b16 %v133
  %v476 = vunpack.c.l.b16 %v134
  %v477 = vunpack.c.l.b16 %v135
  %v478 = vunpack.c.l.b16 %v136
  %v479 = vunpack.c.l.b16 %v137
  %v480 = vunpack.c.l.b16 %v138
  %v481 = vunpack.c.l.b16 %v139
  %v482 = vunpack.c.l.b16 %v140
  %v483 = vunpack.c.l.b16 %v141
  %v484 = vunpack.c.l.b16 %v142
  %v485 = vunpack.c.l.b16 %v143
  %v486 = vunpack.c.l.b16 %v144
  %v487 = vunpack.c.l.b16 %v145
  %v488 = vunpack.c.l.b16 %v146
  %v489 = vpack.c.b16 %v474, %v473
  %v490 = vpack.c.b16 %v476, %v475
  %v491 = vpack.c.b16 %v478, %v477
  %v492 = vpack.c.b16 %v480, %v479
  %v493 = vpack.c.b16 %v482, %v481
  %v494 = vpack.c.b16 %v484, %v483
  %v495 = vpack.c.b16 %v486, %v485
  %v496 = vpack.c.b16 %v488, %v487
  %505 = vmatpush.bf16.msra.mxu0 %v496
  %506 = vmatpush.bf16.msra.mxu0 %v495
  %507 = vmatpush.bf16.msra.mxu0 %v494
  %508 = vmatpush.bf16.msra.mxu0 %v493
  %509 = vmatpush.bf16.msra.mxu0 %v492
  %510 = vmatpush.bf16.msra.mxu0 %v491
  %511 = vmatpush.bf16.msra.mxu0 %v490
  %512 = vmatpush.bf16.msra.mxu0 %v489
  %513 = vmatmul.bf16.gmra.mxu0 %v355
  %v514 = vpop.f32.mrf.mxu0
  %v515 = vadd.f32 %v149, %v514
  %v516 = vpop.f32.mrf.mxu0
  %v517 = vadd.f32 %v149, %v516
  %518 = vmatmul.bf16.gmra.mxu0 %v356
  %v519 = vpop.f32.mrf.mxu0
  %v520 = vadd.f32 %v149, %v519
  %v521 = vpop.f32.mrf.mxu0
  %v522 = vadd.f32 %v149, %v521
  %523 = vmatmul.bf16.gmra.mxu0 %v357
  %v524 = vpop.f32.mrf.mxu0
  %v525 = vadd.f32 %v149, %v524
  %v526 = vpop.f32.mrf.mxu0
  %v527 = vadd.f32 %v149, %v526
  %528 = vmatmul.bf16.gmra.mxu0 %v358
  %v529 = vpop.f32.mrf.mxu0
  %v530 = vadd.f32 %v149, %v529
  %v531 = vpop.f32.mrf.mxu0
  %v532 = vadd.f32 %v149, %v531
  %533 = vmatmul.bf16.gmra.mxu0 %v359
  %v534 = vpop.f32.mrf.mxu0
  %v535 = vadd.f32 %v149, %v534
  %v536 = vpop.f32.mrf.mxu0
  %v537 = vadd.f32 %v149, %v536
  %538 = vmatmul.bf16.gmra.mxu0 %v360
  %v539 = vpop.f32.mrf.mxu0
  %v540 = vadd.f32 %v149, %v539
  %v541 = vpop.f32.mrf.mxu0
  %v542 = vadd.f32 %v149, %v541
  %543 = vmatmul.bf16.gmra.mxu0 %v361
  %v544 = vpop.f32.mrf.mxu0
  %v545 = vadd.f32 %v149, %v544
  %v546 = vpop.f32.mrf.mxu0
  %v547 = vadd.f32 %v149, %v546
  %548 = vmatmul.bf16.gmra.mxu0 %v362
  %v549 = vpop.f32.mrf.mxu0
  %v550 = vadd.f32 %v149, %v549
  %v551 = vpop.f32.mrf.mxu0
  %v552 = vadd.f32 %v149, %v551
  %553 = vmatmul.bf16.gmra.mxu0 %v363
  %v554 = vpop.f32.mrf.mxu0
  %v555 = vadd.f32 %v149, %v554
  %v556 = vpop.f32.mrf.mxu0
  %v557 = vadd.f32 %v149, %v556
  %558 = vmatmul.bf16.gmra.mxu0 %v364
  %v559 = vpop.f32.mrf.mxu0
  %v560 = vadd.f32 %v149, %v559
  %v561 = vpop.f32.mrf.mxu0
  %v562 = vadd.f32 %v149, %v561
  %563 = vmatmul.bf16.gmra.mxu0 %v365
  %v564 = vpop.f32.mrf.mxu0
  %v565 = vadd.f32 %v149, %v564
  %v566 = vpop.f32.mrf.mxu0
  %v567 = vadd.f32 %v149, %v566
  %568 = vmatmul.bf16.gmra.mxu0 %v366
  %v569 = vpop.f32.mrf.mxu0
  %v570 = vadd.f32 %v149, %v569
  %v571 = vpop.f32.mrf.mxu0
  %v572 = vadd.f32 %v149, %v571
  %573 = vmatmul.bf16.gmra.mxu0 %v367
  %v574 = vpop.f32.mrf.mxu0
  %v575 = vadd.f32 %v149, %v574
  %v576 = vpop.f32.mrf.mxu0
  %v577 = vadd.f32 %v149, %v576
  %578 = vmatmul.bf16.gmra.mxu0 %v368
  %v579 = vpop.f32.mrf.mxu0
  %v580 = vadd.f32 %v149, %v579
  %v581 = vpop.f32.mrf.mxu0
  %v582 = vadd.f32 %v149, %v581
  %583 = vmatmul.bf16.gmra.mxu0 %v369
  %v584 = vpop.f32.mrf.mxu0
  %v585 = vadd.f32 %v149, %v584
  %v586 = vpop.f32.mrf.mxu0
  %v587 = vadd.f32 %v149, %v586
  %588 = vmatmul.bf16.gmra.mxu0 %v370
  %v589 = vpop.f32.mrf.mxu0
  %v590 = vadd.f32 %v149, %v589
  %v591 = vpop.f32.mrf.mxu0
  %v592 = vadd.f32 %v149, %v591
  %593 = vmatmul.bf16.gmra.mxu0 %v371
  %v594 = vpop.f32.mrf.mxu0
  %v595 = vadd.f32 %v149, %v594
  %v596 = vpop.f32.mrf.mxu0
  %v597 = vadd.f32 %v149, %v596
  %598 = vmatmul.bf16.gmra.mxu0 %v372
  %v599 = vpop.f32.mrf.mxu0
  %v600 = vadd.f32 %v149, %v599
  %v601 = vpop.f32.mrf.mxu0
  %v602 = vadd.f32 %v149, %v601
  %603 = vmatmul.bf16.gmra.mxu0 %v373
  %v604 = vpop.f32.mrf.mxu0
  %v605 = vadd.f32 %v149, %v604
  %v606 = vpop.f32.mrf.mxu0
  %v607 = vadd.f32 %v149, %v606
  %608 = vmatmul.bf16.gmra.mxu0 %v374
  %v609 = vpop.f32.mrf.mxu0
  %v610 = vadd.f32 %v149, %v609
  %v611 = vpop.f32.mrf.mxu0
  %v612 = vadd.f32 %v149, %v611
  %613 = vmatmul.bf16.gmra.mxu0 %v375
  %v614 = vpop.f32.mrf.mxu0
  %v615 = vadd.f32 %v149, %v614
  %v616 = vpop.f32.mrf.mxu0
  %v617 = vadd.f32 %v149, %v616
  %618 = vmatmul.bf16.gmra.mxu0 %v376
  %v619 = vpop.f32.mrf.mxu0
  %v620 = vadd.f32 %v149, %v619
  %v621 = vpop.f32.mrf.mxu0
  %v622 = vadd.f32 %v149, %v621
  %623 = vmatmul.bf16.gmra.mxu0 %v377
  %v624 = vpop.f32.mrf.mxu0
  %v625 = vadd.f32 %v149, %v624
  %v626 = vpop.f32.mrf.mxu0
  %v627 = vadd.f32 %v149, %v626
  %628 = vmatmul.bf16.gmra.mxu0 %v378
  %v629 = vpop.f32.mrf.mxu0
  %v630 = vadd.f32 %v149, %v629
  %v631 = vpop.f32.mrf.mxu0
  %v632 = vadd.f32 %v149, %v631
  %633 = vmatmul.bf16.gmra.mxu0 %v379
  %v634 = vpop.f32.mrf.mxu0
  %v635 = vadd.f32 %v149, %v634
  %v636 = vpop.f32.mrf.mxu0
  %v637 = vadd.f32 %v149, %v636
  %638 = vmatmul.bf16.gmra.mxu0 %v380
  %v639 = vpop.f32.mrf.mxu0
  %v640 = vadd.f32 %v149, %v639
  %v641 = vpop.f32.mrf.mxu0
  %v642 = vadd.f32 %v149, %v641
  %643 = vmatmul.bf16.gmra.mxu0 %v381
  %v644 = vpop.f32.mrf.mxu0
  %v645 = vadd.f32 %v149, %v644
  %v646 = vpop.f32.mrf.mxu0
  %v647 = vadd.f32 %v149, %v646
  %648 = vmatmul.bf16.gmra.mxu0 %v382
  %v649 = vpop.f32.mrf.mxu0
  %v650 = vadd.f32 %v149, %v649
  %v651 = vpop.f32.mrf.mxu0
  %v652 = vadd.f32 %v149, %v651
  %653 = vmatmul.bf16.gmra.mxu0 %v383
  %v654 = vpop.f32.mrf.mxu0
  %v655 = vadd.f32 %v149, %v654
  %v656 = vpop.f32.mrf.mxu0
  %v657 = vadd.f32 %v149, %v656
  %658 = vmatmul.bf16.gmra.mxu0 %v384
  %v659 = vpop.f32.mrf.mxu0
  %v660 = vadd.f32 %v149, %v659
  %v661 = vpop.f32.mrf.mxu0
  %v662 = vadd.f32 %v149, %v661
  %663 = vmatmul.bf16.gmra.mxu0 %v385
  %v664 = vpop.f32.mrf.mxu0
  %v665 = vadd.f32 %v149, %v664
  %v666 = vpop.f32.mrf.mxu0
  %v667 = vadd.f32 %v149, %v666
  %668 = vmatmul.bf16.gmra.mxu0 %v386
  %v669 = vpop.f32.mrf.mxu0
  %v670 = vadd.f32 %v149, %v669
  %v671 = vpop.f32.mrf.mxu0
  %v672 = vadd.f32 %v149, %v671
  %673 = vmatmul.bf16.gmra.mxu0 %v387
  %v674 = vpop.f32.mrf.mxu0
  %v675 = vadd.f32 %v149, %v674
  %v676 = vpop.f32.mrf.mxu0
  %v677 = vadd.f32 %v149, %v676
  %678 = vmatmul.bf16.gmra.mxu0 %v388
  %v679 = vpop.f32.mrf.mxu0
  %v680 = vadd.f32 %v149, %v679
  %v681 = vpop.f32.mrf.mxu0
  %v682 = vadd.f32 %v149, %v681
  %683 = vmatmul.bf16.gmra.mxu0 %v389
  %v684 = vpop.f32.mrf.mxu0
  %v685 = vadd.f32 %v149, %v684
  %v686 = vpop.f32.mrf.mxu0
  %v687 = vadd.f32 %v149, %v686
  %688 = vmatmul.bf16.gmra.mxu0 %v390
  %v689 = vpop.f32.mrf.mxu0
  %v690 = vadd.f32 %v149, %v689
  %v691 = vpop.f32.mrf.mxu0
  %v692 = vadd.f32 %v149, %v691
  %693 = vmatmul.bf16.gmra.mxu0 %v391
  %v694 = vpop.f32.mrf.mxu0
  %v695 = vadd.f32 %v149, %v694
  %v696 = vpop.f32.mrf.mxu0
  %v697 = vadd.f32 %v149, %v696
  %698 = vmatmul.bf16.gmra.mxu0 %v392
  %v699 = vpop.f32.mrf.mxu0
  %v700 = vadd.f32 %v149, %v699
  %v701 = vpop.f32.mrf.mxu0
  %v702 = vadd.f32 %v149, %v701
  %703 = vmatmul.bf16.gmra.mxu0 %v393
  %v704 = vpop.f32.mrf.mxu0
  %v705 = vadd.f32 %v149, %v704
  %v706 = vpop.f32.mrf.mxu0
  %v707 = vadd.f32 %v149, %v706
  %708 = vmatmul.bf16.gmra.mxu0 %v394
  %v709 = vpop.f32.mrf.mxu0
  %v710 = vadd.f32 %v149, %v709
  %v711 = vpop.f32.mrf.mxu0
  %v712 = vadd.f32 %v149, %v711
  %713 = vmatmul.bf16.gmra.mxu0 %v395
  %v714 = vpop.f32.mrf.mxu0
  %v715 = vadd.f32 %v149, %v714
  %v716 = vpop.f32.mrf.mxu0
  %v717 = vadd.f32 %v149, %v716
  %718 = vmatmul.bf16.gmra.mxu0 %v396
  %v719 = vpop.f32.mrf.mxu0
  %v720 = vadd.f32 %v149, %v719
  %v721 = vpop.f32.mrf.mxu0
  %v722 = vadd.f32 %v149, %v721
  %723 = vmatmul.bf16.gmra.mxu0 %v397
  %v724 = vpop.f32.mrf.mxu0
  %v725 = vadd.f32 %v149, %v724
  %v726 = vpop.f32.mrf.mxu0
  %v727 = vadd.f32 %v149, %v726
  %728 = vmatmul.bf16.gmra.mxu0 %v398
  %v729 = vpop.f32.mrf.mxu0
  %v730 = vadd.f32 %v149, %v729
  %v731 = vpop.f32.mrf.mxu0
  %v732 = vadd.f32 %v149, %v731
  %733 = vmatmul.bf16.gmra.mxu0 %v399
  %v734 = vpop.f32.mrf.mxu0
  %v735 = vadd.f32 %v149, %v734
  %v736 = vpop.f32.mrf.mxu0
  %v737 = vadd.f32 %v149, %v736
  %738 = vmatmul.bf16.gmra.mxu0 %v400
  %v739 = vpop.f32.mrf.mxu0
  %v740 = vadd.f32 %v149, %v739
  %v741 = vpop.f32.mrf.mxu0
  %v742 = vadd.f32 %v149, %v741
  %743 = vmatmul.bf16.gmra.mxu0 %v401
  %v744 = vpop.f32.mrf.mxu0
  %v745 = vadd.f32 %v149, %v744
  %v746 = vpop.f32.mrf.mxu0
  %v747 = vadd.f32 %v149, %v746
  %748 = vmatmul.bf16.gmra.mxu0 %v402
  %v749 = vpop.f32.mrf.mxu0
  %v750 = vadd.f32 %v149, %v749
  %v751 = vpop.f32.mrf.mxu0
  %v752 = vadd.f32 %v149, %v751
  %753 = vmatmul.bf16.gmra.mxu0 %v403
  %v754 = vpop.f32.mrf.mxu0
  %v755 = vadd.f32 %v149, %v754
  %v756 = vpop.f32.mrf.mxu0
  %v757 = vadd.f32 %v149, %v756
  %758 = vmatmul.bf16.gmra.mxu0 %v404
  %v759 = vpop.f32.mrf.mxu0
  %v760 = vadd.f32 %v149, %v759
  %v761 = vpop.f32.mrf.mxu0
  %v762 = vadd.f32 %v149, %v761
  %763 = vmatmul.bf16.gmra.mxu0 %v405
  %v764 = vpop.f32.mrf.mxu0
  %v765 = vadd.f32 %v149, %v764
  %v766 = vpop.f32.mrf.mxu0
  %v767 = vadd.f32 %v149, %v766
  %768 = vdwg.mxu0
  %v769 = vld [vmem:[%s1] sm:$0xff]
  %v770 = vld [vmem:[%s1 + $0x8] sm:$0xff]
  %v771 = vld [vmem:[%s1 + $0x10] sm:$0xff]
  %v772 = vld [vmem:[%s1 + $0x18] sm:$0xff]
  %v773 = vld [vmem:[%s1 + $0x20] sm:$0xff]
  %v774 = vld [vmem:[%s1 + $0x28] sm:$0xff]
  %v775 = vld [vmem:[%s1 + $0x30] sm:$0xff]
  %v776 = vld [vmem:[%s1 + $0x38] sm:$0xff]
  %v777 = vld [vmem:[%s1 + $0x40] sm:$0xff]
  %v778 = vld [vmem:[%s1 + $0x48] sm:$0xff]
  %v779 = vld [vmem:[%s1 + $0x50] sm:$0xff]
  %v780 = vld [vmem:[%s1 + $0x58] sm:$0xff]
  %v781 = vld [vmem:[%s1 + $0x60] sm:$0xff]
  %v782 = vld [vmem:[%s1 + $0x68] sm:$0xff]
  %v783 = vld [vmem:[%s1 + $0x70] sm:$0xff]
  %v784 = vld [vmem:[%s1 + $0x78] sm:$0xff]
  %v785 = vld [vmem:[%s1 + $0x80] sm:$0xff]
  %v786 = vld [vmem:[%s1 + $0x88] sm:$0xff]
  %v787 = vld [vmem:[%s1 + $0x90] sm:$0xff]
  %v788 = vld [vmem:[%s1 + $0x98] sm:$0xff]
  %v789 = vld [vmem:[%s1 + $0xa0] sm:$0xff]
  %v790 = vld [vmem:[%s1 + $0xa8] sm:$0xff]
  %v791 = vld [vmem:[%s1 + $0xb0] sm:$0xff]
  %v792 = vld [vmem:[%s1 + $0xb8] sm:$0xff]
  %v793 = vld [vmem:[%s1 + $0xc0] sm:$0xff]
  %v794 = vld [vmem:[%s1 + $0xc8] sm:$0xff]
  %v795 = vld [vmem:[%s1 + $0xd0] sm:$0xff]
  %v796 = vld [vmem:[%s1 + $0xd8] sm:$0xff]
  %v797 = vld [vmem:[%s1 + $0xe0] sm:$0xff]
  %v798 = vld [vmem:[%s1 + $0xe8] sm:$0xff]
  %v799 = vld [vmem:[%s1 + $0xf0] sm:$0xff]
  %v800 = vld [vmem:[%s1 + $0xf8] sm:$0xff]
  %v801 = vld [vmem:[%s1 + $0x100] sm:$0xff]
  %v802 = vld [vmem:[%s1 + $0x108] sm:$0xff]
  %v803 = vld [vmem:[%s1 + $0x110] sm:$0xff]
  %v804 = vld [vmem:[%s1 + $0x118] sm:$0xff]
  %v805 = vld [vmem:[%s1 + $0x120] sm:$0xff]
  %v806 = vld [vmem:[%s1 + $0x128] sm:$0xff]
  %v807 = vld [vmem:[%s1 + $0x130] sm:$0xff]
  %v808 = vld [vmem:[%s1 + $0x138] sm:$0xff]
  %v809 = vld [vmem:[%s1 + $0x140] sm:$0xff]
  %v810 = vld [vmem:[%s1 + $0x148] sm:$0xff]
  %v811 = vld [vmem:[%s1 + $0x150] sm:$0xff]
  %v812 = vld [vmem:[%s1 + $0x158] sm:$0xff]
  %v813 = vld [vmem:[%s1 + $0x160] sm:$0xff]
  %v814 = vld [vmem:[%s1 + $0x168] sm:$0xff]
  %v815 = vld [vmem:[%s1 + $0x170] sm:$0xff]
  %v816 = vld [vmem:[%s1 + $0x178] sm:$0xff]
  %v817 = vld [vmem:[%s1 + $0x180] sm:$0xff]
  %v818 = vld [vmem:[%s1 + $0x188] sm:$0xff]
  %v819 = vld [vmem:[%s1 + $0x190] sm:$0xff]
  %v820 = vld [vmem:[%s1 + $0x198] sm:$0xff]
  %v821 = vld [vmem:[%s1 + $0x1a0] sm:$0xff]
  %v822 = vld [vmem:[%s1 + $0x1a8] sm:$0xff]
  %v823 = vld [vmem:[%s1 + $0x1b0] sm:$0xff]
  %v824 = vld [vmem:[%s1 + $0x1b8] sm:$0xff]
  %v825 = vld [vmem:[%s1 + $0x1c0] sm:$0xff]
  %v826 = vld [vmem:[%s1 + $0x1c8] sm:$0xff]
  %v827 = vld [vmem:[%s1 + $0x1d0] sm:$0xff]
  %v828 = vld [vmem:[%s1 + $0x1d8] sm:$0xff]
  %v829 = vld [vmem:[%s1 + $0x1e0] sm:$0xff]
  %v830 = vld [vmem:[%s1 + $0x1e8] sm:$0xff]
  %v831 = vld [vmem:[%s1 + $0x1f0] sm:$0xff]
  %v832 = vld [vmem:[%s1 + $0x1f8] sm:$0xff]
  %v833 = vld [vmem:[%s1 + $0x200] sm:$0xff]
  %v834 = vld [vmem:[%s1 + $0x208] sm:$0xff]
  %v835 = vld [vmem:[%s1 + $0x210] sm:$0xff]
  %v836 = vld [vmem:[%s1 + $0x218] sm:$0xff]
  %v837 = vld [vmem:[%s1 + $0x220] sm:$0xff]
  %v838 = vld [vmem:[%s1 + $0x228] sm:$0xff]
  %v839 = vld [vmem:[%s1 + $0x230] sm:$0xff]
  %v840 = vld [vmem:[%s1 + $0x238] sm:$0xff]
  %v841 = vld [vmem:[%s1 + $0x240] sm:$0xff]
  %v842 = vld [vmem:[%s1 + $0x248] sm:$0xff]
  %v843 = vld [vmem:[%s1 + $0x250] sm:$0xff]
  %v844 = vld [vmem:[%s1 + $0x258] sm:$0xff]
  %v845 = vld [vmem:[%s1 + $0x260] sm:$0xff]
  %v846 = vld [vmem:[%s1 + $0x268] sm:$0xff]
  %v847 = vld [vmem:[%s1 + $0x270] sm:$0xff]
  %v848 = vld [vmem:[%s1 + $0x278] sm:$0xff]
  %v849 = vld [vmem:[%s1 + $0x280] sm:$0xff]
  %v850 = vld [vmem:[%s1 + $0x288] sm:$0xff]
  %v851 = vld [vmem:[%s1 + $0x290] sm:$0xff]
  %v852 = vld [vmem:[%s1 + $0x298] sm:$0xff]
  %v853 = vld [vmem:[%s1 + $0x2a0] sm:$0xff]
  %v854 = vld [vmem:[%s1 + $0x2a8] sm:$0xff]
  %v855 = vld [vmem:[%s1 + $0x2b0] sm:$0xff]
  %v856 = vld [vmem:[%s1 + $0x2b8] sm:$0xff]
  %v857 = vld [vmem:[%s1 + $0x2c0] sm:$0xff]
  %v858 = vld [vmem:[%s1 + $0x2c8] sm:$0xff]
  %v859 = vld [vmem:[%s1 + $0x2d0] sm:$0xff]
  %v860 = vld [vmem:[%s1 + $0x2d8] sm:$0xff]
  %v861 = vld [vmem:[%s1 + $0x2e0] sm:$0xff]
  %v862 = vld [vmem:[%s1 + $0x2e8] sm:$0xff]
  %v863 = vld [vmem:[%s1 + $0x2f0] sm:$0xff]
  %v864 = vld [vmem:[%s1 + $0x2f8] sm:$0xff]
  %v865 = vld [vmem:[%s1 + $0x300] sm:$0xff]
  %v866 = vld [vmem:[%s1 + $0x308] sm:$0xff]
  %v867 = vld [vmem:[%s1 + $0x310] sm:$0xff]
  %v868 = vld [vmem:[%s1 + $0x318] sm:$0xff]
  %v869 = vld [vmem:[%s1 + $0x320] sm:$0xff]
  %v870 = vld [vmem:[%s1 + $0x328] sm:$0xff]
  %872 = vset.pattern.permute.xlu0 0
  %873 = vperm.xlu0 %872, %v769
  %v874 = vpop.permute.xlu0 %873
  %877 = vset.pattern.permute.xlu0 0
  %878 = vperm.xlu0 %877, %v770
  %v879 = vpop.permute.xlu0 %878
  %882 = vset.pattern.permute.xlu0 0
  %883 = vperm.xlu0 %882, %v771
  %v884 = vpop.permute.xlu0 %883
  %887 = vset.pattern.permute.xlu0 0
  %888 = vperm.xlu0 %887, %v772
  %v889 = vpop.permute.xlu0 %888
  %892 = vset.pattern.permute.xlu0 0
  %893 = vperm.xlu0 %892, %v773
  %v894 = vpop.permute.xlu0 %893
  %897 = vset.pattern.permute.xlu0 0
  %898 = vperm.xlu0 %897, %v774
  %v899 = vpop.permute.xlu0 %898
  %902 = vset.pattern.permute.xlu0 0
  %903 = vperm.xlu0 %902, %v775
  %v904 = vpop.permute.xlu0 %903
  %907 = vset.pattern.permute.xlu0 0
  %908 = vperm.xlu0 %907, %v776
  %v909 = vpop.permute.xlu0 %908
  %912 = vset.pattern.permute.xlu0 0
  %913 = vperm.xlu0 %912, %v777
  %v914 = vpop.permute.xlu0 %913
  %917 = vset.pattern.permute.xlu0 0
  %918 = vperm.xlu0 %917, %v778
  %v919 = vpop.permute.xlu0 %918
  %922 = vset.pattern.permute.xlu0 0
  %923 = vperm.xlu0 %922, %v779
  %v924 = vpop.permute.xlu0 %923
  %927 = vset.pattern.permute.xlu0 0
  %928 = vperm.xlu0 %927, %v780
  %v929 = vpop.permute.xlu0 %928
  %932 = vset.pattern.permute.xlu0 0
  %933 = vperm.xlu0 %932, %v781
  %v934 = vpop.permute.xlu0 %933
  %937 = vset.pattern.permute.xlu0 0
  %938 = vperm.xlu0 %937, %v782
  %v939 = vpop.permute.xlu0 %938
  %942 = vset.pattern.permute.xlu0 0
  %943 = vperm.xlu0 %942, %v783
  %v944 = vpop.permute.xlu0 %943
  %947 = vset.pattern.permute.xlu0 0
  %948 = vperm.xlu0 %947, %v784
  %v949 = vpop.permute.xlu0 %948
  %952 = vset.pattern.permute.xlu0 0
  %953 = vperm.xlu0 %952, %v785
  %v954 = vpop.permute.xlu0 %953
  %957 = vset.pattern.permute.xlu0 0
  %958 = vperm.xlu0 %957, %v786
  %v959 = vpop.permute.xlu0 %958
  %962 = vset.pattern.permute.xlu0 0
  %963 = vperm.xlu0 %962, %v787
  %v964 = vpop.permute.xlu0 %963
  %967 = vset.pattern.permute.xlu0 0
  %968 = vperm.xlu0 %967, %v788
  %v969 = vpop.permute.xlu0 %968
  %972 = vset.pattern.permute.xlu0 0
  %973 = vperm.xlu0 %972, %v789
  %v974 = vpop.permute.xlu0 %973
  %977 = vset.pattern.permute.xlu0 0
  %978 = vperm.xlu0 %977, %v790
  %v979 = vpop.permute.xlu0 %978
  %982 = vset.pattern.permute.xlu0 0
  %983 = vperm.xlu0 %982, %v791
  %v984 = vpop.permute.xlu0 %983
  %987 = vset.pattern.permute.xlu0 0
  %988 = vperm.xlu0 %987, %v792
  %v989 = vpop.permute.xlu0 %988
  %992 = vset.pattern.permute.xlu0 0
  %993 = vperm.xlu0 %992, %v793
  %v994 = vpop.permute.xlu0 %993
  %997 = vset.pattern.permute.xlu0 0
  %998 = vperm.xlu0 %997, %v794
  %v999 = vpop.permute.xlu0 %998
  %1002 = vset.pattern.permute.xlu0 0
  %1003 = vperm.xlu0 %1002, %v795
  %v1004 = vpop.permute.xlu0 %1003
  %1007 = vset.pattern.permute.xlu0 0
  %1008 = vperm.xlu0 %1007, %v796
  %v1009 = vpop.permute.xlu0 %1008
  %1012 = vset.pattern.permute.xlu0 0
  %1013 = vperm.xlu0 %1012, %v797
  %v1014 = vpop.permute.xlu0 %1013
  %1017 = vset.pattern.permute.xlu0 0
  %1018 = vperm.xlu0 %1017, %v798
  %v1019 = vpop.permute.xlu0 %1018
  %1022 = vset.pattern.permute.xlu0 0
  %1023 = vperm.xlu0 %1022, %v799
  %v1024 = vpop.permute.xlu0 %1023
  %1027 = vset.pattern.permute.xlu0 0
  %1028 = vperm.xlu0 %1027, %v800
  %v1029 = vpop.permute.xlu0 %1028
  %1032 = vset.pattern.permute.xlu0 0
  %1033 = vperm.xlu0 %1032, %v801
  %v1034 = vpop.permute.xlu0 %1033
  %1037 = vset.pattern.permute.xlu0 0
  %1038 = vperm.xlu0 %1037, %v802
  %v1039 = vpop.permute.xlu0 %1038
  %1042 = vset.pattern.permute.xlu0 0
  %1043 = vperm.xlu0 %1042, %v803
  %v1044 = vpop.permute.xlu0 %1043
  %1047 = vset.pattern.permute.xlu0 0
  %1048 = vperm.xlu0 %1047, %v804
  %v1049 = vpop.permute.xlu0 %1048
  %1052 = vset.pattern.permute.xlu0 0
  %1053 = vperm.xlu0 %1052, %v805
  %v1054 = vpop.permute.xlu0 %1053
  %1057 = vset.pattern.permute.xlu0 0
  %1058 = vperm.xlu0 %1057, %v806
  %v1059 = vpop.permute.xlu0 %1058
  %1062 = vset.pattern.permute.xlu0 0
  %1063 = vperm.xlu0 %1062, %v807
  %v1064 = vpop.permute.xlu0 %1063
  %1067 = vset.pattern.permute.xlu0 0
  %1068 = vperm.xlu0 %1067, %v808
  %v1069 = vpop.permute.xlu0 %1068
  %1072 = vset.pattern.permute.xlu0 0
  %1073 = vperm.xlu0 %1072, %v809
  %v1074 = vpop.permute.xlu0 %1073
  %1077 = vset.pattern.permute.xlu0 0
  %1078 = vperm.xlu0 %1077, %v810
  %v1079 = vpop.permute.xlu0 %1078
  %1082 = vset.pattern.permute.xlu0 0
  %1083 = vperm.xlu0 %1082, %v811
  %v1084 = vpop.permute.xlu0 %1083
  %1087 = vset.pattern.permute.xlu0 0
  %1088 = vperm.xlu0 %1087, %v812
  %v1089 = vpop.permute.xlu0 %1088
  %1092 = vset.pattern.permute.xlu0 0
  %1093 = vperm.xlu0 %1092, %v813
  %v1094 = vpop.permute.xlu0 %1093
  %1097 = vset.pattern.permute.xlu0 0
  %1098 = vperm.xlu0 %1097, %v814
  %v1099 = vpop.permute.xlu0 %1098
  %1102 = vset.pattern.permute.xlu0 0
  %1103 = vperm.xlu0 %1102, %v815
  %v1104 = vpop.permute.xlu0 %1103
  %1107 = vset.pattern.permute.xlu0 0
  %1108 = vperm.xlu0 %1107, %v816
  %v1109 = vpop.permute.xlu0 %1108
  %1112 = vset.pattern.permute.xlu0 0
  %1113 = vperm.xlu0 %1112, %v817
  %v1114 = vpop.permute.xlu0 %1113
  %1117 = vset.pattern.permute.xlu0 0
  %1118 = vperm.xlu0 %1117, %v818
  %v1119 = vpop.permute.xlu0 %1118
  %1122 = vset.pattern.permute.xlu0 0
  %1123 = vperm.xlu0 %1122, %v819
  %v1124 = vpop.permute.xlu0 %1123
  %1127 = vset.pattern.permute.xlu0 0
  %1128 = vperm.xlu0 %1127, %v820
  %v1129 = vpop.permute.xlu0 %1128
  %1132 = vset.pattern.permute.xlu0 0
  %1133 = vperm.xlu0 %1132, %v821
  %v1134 = vpop.permute.xlu0 %1133
  %1137 = vset.pattern.permute.xlu0 0
  %1138 = vperm.xlu0 %1137, %v822
  %v1139 = vpop.permute.xlu0 %1138
  %1142 = vset.pattern.permute.xlu0 0
  %1143 = vperm.xlu0 %1142, %v823
  %v1144 = vpop.permute.xlu0 %1143
  %1147 = vset.pattern.permute.xlu0 0
  %1148 = vperm.xlu0 %1147, %v824
  %v1149 = vpop.permute.xlu0 %1148
  %1152 = vset.pattern.permute.xlu0 0
  %1153 = vperm.xlu0 %1152, %v825
  %v1154 = vpop.permute.xlu0 %1153
  %1157 = vset.pattern.permute.xlu0 0
  %1158 = vperm.xlu0 %1157, %v826
  %v1159 = vpop.permute.xlu0 %1158
  %1162 = vset.pattern.permute.xlu0 0
  %1163 = vperm.xlu0 %1162, %v827
  %v1164 = vpop.permute.xlu0 %1163
  %1167 = vset.pattern.permute.xlu0 0
  %1168 = vperm.xlu0 %1167, %v828
  %v1169 = vpop.permute.xlu0 %1168
  %1172 = vset.pattern.permute.xlu0 0
  %1173 = vperm.xlu0 %1172, %v829
  %v1174 = vpop.permute.xlu0 %1173
  %1177 = vset.pattern.permute.xlu0 0
  %1178 = vperm.xlu0 %1177, %v830
  %v1179 = vpop.permute.xlu0 %1178
  %1182 = vset.pattern.permute.xlu0 0
  %1183 = vperm.xlu0 %1182, %v831
  %v1184 = vpop.permute.xlu0 %1183
  %1187 = vset.pattern.permute.xlu0 0
  %1188 = vperm.xlu0 %1187, %v832
  %v1189 = vpop.permute.xlu0 %1188
  %1192 = vset.pattern.permute.xlu0 0
  %1193 = vperm.xlu0 %1192, %v833
  %v1194 = vpop.permute.xlu0 %1193
  %1197 = vset.pattern.permute.xlu0 0
  %1198 = vperm.xlu0 %1197, %v834
  %v1199 = vpop.permute.xlu0 %1198
  %1202 = vset.pattern.permute.xlu0 0
  %1203 = vperm.xlu0 %1202, %v835
  %v1204 = vpop.permute.xlu0 %1203
  %1207 = vset.pattern.permute.xlu0 0
  %1208 = vperm.xlu0 %1207, %v836
  %v1209 = vpop.permute.xlu0 %1208
  %1212 = vset.pattern.permute.xlu0 0
  %1213 = vperm.xlu0 %1212, %v837
  %v1214 = vpop.permute.xlu0 %1213
  %1217 = vset.pattern.permute.xlu0 0
  %1218 = vperm.xlu0 %1217, %v838
  %v1219 = vpop.permute.xlu0 %1218
  %1222 = vset.pattern.permute.xlu0 0
  %1223 = vperm.xlu0 %1222, %v839
  %v1224 = vpop.permute.xlu0 %1223
  %1227 = vset.pattern.permute.xlu0 0
  %1228 = vperm.xlu0 %1227, %v840
  %v1229 = vpop.permute.xlu0 %1228
  %1232 = vset.pattern.permute.xlu0 0
  %1233 = vperm.xlu0 %1232, %v841
  %v1234 = vpop.permute.xlu0 %1233
  %1237 = vset.pattern.permute.xlu0 0
  %1238 = vperm.xlu0 %1237, %v842
  %v1239 = vpop.permute.xlu0 %1238
  %1242 = vset.pattern.permute.xlu0 0
  %1243 = vperm.xlu0 %1242, %v843
  %v1244 = vpop.permute.xlu0 %1243
  %1247 = vset.pattern.permute.xlu0 0
  %1248 = vperm.xlu0 %1247, %v844
  %v1249 = vpop.permute.xlu0 %1248
  %1252 = vset.pattern.permute.xlu0 0
  %1253 = vperm.xlu0 %1252, %v845
  %v1254 = vpop.permute.xlu0 %1253
  %1257 = vset.pattern.permute.xlu0 0
  %1258 = vperm.xlu0 %1257, %v846
  %v1259 = vpop.permute.xlu0 %1258
  %1262 = vset.pattern.permute.xlu0 0
  %1263 = vperm.xlu0 %1262, %v847
  %v1264 = vpop.permute.xlu0 %1263
  %1267 = vset.pattern.permute.xlu0 0
  %1268 = vperm.xlu0 %1267, %v848
  %v1269 = vpop.permute.xlu0 %1268
  %1272 = vset.pattern.permute.xlu0 0
  %1273 = vperm.xlu0 %1272, %v849
  %v1274 = vpop.permute.xlu0 %1273
  %1277 = vset.pattern.permute.xlu0 0
  %1278 = vperm.xlu0 %1277, %v850
  %v1279 = vpop.permute.xlu0 %1278
  %1282 = vset.pattern.permute.xlu0 0
  %1283 = vperm.xlu0 %1282, %v851
  %v1284 = vpop.permute.xlu0 %1283
  %1287 = vset.pattern.permute.xlu0 0
  %1288 = vperm.xlu0 %1287, %v852
  %v1289 = vpop.permute.xlu0 %1288
  %1292 = vset.pattern.permute.xlu0 0
  %1293 = vperm.xlu0 %1292, %v853
  %v1294 = vpop.permute.xlu0 %1293
  %1297 = vset.pattern.permute.xlu0 0
  %1298 = vperm.xlu0 %1297, %v854
  %v1299 = vpop.permute.xlu0 %1298
  %1302 = vset.pattern.permute.xlu0 0
  %1303 = vperm.xlu0 %1302, %v855
  %v1304 = vpop.permute.xlu0 %1303
  %1307 = vset.pattern.permute.xlu0 0
  %1308 = vperm.xlu0 %1307, %v856
  %v1309 = vpop.permute.xlu0 %1308
  %1312 = vset.pattern.permute.xlu0 0
  %1313 = vperm.xlu0 %1312, %v857
  %v1314 = vpop.permute.xlu0 %1313
  %1317 = vset.pattern.permute.xlu0 0
  %1318 = vperm.xlu0 %1317, %v858
  %v1319 = vpop.permute.xlu0 %1318
  %1322 = vset.pattern.permute.xlu0 0
  %1323 = vperm.xlu0 %1322, %v859
  %v1324 = vpop.permute.xlu0 %1323
  %1327 = vset.pattern.permute.xlu0 0
  %1328 = vperm.xlu0 %1327, %v860
  %v1329 = vpop.permute.xlu0 %1328
  %1332 = vset.pattern.permute.xlu0 0
  %1333 = vperm.xlu0 %1332, %v861
  %v1334 = vpop.permute.xlu0 %1333
  %1337 = vset.pattern.permute.xlu0 0
  %1338 = vperm.xlu0 %1337, %v862
  %v1339 = vpop.permute.xlu0 %1338
  %1342 = vset.pattern.permute.xlu0 0
  %1343 = vperm.xlu0 %1342, %v863
  %v1344 = vpop.permute.xlu0 %1343
  %1347 = vset.pattern.permute.xlu0 0
  %1348 = vperm.xlu0 %1347, %v864
  %v1349 = vpop.permute.xlu0 %1348
  %1352 = vset.pattern.permute.xlu0 0
  %1353 = vperm.xlu0 %1352, %v865
  %v1354 = vpop.permute.xlu0 %1353
  %1357 = vset.pattern.permute.xlu0 0
  %1358 = vperm.xlu0 %1357, %v866
  %v1359 = vpop.permute.xlu0 %1358
  %1362 = vset.pattern.permute.xlu0 0
  %1363 = vperm.xlu0 %1362, %v867
  %v1364 = vpop.permute.xlu0 %1363
  %1367 = vset.pattern.permute.xlu0 0
  %1368 = vperm.xlu0 %1367, %v868
  %v1369 = vpop.permute.xlu0 %1368
  %1372 = vset.pattern.permute.xlu0 0
  %1373 = vperm.xlu0 %1372, %v869
  %v1374 = vpop.permute.xlu0 %1373
  %1377 = vset.pattern.permute.xlu0 0
  %1378 = vperm.xlu0 %1377, %v870
  %v1379 = vpop.permute.xlu0 %1378
  %v1381 = vmul.f32 %v515, %v874
  %v1382 = vmul.f32 %v517, %v879
  %v1383 = vmul.f32 %v520, %v884
  %v1384 = vmul.f32 %v522, %v889
  %v1385 = vmul.f32 %v525, %v894
  %v1386 = vmul.f32 %v527, %v899
  %v1387 = vmul.f32 %v530, %v904
  %v1388 = vmul.f32 %v532, %v909
  %v1389 = vmul.f32 %v535, %v914
  %v1390 = vmul.f32 %v537, %v919
  %v1391 = vmul.f32 %v540, %v924
  %v1392 = vmul.f32 %v542, %v929
  %v1393 = vmul.f32 %v545, %v934
  %v1394 = vmul.f32 %v547, %v939
  %v1395 = vmul.f32 %v550, %v944
  %v1396 = vmul.f32 %v552, %v949
  %v1397 = vmul.f32 %v555, %v954
  %v1398 = vmul.f32 %v557, %v959
  %v1399 = vmul.f32 %v560, %v964
  %v1400 = vmul.f32 %v562, %v969
  %v1401 = vmul.f32 %v565, %v974
  %v1402 = vmul.f32 %v567, %v979
  %v1403 = vmul.f32 %v570, %v984
  %v1404 = vmul.f32 %v572, %v989
  %v1405 = vmul.f32 %v575, %v994
  %v1406 = vmul.f32 %v577, %v999
  %v1407 = vmul.f32 %v580, %v1004
  %v1408 = vmul.f32 %v582, %v1009
  %v1409 = vmul.f32 %v585, %v1014
  %v1410 = vmul.f32 %v587, %v1019
  %v1411 = vmul.f32 %v590, %v1024
  %v1412 = vmul.f32 %v592, %v1029
  %v1413 = vmul.f32 %v595, %v1034
  %v1414 = vmul.f32 %v597, %v1039
  %v1415 = vmul.f32 %v600, %v1044
  %v1416 = vmul.f32 %v602, %v1049
  %v1417 = vmul.f32 %v605, %v1054
  %v1418 = vmul.f32 %v607, %v1059
  %v1419 = vmul.f32 %v610, %v1064
  %v1420 = vmul.f32 %v612, %v1069
  %v1421 = vmul.f32 %v615, %v1074
  %v1422 = vmul.f32 %v617, %v1079
  %v1423 = vmul.f32 %v620, %v1084
  %v1424 = vmul.f32 %v622, %v1089
  %v1425 = vmul.f32 %v625, %v1094
  %v1426 = vmul.f32 %v627, %v1099
  %v1427 = vmul.f32 %v630, %v1104
  %v1428 = vmul.f32 %v632, %v1109
  %v1429 = vmul.f32 %v635, %v1114
  %v1430 = vmul.f32 %v637, %v1119
  %v1431 = vmul.f32 %v640, %v1124
  %v1432 = vmul.f32 %v642, %v1129
  %v1433 = vmul.f32 %v645, %v1134
  %v1434 = vmul.f32 %v647, %v1139
  %v1435 = vmul.f32 %v650, %v1144
  %v1436 = vmul.f32 %v652, %v1149
  %v1437 = vmul.f32 %v655, %v1154
  %v1438 = vmul.f32 %v657, %v1159
  %v1439 = vmul.f32 %v660, %v1164
  %v1440 = vmul.f32 %v662, %v1169
  %v1441 = vmul.f32 %v665, %v1174
  %v1442 = vmul.f32 %v667, %v1179
  %v1443 = vmul.f32 %v670, %v1184
  %v1444 = vmul.f32 %v672, %v1189
  %v1445 = vmul.f32 %v675, %v1194
  %v1446 = vmul.f32 %v677, %v1199
  %v1447 = vmul.f32 %v680, %v1204
  %v1448 = vmul.f32 %v682, %v1209
  %v1449 = vmul.f32 %v685, %v1214
  %v1450 = vmul.f32 %v687, %v1219
  %v1451 = vmul.f32 %v690, %v1224
  %v1452 = vmul.f32 %v692, %v1229
  %v1453 = vmul.f32 %v695, %v1234
  %v1454 = vmul.f32 %v697, %v1239
  %v1455 = vmul.f32 %v700, %v1244
  %v1456 = vmul.f32 %v702, %v1249
  %v1457 = vmul.f32 %v705, %v1254
  %v1458 = vmul.f32 %v707, %v1259
  %v1459 = vmul.f32 %v710, %v1264
  %v1460 = vmul.f32 %v712, %v1269
  %v1461 = vmul.f32 %v715, %v1274
  %v1462 = vmul.f32 %v717, %v1279
  %v1463 = vmul.f32 %v720, %v1284
  %v1464 = vmul.f32 %v722, %v1289
  %v1465 = vmul.f32 %v725, %v1294
  %v1466 = vmul.f32 %v727, %v1299
  %v1467 = vmul.f32 %v730, %v1304
  %v1468 = vmul.f32 %v732, %v1309
  %v1469 = vmul.f32 %v735, %v1314
  %v1470 = vmul.f32 %v737, %v1319
  %v1471 = vmul.f32 %v740, %v1324
  %v1472 = vmul.f32 %v742, %v1329
  %v1473 = vmul.f32 %v745, %v1334
  %v1474 = vmul.f32 %v747, %v1339
  %v1475 = vmul.f32 %v750, %v1344
  %v1476 = vmul.f32 %v752, %v1349
  %v1477 = vmul.f32 %v755, %v1354
  %v1478 = vmul.f32 %v757, %v1359
  %v1479 = vmul.f32 %v760, %v1364
  %v1480 = vmul.f32 %v762, %v1369
  %v1481 = vmul.f32 %v765, %v1374
  %v1482 = vmul.f32 %v767, %v1379
  %1483 = vst [vmem:[#allocation2] sm:$0xff] %v1381
  %1484 = vst [vmem:[#allocation2 + $0x8] sm:$0xff] %v1382
  %1485 = vst [vmem:[#allocation2 + $0x10] sm:$0xff] %v1383
  %1486 = vst [vmem:[#allocation2 + $0x18] sm:$0xff] %v1384
  %1487 = vst [vmem:[#allocation2 + $0x20] sm:$0xff] %v1385
  %1488 = vst [vmem:[#allocation2 + $0x28] sm:$0xff] %v1386
  %1489 = vst [vmem:[#allocation2 + $0x30] sm:$0xff] %v1387
  %1490 = vst [vmem:[#allocation2 + $0x38] sm:$0xff] %v1388
  %1491 = vst [vmem:[#allocation2 + $0x40] sm:$0xff] %v1389
  %1492 = vst [vmem:[#allocation2 + $0x48] sm:$0xff] %v1390
  %1493 = vst [vmem:[#allocation2 + $0x50] sm:$0xff] %v1391
  %1494 = vst [vmem:[#allocation2 + $0x58] sm:$0xff] %v1392
  %1495 = vst [vmem:[#allocation2 + $0x60] sm:$0xff] %v1393
  %1496 = vst [vmem:[#allocation2 + $0x68] sm:$0xff] %v1394
  %1497 = vst [vmem:[#allocation2 + $0x70] sm:$0xff] %v1395
  %1498 = vst [vmem:[#allocation2 + $0x78] sm:$0xff] %v1396
  %1499 = vst [vmem:[#allocation2 + $0x80] sm:$0xff] %v1397
  %1500 = vst [vmem:[#allocation2 + $0x88] sm:$0xff] %v1398
  %1501 = vst [vmem:[#allocation2 + $0x90] sm:$0xff] %v1399
  %1502 = vst [vmem:[#allocation2 + $0x98] sm:$0xff] %v1400
  %1503 = vst [vmem:[#allocation2 + $0xa0] sm:$0xff] %v1401
  %1504 = vst [vmem:[#allocation2 + $0xa8] sm:$0xff] %v1402
  %1505 = vst [vmem:[#allocation2 + $0xb0] sm:$0xff] %v1403
  %1506 = vst [vmem:[#allocation2 + $0xb8] sm:$0xff] %v1404
  %1507 = vst [vmem:[#allocation2 + $0xc0] sm:$0xff] %v1405
  %1508 = vst [vmem:[#allocation2 + $0xc8] sm:$0xff] %v1406
  %1509 = vst [vmem:[#allocation2 + $0xd0] sm:$0xff] %v1407
  %1510 = vst [vmem:[#allocation2 + $0xd8] sm:$0xff] %v1408
  %1511 = vst [vmem:[#allocation2 + $0xe0] sm:$0xff] %v1409
  %1512 = vst [vmem:[#allocation2 + $0xe8] sm:$0xff] %v1410
  %1513 = vst [vmem:[#allocation2 + $0xf0] sm:$0xff] %v1411
  %1514 = vst [vmem:[#allocation2 + $0xf8] sm:$0xff] %v1412
  %1515 = vst [vmem:[#allocation2 + $0x100] sm:$0xff] %v1413
  %1516 = vst [vmem:[#allocation2 + $0x108] sm:$0xff] %v1414
  %1517 = vst [vmem:[#allocation2 + $0x110] sm:$0xff] %v1415
  %1518 = vst [vmem:[#allocation2 + $0x118] sm:$0xff] %v1416
  %1519 = vst [vmem:[#allocation2 + $0x120] sm:$0xff] %v1417
  %1520 = vst [vmem:[#allocation2 + $0x128] sm:$0xff] %v1418
  %1521 = vst [vmem:[#allocation2 + $0x130] sm:$0xff] %v1419
  %1522 = vst [vmem:[#allocation2 + $0x138] sm:$0xff] %v1420
  %1523 = vst [vmem:[#allocation2 + $0x140] sm:$0xff] %v1421
  %1524 = vst [vmem:[#allocation2 + $0x148] sm:$0xff] %v1422
  %1525 = vst [vmem:[#allocation2 + $0x150] sm:$0xff] %v1423
  %1526 = vst [vmem:[#allocation2 + $0x158] sm:$0xff] %v1424
  %1527 = vst [vmem:[#allocation2 + $0x160] sm:$0xff] %v1425
  %1528 = vst [vmem:[#allocation2 + $0x168] sm:$0xff] %v1426
  %1529 = vst [vmem:[#allocation2 + $0x170] sm:$0xff] %v1427
  %1530 = vst [vmem:[#allocation2 + $0x178] sm:$0xff] %v1428
  %1531 = vst [vmem:[#allocation2 + $0x180] sm:$0xff] %v1429
  %1532 = vst [vmem:[#allocation2 + $0x188] sm:$0xff] %v1430
  %1533 = vst [vmem:[#allocation2 + $0x190] sm:$0xff] %v1431
  %1534 = vst [vmem:[#allocation2 + $0x198] sm:$0xff] %v1432
  %1535 = vst [vmem:[#allocation2 + $0x1a0] sm:$0xff] %v1433
  %1536 = vst [vmem:[#allocation2 + $0x1a8] sm:$0xff] %v1434
  %1537 = vst [vmem:[#allocation2 + $0x1b0] sm:$0xff] %v1435
  %1538 = vst [vmem:[#allocation2 + $0x1b8] sm:$0xff] %v1436
  %1539 = vst [vmem:[#allocation2 + $0x1c0] sm:$0xff] %v1437
  %1540 = vst [vmem:[#allocation2 + $0x1c8] sm:$0xff] %v1438
  %1541 = vst [vmem:[#allocation2 + $0x1d0] sm:$0xff] %v1439
  %1542 = vst [vmem:[#allocation2 + $0x1d8] sm:$0xff] %v1440
  %1543 = vst [vmem:[#allocation2 + $0x1e0] sm:$0xff] %v1441
  %1544 = vst [vmem:[#allocation2 + $0x1e8] sm:$0xff] %v1442
  %1545 = vst [vmem:[#allocation2 + $0x1f0] sm:$0xff] %v1443
  %1546 = vst [vmem:[#allocation2 + $0x1f8] sm:$0xff] %v1444
  %1547 = vst [vmem:[#allocation2 + $0x200] sm:$0xff] %v1445
  %1548 = vst [vmem:[#allocation2 + $0x208] sm:$0xff] %v1446
  %1549 = vst [vmem:[#allocation2 + $0x210] sm:$0xff] %v1447
  %1550 = vst [vmem:[#allocation2 + $0x218] sm:$0xff] %v1448
  %1551 = vst [vmem:[#allocation2 + $0x220] sm:$0xff] %v1449
  %1552 = vst [vmem:[#allocation2 + $0x228] sm:$0xff] %v1450
  %1553 = vst [vmem:[#allocation2 + $0x230] sm:$0xff] %v1451
  %1554 = vst [vmem:[#allocation2 + $0x238] sm:$0xff] %v1452
  %1555 = vst [vmem:[#allocation2 + $0x240] sm:$0xff] %v1453
  %1556 = vst [vmem:[#allocation2 + $0x248] sm:$0xff] %v1454
  %1557 = vst [vmem:[#allocation2 + $0x250] sm:$0xff] %v1455
  %1558 = vst [vmem:[#allocation2 + $0x258] sm:$0xff] %v1456
  %1559 = vst [vmem:[#allocation2 + $0x260] sm:$0xff] %v1457
  %1560 = vst [vmem:[#allocation2 + $0x268] sm:$0xff] %v1458
  %1561 = vst [vmem:[#allocation2 + $0x270] sm:$0xff] %v1459
  %1562 = vst [vmem:[#allocation2 + $0x278] sm:$0xff] %v1460
  %1563 = vst [vmem:[#allocation2 + $0x280] sm:$0xff] %v1461
  %1564 = vst [vmem:[#allocation2 + $0x288] sm:$0xff] %v1462
  %1565 = vst [vmem:[#allocation2 + $0x290] sm:$0xff] %v1463
  %1566 = vst [vmem:[#allocation2 + $0x298] sm:$0xff] %v1464
  %1567 = vst [vmem:[#allocation2 + $0x2a0] sm:$0xff] %v1465
  %1568 = vst [vmem:[#allocation2 + $0x2a8] sm:$0xff] %v1466
  %1569 = vst [vmem:[#allocation2 + $0x2b0] sm:$0xff] %v1467
  %1570 = vst [vmem:[#allocation2 + $0x2b8] sm:$0xff] %v1468
  %1571 = vst [vmem:[#allocation2 + $0x2c0] sm:$0xff] %v1469
  %1572 = vst [vmem:[#allocation2 + $0x2c8] sm:$0xff] %v1470
  %1573 = vst [vmem:[#allocation2 + $0x2d0] sm:$0xff] %v1471
  %1574 = vst [vmem:[#allocation2 + $0x2d8] sm:$0xff] %v1472
  %1575 = vst [vmem:[#allocation2 + $0x2e0] sm:$0xff] %v1473
  %1576 = vst [vmem:[#allocation2 + $0x2e8] sm:$0xff] %v1474
  %1577 = vst [vmem:[#allocation2 + $0x2f0] sm:$0xff] %v1475
  %1578 = vst [vmem:[#allocation2 + $0x2f8] sm:$0xff] %v1476
  %1579 = vst [vmem:[#allocation2 + $0x300] sm:$0xff] %v1477
  %1580 = vst [vmem:[#allocation2 + $0x308] sm:$0xff] %v1478
  %1581 = vst [vmem:[#allocation2 + $0x310] sm:$0xff] %v1479
  %1582 = vst [vmem:[#allocation2 + $0x318] sm:$0xff] %v1480
  %1583 = vst [vmem:[#allocation2 + $0x320] sm:$0xff] %v1481
  %1584 = vst [vmem:[#allocation2 + $0x328] sm:$0xff] %v1482
  %v1585 = vld [vmem:[#allocation2] ss:$5 sm:$0xff]
  %s1586 = scalar_lea.vmem [#allocation2], 40
  %v1587 = vld [vmem:[%s1586] ss:$5 sm:$0xff]
  %s1588 = scalar_lea.vmem [#allocation2], 80
  %v1589 = vld [vmem:[%s1588] ss:$5 sm:$0xff]
  %s1590 = scalar_lea.vmem [#allocation2], 120
  %v1591 = vld [vmem:[%s1590] ss:$5 sm:$0xff]
  %s1592 = scalar_lea.vmem [#allocation2], 160
  %v1593 = vld [vmem:[%s1592] ss:$5 sm:$0xff]
  %s1594 = scalar_lea.vmem [#allocation2], 200
  %v1595 = vld [vmem:[%s1594] ss:$5 sm:$0xff]
  %s1596 = scalar_lea.vmem [#allocation2], 240
  %v1597 = vld [vmem:[%s1596] ss:$5 sm:$0xff]
  %s1598 = scalar_lea.vmem [#allocation2], 280
  %v1599 = vld [vmem:[%s1598] ss:$5 sm:$0xff]
  %s1600 = scalar_lea.vmem [#allocation2], 320
  %v1601 = vld [vmem:[%s1600] ss:$5 sm:$0xff]
  %s1602 = scalar_lea.vmem [#allocation2], 360
  %v1603 = vld [vmem:[%s1602] ss:$5 sm:$0xff]
  %s1604 = scalar_lea.vmem [#allocation2], 400
  %v1605 = vld [vmem:[%s1604] ss:$5 sm:$0xff]
  %s1606 = scalar_lea.vmem [#allocation2], 440
  %v1607 = vld [vmem:[%s1606] ss:$5 sm:$0xff]
  %s1608 = scalar_lea.vmem [#allocation2], 480
  %v1609 = vld [vmem:[%s1608] ss:$5 sm:$0xff]
  %s1610 = scalar_lea.vmem [#allocation2], 520
  %v1611 = vld [vmem:[%s1610] ss:$5 sm:$0xff]
  %s1612 = scalar_lea.vmem [#allocation2], 560
  %v1613 = vld [vmem:[%s1612] ss:$5 sm:$0xff]
  %s1614 = scalar_lea.vmem [#allocation2], 600
  %v1615 = vld [vmem:[%s1614] ss:$5 sm:$0xff]
  %s1616 = scalar_lea.vmem [#allocation2], 640
  %v1617 = vld [vmem:[%s1616] ss:$5 sm:$0xff]
  %s1618 = scalar_lea.vmem [#allocation2], 680
  %v1619 = vld [vmem:[%s1618] ss:$5 sm:$0xff]
  %s1620 = scalar_lea.vmem [#allocation2], 720
  %v1621 = vld [vmem:[%s1620] ss:$5 sm:$0xff]
  %s1622 = scalar_lea.vmem [#allocation2], 760
  %v1623 = vld [vmem:[%s1622] ss:$5 sm:$0xff]
  %v1624 = vpack.c.bf16 %v1585, %v1585
  %v1625 = vpack.c.bf16 %v1587, %v1587
  %v1626 = vpack.c.bf16 %v1589, %v1589
  %v1627 = vpack.c.bf16 %v1591, %v1591
  %v1628 = vpack.c.bf16 %v1593, %v1593
  %v1629 = vpack.c.bf16 %v1595, %v1595
  %v1630 = vpack.c.bf16 %v1597, %v1597
  %v1631 = vpack.c.bf16 %v1599, %v1599
  %v1632 = vpack.c.bf16 %v1601, %v1601
  %v1633 = vpack.c.bf16 %v1603, %v1603
  %v1634 = vpack.c.bf16 %v1605, %v1605
  %v1635 = vpack.c.bf16 %v1607, %v1607
  %v1636 = vpack.c.bf16 %v1609, %v1609
  %v1637 = vpack.c.bf16 %v1611, %v1611
  %v1638 = vpack.c.bf16 %v1613, %v1613
  %v1639 = vpack.c.bf16 %v1615, %v1615
  %v1640 = vpack.c.bf16 %v1617, %v1617
  %v1641 = vpack.c.bf16 %v1619, %v1619
  %v1642 = vpack.c.bf16 %v1621, %v1621
  %v1643 = vpack.c.bf16 %v1623, %v1623
  %1644 = vst [vmem:[#allocation3] sm:$0xf] %v1624
  %1645 = vst [vmem:[#allocation3 + $0x28] sm:$0xf] %v1625
  %1646 = vst [vmem:[#allocation3 + $0x50] sm:$0xf] %v1626
  %1647 = vst [vmem:[#allocation3 + $0x78] sm:$0xf] %v1627
  %1648 = vst [vmem:[#allocation3 + $0xa0] sm:$0xf] %v1628
  %1649 = vst [vmem:[#allocation3 + $0xc8] sm:$0xf] %v1629
  %1650 = vst [vmem:[#allocation3 + $0xf0] sm:$0xf] %v1630
  %1651 = vst [vmem:[#allocation3 + $0x118] sm:$0xf] %v1631
  %1652 = vst [vmem:[#allocation3 + $0x140] sm:$0xf] %v1632
  %1653 = vst [vmem:[#allocation3 + $0x168] sm:$0xf] %v1633
  %1654 = vst [vmem:[#allocation3 + $0x190] sm:$0xf] %v1634
  %1655 = vst [vmem:[#allocation3 + $0x1b8] sm:$0xf] %v1635
  %1656 = vst [vmem:[#allocation3 + $0x1e0] sm:$0xf] %v1636
  %1657 = vst [vmem:[#allocation3 + $0x208] sm:$0xf] %v1637
  %1658 = vst [vmem:[#allocation3 + $0x230] sm:$0xf] %v1638
  %1659 = vst [vmem:[#allocation3 + $0x258] sm:$0xf] %v1639
  %1660 = vst [vmem:[#allocation3 + $0x280] sm:$0xf] %v1640
  %1661 = vst [vmem:[#allocation3 + $0x2a8] sm:$0xf] %v1641
  %1662 = vst [vmem:[#allocation3 + $0x2d0] sm:$0xf] %v1642
  %1663 = vst [vmem:[#allocation3 + $0x2f8] sm:$0xf] %v1643
  %s1664 = scalar_lea.vmem [#allocation2], 1
  %v1665 = vld [vmem:[%s1664] ss:$5 sm:$0xff]
  %s1666 = scalar_lea.vmem [#allocation2], 41
  %v1667 = vld [vmem:[%s1666] ss:$5 sm:$0xff]
  %s1668 = scalar_lea.vmem [#allocation2], 81
  %v1669 = vld [vmem:[%s1668] ss:$5 sm:$0xff]
  %s1670 = scalar_lea.vmem [#allocation2], 121
  %v1671 = vld [vmem:[%s1670] ss:$5 sm:$0xff]
  %s1672 = scalar_lea.vmem [#allocation2], 161
  %v1673 = vld [vmem:[%s1672] ss:$5 sm:$0xff]
  %s1674 = scalar_lea.vmem [#allocation2], 201
  %v1675 = vld [vmem:[%s1674] ss:$5 sm:$0xff]
  %s1676 = scalar_lea.vmem [#allocation2], 241
  %v1677 = vld [vmem:[%s1676] ss:$5 sm:$0xff]
  %s1678 = scalar_lea.vmem [#allocation2], 281
  %v1679 = vld [vmem:[%s1678] ss:$5 sm:$0xff]
  %s1680 = scalar_lea.vmem [#allocation2], 321
  %v1681 = vld [vmem:[%s1680] ss:$5 sm:$0xff]
  %s1682 = scalar_lea.vmem [#allocation2], 361
  %v1683 = vld [vmem:[%s1682] ss:$5 sm:$0xff]
  %s1684 = scalar_lea.vmem [#allocation2], 401
  %v1685 = vld [vmem:[%s1684] ss:$5 sm:$0xff]
  %s1686 = scalar_lea.vmem [#allocation2], 441
  %v1687 = vld [vmem:[%s1686] ss:$5 sm:$0xff]
  %s1688 = scalar_lea.vmem [#allocation2], 481
  %v1689 = vld [vmem:[%s1688] ss:$5 sm:$0xff]
  %s1690 = scalar_lea.vmem [#allocation2], 521
  %v1691 = vld [vmem:[%s1690] ss:$5 sm:$0xff]
  %s1692 = scalar_lea.vmem [#allocation2], 561
  %v1693 = vld [vmem:[%s1692] ss:$5 sm:$0xff]
  %s1694 = scalar_lea.vmem [#allocation2], 601
  %v1695 = vld [vmem:[%s1694] ss:$5 sm:$0xff]
  %s1696 = scalar_lea.vmem [#allocation2], 641
  %v1697 = vld [vmem:[%s1696] ss:$5 sm:$0xff]
  %s1698 = scalar_lea.vmem [#allocation2], 681
  %v1699 = vld [vmem:[%s1698] ss:$5 sm:$0xff]
  %s1700 = scalar_lea.vmem [#allocation2], 721
  %v1701 = vld [vmem:[%s1700] ss:$5 sm:$0xff]
  %s1702 = scalar_lea.vmem [#allocation2], 761
  %v1703 = vld [vmem:[%s1702] ss:$5 sm:$0xff]
  %v1704 = vpack.c.bf16 %v1665, %v1665
  %v1705 = vpack.c.bf16 %v1667, %v1667
  %v1706 = vpack.c.bf16 %v1669, %v1669
  %v1707 = vpack.c.bf16 %v1671, %v1671
  %v1708 = vpack.c.bf16 %v1673, %v1673
  %v1709 = vpack.c.bf16 %v1675, %v1675
  %v1710 = vpack.c.bf16 %v1677, %v1677
  %v1711 = vpack.c.bf16 %v1679, %v1679
  %v1712 = vpack.c.bf16 %v1681, %v1681
  %v1713 = vpack.c.bf16 %v1683, %v1683
  %v1714 = vpack.c.bf16 %v1685, %v1685
  %v1715 = vpack.c.bf16 %v1687, %v1687
  %v1716 = vpack.c.bf16 %v1689, %v1689
  %v1717 = vpack.c.bf16 %v1691, %v1691
  %v1718 = vpack.c.bf16 %v1693, %v1693
  %v1719 = vpack.c.bf16 %v1695, %v1695
  %v1720 = vpack.c.bf16 %v1697, %v1697
  %v1721 = vpack.c.bf16 %v1699, %v1699
  %v1722 = vpack.c.bf16 %v1701, %v1701
  %v1723 = vpack.c.bf16 %v1703, %v1703
  %1724 = vst [vmem:[#allocation3 + $0x4] sm:$0xf] %v1704
  %1725 = vst [vmem:[#allocation3 + $0x2c] sm:$0xf] %v1705
  %1726 = vst [vmem:[#allocation3 + $0x54] sm:$0xf] %v1706
  %1727 = vst [vmem:[#allocation3 + $0x7c] sm:$0xf] %v1707
  %1728 = vst [vmem:[#allocation3 + $0xa4] sm:$0xf] %v1708
  %1729 = vst [vmem:[#allocation3 + $0xcc] sm:$0xf] %v1709
  %1730 = vst [vmem:[#allocation3 + $0xf4] sm:$0xf] %v1710
  %1731 = vst [vmem:[#allocation3 + $0x11c] sm:$0xf] %v1711
  %1732 = vst [vmem:[#allocation3 + $0x144] sm:$0xf] %v1712
  %1733 = vst [vmem:[#allocation3 + $0x16c] sm:$0xf] %v1713
  %1734 = vst [vmem:[#allocation3 + $0x194] sm:$0xf] %v1714
  %1735 = vst [vmem:[#allocation3 + $0x1bc] sm:$0xf] %v1715
  %1736 = vst [vmem:[#allocation3 + $0x1e4] sm:$0xf] %v1716
  %1737 = vst [vmem:[#allocation3 + $0x20c] sm:$0xf] %v1717
  %1738 = vst [vmem:[#allocation3 + $0x234] sm:$0xf] %v1718
  %1739 = vst [vmem:[#allocation3 + $0x25c] sm:$0xf] %v1719
  %1740 = vst [vmem:[#allocation3 + $0x284] sm:$0xf] %v1720
  %1741 = vst [vmem:[#allocation3 + $0x2ac] sm:$0xf] %v1721
  %1742 = vst [vmem:[#allocation3 + $0x2d4] sm:$0xf] %v1722
  %1743 = vst [vmem:[#allocation3 + $0x2fc] sm:$0xf] %v1723
  %s1744 = scalar_lea.vmem [#allocation2], 2
  %v1745 = vld [vmem:[%s1744] ss:$5 sm:$0xff]
  %s1746 = scalar_lea.vmem [#allocation2], 42
  %v1747 = vld [vmem:[%s1746] ss:$5 sm:$0xff]
  %s1748 = scalar_lea.vmem [#allocation2], 82
  %v1749 = vld [vmem:[%s1748] ss:$5 sm:$0xff]
  %s1750 = scalar_lea.vmem [#allocation2], 122
  %v1751 = vld [vmem:[%s1750] ss:$5 sm:$0xff]
  %s1752 = scalar_lea.vmem [#allocation2], 162
  %v1753 = vld [vmem:[%s1752] ss:$5 sm:$0xff]
  %s1754 = scalar_lea.vmem [#allocation2], 202
  %v1755 = vld [vmem:[%s1754] ss:$5 sm:$0xff]
  %s1756 = scalar_lea.vmem [#allocation2], 242
  %v1757 = vld [vmem:[%s1756] ss:$5 sm:$0xff]
  %s1758 = scalar_lea.vmem [#allocation2], 282
  %v1759 = vld [vmem:[%s1758] ss:$5 sm:$0xff]
  %s1760 = scalar_lea.vmem [#allocation2], 322
  %v1761 = vld [vmem:[%s1760] ss:$5 sm:$0xff]
  %s1762 = scalar_lea.vmem [#allocation2], 362
  %v1763 = vld [vmem:[%s1762] ss:$5 sm:$0xff]
  %s1764 = scalar_lea.vmem [#allocation2], 402
  %v1765 = vld [vmem:[%s1764] ss:$5 sm:$0xff]
  %s1766 = scalar_lea.vmem [#allocation2], 442
  %v1767 = vld [vmem:[%s1766] ss:$5 sm:$0xff]
  %s1768 = scalar_lea.vmem [#allocation2], 482
  %v1769 = vld [vmem:[%s1768] ss:$5 sm:$0xff]
  %s1770 = scalar_lea.vmem [#allocation2], 522
  %v1771 = vld [vmem:[%s1770] ss:$5 sm:$0xff]
  %s1772 = scalar_lea.vmem [#allocation2], 562
  %v1773 = vld [vmem:[%s1772] ss:$5 sm:$0xff]
  %s1774 = scalar_lea.vmem [#allocation2], 602
  %v1775 = vld [vmem:[%s1774] ss:$5 sm:$0xff]
  %s1776 = scalar_lea.vmem [#allocation2], 642
  %v1777 = vld [vmem:[%s1776] ss:$5 sm:$0xff]
  %s1778 = scalar_lea.vmem [#allocation2], 682
  %v1779 = vld [vmem:[%s1778] ss:$5 sm:$0xff]
  %s1780 = scalar_lea.vmem [#allocation2], 722
  %v1781 = vld [vmem:[%s1780] ss:$5 sm:$0xff]
  %s1782 = scalar_lea.vmem [#allocation2], 762
  %v1783 = vld [vmem:[%s1782] ss:$5 sm:$0xff]
  %v1784 = vpack.c.bf16 %v1745, %v1745
  %v1785 = vpack.c.bf16 %v1747, %v1747
  %v1786 = vpack.c.bf16 %v1749, %v1749
  %v1787 = vpack.c.bf16 %v1751, %v1751
  %v1788 = vpack.c.bf16 %v1753, %v1753
  %v1789 = vpack.c.bf16 %v1755, %v1755
  %v1790 = vpack.c.bf16 %v1757, %v1757
  %v1791 = vpack.c.bf16 %v1759, %v1759
  %v1792 = vpack.c.bf16 %v1761, %v1761
  %v1793 = vpack.c.bf16 %v1763, %v1763
  %v1794 = vpack.c.bf16 %v1765, %v1765
  %v1795 = vpack.c.bf16 %v1767, %v1767
  %v1796 = vpack.c.bf16 %v1769, %v1769
  %v1797 = vpack.c.bf16 %v1771, %v1771
  %v1798 = vpack.c.bf16 %v1773, %v1773
  %v1799 = vpack.c.bf16 %v1775, %v1775
  %v1800 = vpack.c.bf16 %v1777, %v1777
  %v1801 = vpack.c.bf16 %v1779, %v1779
  %v1802 = vpack.c.bf16 %v1781, %v1781
  %v1803 = vpack.c.bf16 %v1783, %v1783
  %1804 = vst [vmem:[#allocation3 + $0x8] sm:$0xf] %v1784
  %1805 = vst [vmem:[#allocation3 + $0x30] sm:$0xf] %v1785
  %1806 = vst [vmem:[#allocation3 + $0x58] sm:$0xf] %v1786
  %1807 = vst [vmem:[#allocation3 + $0x80] sm:$0xf] %v1787
  %1808 = vst [vmem:[#allocation3 + $0xa8] sm:$0xf] %v1788
  %1809 = vst [vmem:[#allocation3 + $0xd0] sm:$0xf] %v1789
  %1810 = vst [vmem:[#allocation3 + $0xf8] sm:$0xf] %v1790
  %1811 = vst [vmem:[#allocation3 + $0x120] sm:$0xf] %v1791
  %1812 = vst [vmem:[#allocation3 + $0x148] sm:$0xf] %v1792
  %1813 = vst [vmem:[#allocation3 + $0x170] sm:$0xf] %v1793
  %1814 = vst [vmem:[#allocation3 + $0x198] sm:$0xf] %v1794
  %1815 = vst [vmem:[#allocation3 + $0x1c0] sm:$0xf] %v1795
  %1816 = vst [vmem:[#allocation3 + $0x1e8] sm:$0xf] %v1796
  %1817 = vst [vmem:[#allocation3 + $0x210] sm:$0xf] %v1797
  %1818 = vst [vmem:[#allocation3 + $0x238] sm:$0xf] %v1798
  %1819 = vst [vmem:[#allocation3 + $0x260] sm:$0xf] %v1799
  %1820 = vst [vmem:[#allocation3 + $0x288] sm:$0xf] %v1800
  %1821 = vst [vmem:[#allocation3 + $0x2b0] sm:$0xf] %v1801
  %1822 = vst [vmem:[#allocation3 + $0x2d8] sm:$0xf] %v1802
  %1823 = vst [vmem:[#allocation3 + $0x300] sm:$0xf] %v1803
  %s1824 = scalar_lea.vmem [#allocation2], 3
  %v1825 = vld [vmem:[%s1824] ss:$5 sm:$0xff]
  %s1826 = scalar_lea.vmem [#allocation2], 43
  %v1827 = vld [vmem:[%s1826] ss:$5 sm:$0xff]
  %s1828 = scalar_lea.vmem [#allocation2], 83
  %v1829 = vld [vmem:[%s1828] ss:$5 sm:$0xff]
  %s1830 = scalar_lea.vmem [#allocation2], 123
  %v1831 = vld [vmem:[%s1830] ss:$5 sm:$0xff]
  %s1832 = scalar_lea.vmem [#allocation2], 163
  %v1833 = vld [vmem:[%s1832] ss:$5 sm:$0xff]
  %s1834 = scalar_lea.vmem [#allocation2], 203
  %v1835 = vld [vmem:[%s1834] ss:$5 sm:$0xff]
  %s1836 = scalar_lea.vmem [#allocation2], 243
  %v1837 = vld [vmem:[%s1836] ss:$5 sm:$0xff]
  %s1838 = scalar_lea.vmem [#allocation2], 283
  %v1839 = vld [vmem:[%s1838] ss:$5 sm:$0xff]
  %s1840 = scalar_lea.vmem [#allocation2], 323
  %v1841 = vld [vmem:[%s1840] ss:$5 sm:$0xff]
  %s1842 = scalar_lea.vmem [#allocation2], 363
  %v1843 = vld [vmem:[%s1842] ss:$5 sm:$0xff]
  %s1844 = scalar_lea.vmem [#allocation2], 403
  %v1845 = vld [vmem:[%s1844] ss:$5 sm:$0xff]
  %s1846 = scalar_lea.vmem [#allocation2], 443
  %v1847 = vld [vmem:[%s1846] ss:$5 sm:$0xff]
  %s1848 = scalar_lea.vmem [#allocation2], 483
  %v1849 = vld [vmem:[%s1848] ss:$5 sm:$0xff]
  %s1850 = scalar_lea.vmem [#allocation2], 523
  %v1851 = vld [vmem:[%s1850] ss:$5 sm:$0xff]
  %s1852 = scalar_lea.vmem [#allocation2], 563
  %v1853 = vld [vmem:[%s1852] ss:$5 sm:$0xff]
  %s1854 = scalar_lea.vmem [#allocation2], 603
  %v1855 = vld [vmem:[%s1854] ss:$5 sm:$0xff]
  %s1856 = scalar_lea.vmem [#allocation2], 643
  %v1857 = vld [vmem:[%s1856] ss:$5 sm:$0xff]
  %s1858 = scalar_lea.vmem [#allocation2], 683
  %v1859 = vld [vmem:[%s1858] ss:$5 sm:$0xff]
  %s1860 = scalar_lea.vmem [#allocation2], 723
  %v1861 = vld [vmem:[%s1860] ss:$5 sm:$0xff]
  %s1862 = scalar_lea.vmem [#allocation2], 763
  %v1863 = vld [vmem:[%s1862] ss:$5 sm:$0xff]
  %v1864 = vpack.c.bf16 %v1825, %v1825
  %v1865 = vpack.c.bf16 %v1827, %v1827
  %v1866 = vpack.c.bf16 %v1829, %v1829
  %v1867 = vpack.c.bf16 %v1831, %v1831
  %v1868 = vpack.c.bf16 %v1833, %v1833
  %v1869 = vpack.c.bf16 %v1835, %v1835
  %v1870 = vpack.c.bf16 %v1837, %v1837
  %v1871 = vpack.c.bf16 %v1839, %v1839
  %v1872 = vpack.c.bf16 %v1841, %v1841
  %v1873 = vpack.c.bf16 %v1843, %v1843
  %v1874 = vpack.c.bf16 %v1845, %v1845
  %v1875 = vpack.c.bf16 %v1847, %v1847
  %v1876 = vpack.c.bf16 %v1849, %v1849
  %v1877 = vpack.c.bf16 %v1851, %v1851
  %v1878 = vpack.c.bf16 %v1853, %v1853
  %v1879 = vpack.c.bf16 %v1855, %v1855
  %v1880 = vpack.c.bf16 %v1857, %v1857
  %v1881 = vpack.c.bf16 %v1859, %v1859
  %v1882 = vpack.c.bf16 %v1861, %v1861
  %v1883 = vpack.c.bf16 %v1863, %v1863
  %1884 = vst [vmem:[#allocation3 + $0xc] sm:$0xf] %v1864
  %1885 = vst [vmem:[#allocation3 + $0x34] sm:$0xf] %v1865
  %1886 = vst [vmem:[#allocation3 + $0x5c] sm:$0xf] %v1866
  %1887 = vst [vmem:[#allocation3 + $0x84] sm:$0xf] %v1867
  %1888 = vst [vmem:[#allocation3 + $0xac] sm:$0xf] %v1868
  %1889 = vst [vmem:[#allocation3 + $0xd4] sm:$0xf] %v1869
  %1890 = vst [vmem:[#allocation3 + $0xfc] sm:$0xf] %v1870
  %1891 = vst [vmem:[#allocation3 + $0x124] sm:$0xf] %v1871
  %1892 = vst [vmem:[#allocation3 + $0x14c] sm:$0xf] %v1872
  %1893 = vst [vmem:[#allocation3 + $0x174] sm:$0xf] %v1873
  %1894 = vst [vmem:[#allocation3 + $0x19c] sm:$0xf] %v1874
  %1895 = vst [vmem:[#allocation3 + $0x1c4] sm:$0xf] %v1875
  %1896 = vst [vmem:[#allocation3 + $0x1ec] sm:$0xf] %v1876
  %1897 = vst [vmem:[#allocation3 + $0x214] sm:$0xf] %v1877
  %1898 = vst [vmem:[#allocation3 + $0x23c] sm:$0xf] %v1878
  %1899 = vst [vmem:[#allocation3 + $0x264] sm:$0xf] %v1879
  %1900 = vst [vmem:[#allocation3 + $0x28c] sm:$0xf] %v1880
  %1901 = vst [vmem:[#allocation3 + $0x2b4] sm:$0xf] %v1881
  %1902 = vst [vmem:[#allocation3 + $0x2dc] sm:$0xf] %v1882
  %1903 = vst [vmem:[#allocation3 + $0x304] sm:$0xf] %v1883
  %s1904 = scalar_lea.vmem [#allocation2], 4
  %v1905 = vld [vmem:[%s1904] ss:$5 sm:$0xff]
  %s1906 = scalar_lea.vmem [#allocation2], 44
  %v1907 = vld [vmem:[%s1906] ss:$5 sm:$0xff]
  %s1908 = scalar_lea.vmem [#allocation2], 84
  %v1909 = vld [vmem:[%s1908] ss:$5 sm:$0xff]
  %s1910 = scalar_lea.vmem [#allocation2], 124
  %v1911 = vld [vmem:[%s1910] ss:$5 sm:$0xff]
  %s1912 = scalar_lea.vmem [#allocation2], 164
  %v1913 = vld [vmem:[%s1912] ss:$5 sm:$0xff]
  %s1914 = scalar_lea.vmem [#allocation2], 204
  %v1915 = vld [vmem:[%s1914] ss:$5 sm:$0xff]
  %s1916 = scalar_lea.vmem [#allocation2], 244
  %v1917 = vld [vmem:[%s1916] ss:$5 sm:$0xff]
  %s1918 = scalar_lea.vmem [#allocation2], 284
  %v1919 = vld [vmem:[%s1918] ss:$5 sm:$0xff]
  %s1920 = scalar_lea.vmem [#allocation2], 324
  %v1921 = vld [vmem:[%s1920] ss:$5 sm:$0xff]
  %s1922 = scalar_lea.vmem [#allocation2], 364
  %v1923 = vld [vmem:[%s1922] ss:$5 sm:$0xff]
  %s1924 = scalar_lea.vmem [#allocation2], 404
  %v1925 = vld [vmem:[%s1924] ss:$5 sm:$0xff]
  %s1926 = scalar_lea.vmem [#allocation2], 444
  %v1927 = vld [vmem:[%s1926] ss:$5 sm:$0xff]
  %s1928 = scalar_lea.vmem [#allocation2], 484
  %v1929 = vld [vmem:[%s1928] ss:$5 sm:$0xff]
  %s1930 = scalar_lea.vmem [#allocation2], 524
  %v1931 = vld [vmem:[%s1930] ss:$5 sm:$0xff]
  %s1932 = scalar_lea.vmem [#allocation2], 564
  %v1933 = vld [vmem:[%s1932] ss:$5 sm:$0xff]
  %s1934 = scalar_lea.vmem [#allocation2], 604
  %v1935 = vld [vmem:[%s1934] ss:$5 sm:$0xff]
  %s1936 = scalar_lea.vmem [#allocation2], 644
  %v1937 = vld [vmem:[%s1936] ss:$5 sm:$0xff]
  %s1938 = scalar_lea.vmem [#allocation2], 684
  %v1939 = vld [vmem:[%s1938] ss:$5 sm:$0xff]
  %s1940 = scalar_lea.vmem [#allocation2], 724
  %v1941 = vld [vmem:[%s1940] ss:$5 sm:$0xff]
  %s1942 = scalar_lea.vmem [#allocation2], 764
  %v1943 = vld [vmem:[%s1942] ss:$5 sm:$0xff]
  %v1944 = vpack.c.bf16 %v1905, %v1905
  %v1945 = vpack.c.bf16 %v1907, %v1907
  %v1946 = vpack.c.bf16 %v1909, %v1909
  %v1947 = vpack.c.bf16 %v1911, %v1911
  %v1948 = vpack.c.bf16 %v1913, %v1913
  %v1949 = vpack.c.bf16 %v1915, %v1915
  %v1950 = vpack.c.bf16 %v1917, %v1917
  %v1951 = vpack.c.bf16 %v1919, %v1919
  %v1952 = vpack.c.bf16 %v1921, %v1921
  %v1953 = vpack.c.bf16 %v1923, %v1923
  %v1954 = vpack.c.bf16 %v1925, %v1925
  %v1955 = vpack.c.bf16 %v1927, %v1927
  %v1956 = vpack.c.bf16 %v1929, %v1929
  %v1957 = vpack.c.bf16 %v1931, %v1931
  %v1958 = vpack.c.bf16 %v1933, %v1933
  %v1959 = vpack.c.bf16 %v1935, %v1935
  %v1960 = vpack.c.bf16 %v1937, %v1937
  %v1961 = vpack.c.bf16 %v1939, %v1939
  %v1962 = vpack.c.bf16 %v1941, %v1941
  %v1963 = vpack.c.bf16 %v1943, %v1943
  %1964 = vst [vmem:[#allocation3 + $0x10] sm:$0xf] %v1944
  %1965 = vst [vmem:[#allocation3 + $0x38] sm:$0xf] %v1945
  %1966 = vst [vmem:[#allocation3 + $0x60] sm:$0xf] %v1946
  %1967 = vst [vmem:[#allocation3 + $0x88] sm:$0xf] %v1947
  %1968 = vst [vmem:[#allocation3 + $0xb0] sm:$0xf] %v1948
  %1969 = vst [vmem:[#allocation3 + $0xd8] sm:$0xf] %v1949
  %1970 = vst [vmem:[#allocation3 + $0x100] sm:$0xf] %v1950
  %1971 = vst [vmem:[#allocation3 + $0x128] sm:$0xf] %v1951
  %1972 = vst [vmem:[#allocation3 + $0x150] sm:$0xf] %v1952
  %1973 = vst [vmem:[#allocation3 + $0x178] sm:$0xf] %v1953
  %1974 = vst [vmem:[#allocation3 + $0x1a0] sm:$0xf] %v1954
  %1975 = vst [vmem:[#allocation3 + $0x1c8] sm:$0xf] %v1955
  %1976 = vst [vmem:[#allocation3 + $0x1f0] sm:$0xf] %v1956
  %1977 = vst [vmem:[#allocation3 + $0x218] sm:$0xf] %v1957
  %1978 = vst [vmem:[#allocation3 + $0x240] sm:$0xf] %v1958
  %1979 = vst [vmem:[#allocation3 + $0x268] sm:$0xf] %v1959
  %1980 = vst [vmem:[#allocation3 + $0x290] sm:$0xf] %v1960
  %1981 = vst [vmem:[#allocation3 + $0x2b8] sm:$0xf] %v1961
  %1982 = vst [vmem:[#allocation3 + $0x2e0] sm:$0xf] %v1962
  %1983 = vst [vmem:[#allocation3 + $0x308] sm:$0xf] %v1963
  %s1984 = scalar_lea.vmem [#allocation2], 5
  %v1985 = vld [vmem:[%s1984] ss:$5 sm:$0xff]
  %s1986 = scalar_lea.vmem [#allocation2], 45
  %v1987 = vld [vmem:[%s1986] ss:$5 sm:$0xff]
  %s1988 = scalar_lea.vmem [#allocation2], 85
  %v1989 = vld [vmem:[%s1988] ss:$5 sm:$0xff]
  %s1990 = scalar_lea.vmem [#allocation2], 125
  %v1991 = vld [vmem:[%s1990] ss:$5 sm:$0xff]
  %s1992 = scalar_lea.vmem [#allocation2], 165
  %v1993 = vld [vmem:[%s1992] ss:$5 sm:$0xff]
  %s1994 = scalar_lea.vmem [#allocation2], 205
  %v1995 = vld [vmem:[%s1994] ss:$5 sm:$0xff]
  %s1996 = scalar_lea.vmem [#allocation2], 245
  %v1997 = vld [vmem:[%s1996] ss:$5 sm:$0xff]
  %s1998 = scalar_lea.vmem [#allocation2], 285
  %v1999 = vld [vmem:[%s1998] ss:$5 sm:$0xff]
  %s2000 = scalar_lea.vmem [#allocation2], 325
  %v2001 = vld [vmem:[%s2000] ss:$5 sm:$0xff]
  %s2002 = scalar_lea.vmem [#allocation2], 365
  %v2003 = vld [vmem:[%s2002] ss:$5 sm:$0xff]
  %s2004 = scalar_lea.vmem [#allocation2], 405
  %v2005 = vld [vmem:[%s2004] ss:$5 sm:$0xff]
  %s2006 = scalar_lea.vmem [#allocation2], 445
  %v2007 = vld [vmem:[%s2006] ss:$5 sm:$0xff]
  %s2008 = scalar_lea.vmem [#allocation2], 485
  %v2009 = vld [vmem:[%s2008] ss:$5 sm:$0xff]
  %s2010 = scalar_lea.vmem [#allocation2], 525
  %v2011 = vld [vmem:[%s2010] ss:$5 sm:$0xff]
  %s2012 = scalar_lea.vmem [#allocation2], 565
  %v2013 = vld [vmem:[%s2012] ss:$5 sm:$0xff]
  %s2014 = scalar_lea.vmem [#allocation2], 605
  %v2015 = vld [vmem:[%s2014] ss:$5 sm:$0xff]
  %s2016 = scalar_lea.vmem [#allocation2], 645
  %v2017 = vld [vmem:[%s2016] ss:$5 sm:$0xff]
  %s2018 = scalar_lea.vmem [#allocation2], 685
  %v2019 = vld [vmem:[%s2018] ss:$5 sm:$0xff]
  %s2020 = scalar_lea.vmem [#allocation2], 725
  %v2021 = vld [vmem:[%s2020] ss:$5 sm:$0xff]
  %s2022 = scalar_lea.vmem [#allocation2], 765
  %v2023 = vld [vmem:[%s2022] ss:$5 sm:$0xff]
  %v2024 = vpack.c.bf16 %v1985, %v1985
  %v2025 = vpack.c.bf16 %v1987, %v1987
  %v2026 = vpack.c.bf16 %v1989, %v1989
  %v2027 = vpack.c.bf16 %v1991, %v1991
  %v2028 = vpack.c.bf16 %v1993, %v1993
  %v2029 = vpack.c.bf16 %v1995, %v1995
  %v2030 = vpack.c.bf16 %v1997, %v1997
  %v2031 = vpack.c.bf16 %v1999, %v1999
  %v2032 = vpack.c.bf16 %v2001, %v2001
  %v2033 = vpack.c.bf16 %v2003, %v2003
  %v2034 = vpack.c.bf16 %v2005, %v2005
  %v2035 = vpack.c.bf16 %v2007, %v2007
  %v2036 = vpack.c.bf16 %v2009, %v2009
  %v2037 = vpack.c.bf16 %v2011, %v2011
  %v2038 = vpack.c.bf16 %v2013, %v2013
  %v2039 = vpack.c.bf16 %v2015, %v2015
  %v2040 = vpack.c.bf16 %v2017, %v2017
  %v2041 = vpack.c.bf16 %v2019, %v2019
  %v2042 = vpack.c.bf16 %v2021, %v2021
  %v2043 = vpack.c.bf16 %v2023, %v2023
  %2044 = vst [vmem:[#allocation3 + $0x14] sm:$0xf] %v2024
  %2045 = vst [vmem:[#allocation3 + $0x3c] sm:$0xf] %v2025
  %2046 = vst [vmem:[#allocation3 + $0x64] sm:$0xf] %v2026
  %2047 = vst [vmem:[#allocation3 + $0x8c] sm:$0xf] %v2027
  %2048 = vst [vmem:[#allocation3 + $0xb4] sm:$0xf] %v2028
  %2049 = vst [vmem:[#allocation3 + $0xdc] sm:$0xf] %v2029
  %2050 = vst [vmem:[#allocation3 + $0x104] sm:$0xf] %v2030
  %2051 = vst [vmem:[#allocation3 + $0x12c] sm:$0xf] %v2031
  %2052 = vst [vmem:[#allocation3 + $0x154] sm:$0xf] %v2032
  %2053 = vst [vmem:[#allocation3 + $0x17c] sm:$0xf] %v2033
  %2054 = vst [vmem:[#allocation3 + $0x1a4] sm:$0xf] %v2034
  %2055 = vst [vmem:[#allocation3 + $0x1cc] sm:$0xf] %v2035
  %2056 = vst [vmem:[#allocation3 + $0x1f4] sm:$0xf] %v2036
  %2057 = vst [vmem:[#allocation3 + $0x21c] sm:$0xf] %v2037
  %2058 = vst [vmem:[#allocation3 + $0x244] sm:$0xf] %v2038
  %2059 = vst [vmem:[#allocation3 + $0x26c] sm:$0xf] %v2039
  %2060 = vst [vmem:[#allocation3 + $0x294] sm:$0xf] %v2040
  %2061 = vst [vmem:[#allocation3 + $0x2bc] sm:$0xf] %v2041
  %2062 = vst [vmem:[#allocation3 + $0x2e4] sm:$0xf] %v2042
  %2063 = vst [vmem:[#allocation3 + $0x30c] sm:$0xf] %v2043
  %s2064 = scalar_lea.vmem [#allocation2], 6
  %v2065 = vld [vmem:[%s2064] ss:$5 sm:$0xff]
  %s2066 = scalar_lea.vmem [#allocation2], 46
  %v2067 = vld [vmem:[%s2066] ss:$5 sm:$0xff]
  %s2068 = scalar_lea.vmem [#allocation2], 86
  %v2069 = vld [vmem:[%s2068] ss:$5 sm:$0xff]
  %s2070 = scalar_lea.vmem [#allocation2], 126
  %v2071 = vld [vmem:[%s2070] ss:$5 sm:$0xff]
  %s2072 = scalar_lea.vmem [#allocation2], 166
  %v2073 = vld [vmem:[%s2072] ss:$5 sm:$0xff]
  %s2074 = scalar_lea.vmem [#allocation2], 206
  %v2075 = vld [vmem:[%s2074] ss:$5 sm:$0xff]
  %s2076 = scalar_lea.vmem [#allocation2], 246
  %v2077 = vld [vmem:[%s2076] ss:$5 sm:$0xff]
  %s2078 = scalar_lea.vmem [#allocation2], 286
  %v2079 = vld [vmem:[%s2078] ss:$5 sm:$0xff]
  %s2080 = scalar_lea.vmem [#allocation2], 326
  %v2081 = vld [vmem:[%s2080] ss:$5 sm:$0xff]
  %s2082 = scalar_lea.vmem [#allocation2], 366
  %v2083 = vld [vmem:[%s2082] ss:$5 sm:$0xff]
  %s2084 = scalar_lea.vmem [#allocation2], 406
  %v2085 = vld [vmem:[%s2084] ss:$5 sm:$0xff]
  %s2086 = scalar_lea.vmem [#allocation2], 446
  %v2087 = vld [vmem:[%s2086] ss:$5 sm:$0xff]
  %s2088 = scalar_lea.vmem [#allocation2], 486
  %v2089 = vld [vmem:[%s2088] ss:$5 sm:$0xff]
  %s2090 = scalar_lea.vmem [#allocation2], 526
  %v2091 = vld [vmem:[%s2090] ss:$5 sm:$0xff]
  %s2092 = scalar_lea.vmem [#allocation2], 566
  %v2093 = vld [vmem:[%s2092] ss:$5 sm:$0xff]
  %s2094 = scalar_lea.vmem [#allocation2], 606
  %v2095 = vld [vmem:[%s2094] ss:$5 sm:$0xff]
  %s2096 = scalar_lea.vmem [#allocation2], 646
  %v2097 = vld [vmem:[%s2096] ss:$5 sm:$0xff]
  %s2098 = scalar_lea.vmem [#allocation2], 686
  %v2099 = vld [vmem:[%s2098] ss:$5 sm:$0xff]
  %s2100 = scalar_lea.vmem [#allocation2], 726
  %v2101 = vld [vmem:[%s2100] ss:$5 sm:$0xff]
  %s2102 = scalar_lea.vmem [#allocation2], 766
  %v2103 = vld [vmem:[%s2102] ss:$5 sm:$0xff]
  %v2104 = vpack.c.bf16 %v2065, %v2065
  %v2105 = vpack.c.bf16 %v2067, %v2067
  %v2106 = vpack.c.bf16 %v2069, %v2069
  %v2107 = vpack.c.bf16 %v2071, %v2071
  %v2108 = vpack.c.bf16 %v2073, %v2073
  %v2109 = vpack.c.bf16 %v2075, %v2075
  %v2110 = vpack.c.bf16 %v2077, %v2077
  %v2111 = vpack.c.bf16 %v2079, %v2079
  %v2112 = vpack.c.bf16 %v2081, %v2081
  %v2113 = vpack.c.bf16 %v2083, %v2083
  %v2114 = vpack.c.bf16 %v2085, %v2085
  %v2115 = vpack.c.bf16 %v2087, %v2087
  %v2116 = vpack.c.bf16 %v2089, %v2089
  %v2117 = vpack.c.bf16 %v2091, %v2091
  %v2118 = vpack.c.bf16 %v2093, %v2093
  %v2119 = vpack.c.bf16 %v2095, %v2095
  %v2120 = vpack.c.bf16 %v2097, %v2097
  %v2121 = vpack.c.bf16 %v2099, %v2099
  %v2122 = vpack.c.bf16 %v2101, %v2101
  %v2123 = vpack.c.bf16 %v2103, %v2103
  %2124 = vst [vmem:[#allocation3 + $0x18] sm:$0xf] %v2104
  %2125 = vst [vmem:[#allocation3 + $0x40] sm:$0xf] %v2105
  %2126 = vst [vmem:[#allocation3 + $0x68] sm:$0xf] %v2106
  %2127 = vst [vmem:[#allocation3 + $0x90] sm:$0xf] %v2107
  %2128 = vst [vmem:[#allocation3 + $0xb8] sm:$0xf] %v2108
  %2129 = vst [vmem:[#allocation3 + $0xe0] sm:$0xf] %v2109
  %2130 = vst [vmem:[#allocation3 + $0x108] sm:$0xf] %v2110
  %2131 = vst [vmem:[#allocation3 + $0x130] sm:$0xf] %v2111
  %2132 = vst [vmem:[#allocation3 + $0x158] sm:$0xf] %v2112
  %2133 = vst [vmem:[#allocation3 + $0x180] sm:$0xf] %v2113
  %2134 = vst [vmem:[#allocation3 + $0x1a8] sm:$0xf] %v2114
  %2135 = vst [vmem:[#allocation3 + $0x1d0] sm:$0xf] %v2115
  %2136 = vst [vmem:[#allocation3 + $0x1f8] sm:$0xf] %v2116
  %2137 = vst [vmem:[#allocation3 + $0x220] sm:$0xf] %v2117
  %2138 = vst [vmem:[#allocation3 + $0x248] sm:$0xf] %v2118
  %2139 = vst [vmem:[#allocation3 + $0x270] sm:$0xf] %v2119
  %2140 = vst [vmem:[#allocation3 + $0x298] sm:$0xf] %v2120
  %2141 = vst [vmem:[#allocation3 + $0x2c0] sm:$0xf] %v2121
  %2142 = vst [vmem:[#allocation3 + $0x2e8] sm:$0xf] %v2122
  %2143 = vst [vmem:[#allocation3 + $0x310] sm:$0xf] %v2123
  %s2144 = scalar_lea.vmem [#allocation2], 7
  %v2145 = vld [vmem:[%s2144] ss:$5 sm:$0xff]
  %s2146 = scalar_lea.vmem [#allocation2], 47
  %v2147 = vld [vmem:[%s2146] ss:$5 sm:$0xff]
  %s2148 = scalar_lea.vmem [#allocation2], 87
  %v2149 = vld [vmem:[%s2148] ss:$5 sm:$0xff]
  %s2150 = scalar_lea.vmem [#allocation2], 127
  %v2151 = vld [vmem:[%s2150] ss:$5 sm:$0xff]
  %s2152 = scalar_lea.vmem [#allocation2], 167
  %v2153 = vld [vmem:[%s2152] ss:$5 sm:$0xff]
  %s2154 = scalar_lea.vmem [#allocation2], 207
  %v2155 = vld [vmem:[%s2154] ss:$5 sm:$0xff]
  %s2156 = scalar_lea.vmem [#allocation2], 247
  %v2157 = vld [vmem:[%s2156] ss:$5 sm:$0xff]
  %s2158 = scalar_lea.vmem [#allocation2], 287
  %v2159 = vld [vmem:[%s2158] ss:$5 sm:$0xff]
  %s2160 = scalar_lea.vmem [#allocation2], 327
  %v2161 = vld [vmem:[%s2160] ss:$5 sm:$0xff]
  %s2162 = scalar_lea.vmem [#allocation2], 367
  %v2163 = vld [vmem:[%s2162] ss:$5 sm:$0xff]
  %s2164 = scalar_lea.vmem [#allocation2], 407
  %v2165 = vld [vmem:[%s2164] ss:$5 sm:$0xff]
  %s2166 = scalar_lea.vmem [#allocation2], 447
  %v2167 = vld [vmem:[%s2166] ss:$5 sm:$0xff]
  %s2168 = scalar_lea.vmem [#allocation2], 487
  %v2169 = vld [vmem:[%s2168] ss:$5 sm:$0xff]
  %s2170 = scalar_lea.vmem [#allocation2], 527
  %v2171 = vld [vmem:[%s2170] ss:$5 sm:$0xff]
  %s2172 = scalar_lea.vmem [#allocation2], 567
  %v2173 = vld [vmem:[%s2172] ss:$5 sm:$0xff]
  %s2174 = scalar_lea.vmem [#allocation2], 607
  %v2175 = vld [vmem:[%s2174] ss:$5 sm:$0xff]
  %s2176 = scalar_lea.vmem [#allocation2], 647
  %v2177 = vld [vmem:[%s2176] ss:$5 sm:$0xff]
  %s2178 = scalar_lea.vmem [#allocation2], 687
  %v2179 = vld [vmem:[%s2178] ss:$5 sm:$0xff]
  %s2180 = scalar_lea.vmem [#allocation2], 727
  %v2181 = vld [vmem:[%s2180] ss:$5 sm:$0xff]
  %s2182 = scalar_lea.vmem [#allocation2], 767
  %v2183 = vld [vmem:[%s2182] ss:$5 sm:$0xff]
  %v2184 = vpack.c.bf16 %v2145, %v2145
  %v2185 = vpack.c.bf16 %v2147, %v2147
  %v2186 = vpack.c.bf16 %v2149, %v2149
  %v2187 = vpack.c.bf16 %v2151, %v2151
  %v2188 = vpack.c.bf16 %v2153, %v2153
  %v2189 = vpack.c.bf16 %v2155, %v2155
  %v2190 = vpack.c.bf16 %v2157, %v2157
  %v2191 = vpack.c.bf16 %v2159, %v2159
  %v2192 = vpack.c.bf16 %v2161, %v2161
  %v2193 = vpack.c.bf16 %v2163, %v2163
  %v2194 = vpack.c.bf16 %v2165, %v2165
  %v2195 = vpack.c.bf16 %v2167, %v2167
  %v2196 = vpack.c.bf16 %v2169, %v2169
  %v2197 = vpack.c.bf16 %v2171, %v2171
  %v2198 = vpack.c.bf16 %v2173, %v2173
  %v2199 = vpack.c.bf16 %v2175, %v2175
  %v2200 = vpack.c.bf16 %v2177, %v2177
  %v2201 = vpack.c.bf16 %v2179, %v2179
  %v2202 = vpack.c.bf16 %v2181, %v2181
  %v2203 = vpack.c.bf16 %v2183, %v2183
  %2204 = vst [vmem:[#allocation3 + $0x1c] sm:$0xf] %v2184
  %2205 = vst [vmem:[#allocation3 + $0x44] sm:$0xf] %v2185
  %2206 = vst [vmem:[#allocation3 + $0x6c] sm:$0xf] %v2186
  %2207 = vst [vmem:[#allocation3 + $0x94] sm:$0xf] %v2187
  %2208 = vst [vmem:[#allocation3 + $0xbc] sm:$0xf] %v2188
  %2209 = vst [vmem:[#allocation3 + $0xe4] sm:$0xf] %v2189
  %2210 = vst [vmem:[#allocation3 + $0x10c] sm:$0xf] %v2190
  %2211 = vst [vmem:[#allocation3 + $0x134] sm:$0xf] %v2191
  %2212 = vst [vmem:[#allocation3 + $0x15c] sm:$0xf] %v2192
  %2213 = vst [vmem:[#allocation3 + $0x184] sm:$0xf] %v2193
  %2214 = vst [vmem:[#allocation3 + $0x1ac] sm:$0xf] %v2194
  %2215 = vst [vmem:[#allocation3 + $0x1d4] sm:$0xf] %v2195
  %2216 = vst [vmem:[#allocation3 + $0x1fc] sm:$0xf] %v2196
  %2217 = vst [vmem:[#allocation3 + $0x224] sm:$0xf] %v2197
  %2218 = vst [vmem:[#allocation3 + $0x24c] sm:$0xf] %v2198
  %2219 = vst [vmem:[#allocation3 + $0x274] sm:$0xf] %v2199
  %2220 = vst [vmem:[#allocation3 + $0x29c] sm:$0xf] %v2200
  %2221 = vst [vmem:[#allocation3 + $0x2c4] sm:$0xf] %v2201
  %2222 = vst [vmem:[#allocation3 + $0x2ec] sm:$0xf] %v2202
  %2223 = vst [vmem:[#allocation3 + $0x314] sm:$0xf] %v2203
  %s2224 = scalar_lea.vmem [#allocation2], 8
  %v2225 = vld [vmem:[%s2224] ss:$5 sm:$0xff]
  %s2226 = scalar_lea.vmem [#allocation2], 48
  %v2227 = vld [vmem:[%s2226] ss:$5 sm:$0xff]
  %s2228 = scalar_lea.vmem [#allocation2], 88
  %v2229 = vld [vmem:[%s2228] ss:$5 sm:$0xff]
  %s2230 = scalar_lea.vmem [#allocation2], 128
  %v2231 = vld [vmem:[%s2230] ss:$5 sm:$0xff]
  %s2232 = scalar_lea.vmem [#allocation2], 168
  %v2233 = vld [vmem:[%s2232] ss:$5 sm:$0xff]
  %s2234 = scalar_lea.vmem [#allocation2], 208
  %v2235 = vld [vmem:[%s2234] ss:$5 sm:$0xff]
  %s2236 = scalar_lea.vmem [#allocation2], 248
  %v2237 = vld [vmem:[%s2236] ss:$5 sm:$0xff]
  %s2238 = scalar_lea.vmem [#allocation2], 288
  %v2239 = vld [vmem:[%s2238] ss:$5 sm:$0xff]
  %s2240 = scalar_lea.vmem [#allocation2], 328
  %v2241 = vld [vmem:[%s2240] ss:$5 sm:$0xff]
  %s2242 = scalar_lea.vmem [#allocation2], 368
  %v2243 = vld [vmem:[%s2242] ss:$5 sm:$0xff]
  %s2244 = scalar_lea.vmem [#allocation2], 408
  %v2245 = vld [vmem:[%s2244] ss:$5 sm:$0xff]
  %s2246 = scalar_lea.vmem [#allocation2], 448
  %v2247 = vld [vmem:[%s2246] ss:$5 sm:$0xff]
  %s2248 = scalar_lea.vmem [#allocation2], 488
  %v2249 = vld [vmem:[%s2248] ss:$5 sm:$0xff]
  %s2250 = scalar_lea.vmem [#allocation2], 528
  %v2251 = vld [vmem:[%s2250] ss:$5 sm:$0xff]
  %s2252 = scalar_lea.vmem [#allocation2], 568
  %v2253 = vld [vmem:[%s2252] ss:$5 sm:$0xff]
  %s2254 = scalar_lea.vmem [#allocation2], 608
  %v2255 = vld [vmem:[%s2254] ss:$5 sm:$0xff]
  %s2256 = scalar_lea.vmem [#allocation2], 648
  %v2257 = vld [vmem:[%s2256] ss:$5 sm:$0xff]
  %s2258 = scalar_lea.vmem [#allocation2], 688
  %v2259 = vld [vmem:[%s2258] ss:$5 sm:$0xff]
  %s2260 = scalar_lea.vmem [#allocation2], 728
  %v2261 = vld [vmem:[%s2260] ss:$5 sm:$0xff]
  %s2262 = scalar_lea.vmem [#allocation2], 768
  %v2263 = vld [vmem:[%s2262] ss:$5 sm:$0xff]
  %v2264 = vpack.c.bf16 %v2225, %v2225
  %v2265 = vpack.c.bf16 %v2227, %v2227
  %v2266 = vpack.c.bf16 %v2229, %v2229
  %v2267 = vpack.c.bf16 %v2231, %v2231
  %v2268 = vpack.c.bf16 %v2233, %v2233
  %v2269 = vpack.c.bf16 %v2235, %v2235
  %v2270 = vpack.c.bf16 %v2237, %v2237
  %v2271 = vpack.c.bf16 %v2239, %v2239
  %v2272 = vpack.c.bf16 %v2241, %v2241
  %v2273 = vpack.c.bf16 %v2243, %v2243
  %v2274 = vpack.c.bf16 %v2245, %v2245
  %v2275 = vpack.c.bf16 %v2247, %v2247
  %v2276 = vpack.c.bf16 %v2249, %v2249
  %v2277 = vpack.c.bf16 %v2251, %v2251
  %v2278 = vpack.c.bf16 %v2253, %v2253
  %v2279 = vpack.c.bf16 %v2255, %v2255
  %v2280 = vpack.c.bf16 %v2257, %v2257
  %v2281 = vpack.c.bf16 %v2259, %v2259
  %v2282 = vpack.c.bf16 %v2261, %v2261
  %v2283 = vpack.c.bf16 %v2263, %v2263
  %2284 = vst [vmem:[#allocation3 + $0x20] sm:$0xf] %v2264
  %2285 = vst [vmem:[#allocation3 + $0x48] sm:$0xf] %v2265
  %2286 = vst [vmem:[#allocation3 + $0x70] sm:$0xf] %v2266
  %2287 = vst [vmem:[#allocation3 + $0x98] sm:$0xf] %v2267
  %2288 = vst [vmem:[#allocation3 + $0xc0] sm:$0xf] %v2268
  %2289 = vst [vmem:[#allocation3 + $0xe8] sm:$0xf] %v2269
  %2290 = vst [vmem:[#allocation3 + $0x110] sm:$0xf] %v2270
  %2291 = vst [vmem:[#allocation3 + $0x138] sm:$0xf] %v2271
  %2292 = vst [vmem:[#allocation3 + $0x160] sm:$0xf] %v2272
  %2293 = vst [vmem:[#allocation3 + $0x188] sm:$0xf] %v2273
  %2294 = vst [vmem:[#allocation3 + $0x1b0] sm:$0xf] %v2274
  %2295 = vst [vmem:[#allocation3 + $0x1d8] sm:$0xf] %v2275
  %2296 = vst [vmem:[#allocation3 + $0x200] sm:$0xf] %v2276
  %2297 = vst [vmem:[#allocation3 + $0x228] sm:$0xf] %v2277
  %2298 = vst [vmem:[#allocation3 + $0x250] sm:$0xf] %v2278
  %2299 = vst [vmem:[#allocation3 + $0x278] sm:$0xf] %v2279
  %2300 = vst [vmem:[#allocation3 + $0x2a0] sm:$0xf] %v2280
  %2301 = vst [vmem:[#allocation3 + $0x2c8] sm:$0xf] %v2281
  %2302 = vst [vmem:[#allocation3 + $0x2f0] sm:$0xf] %v2282
  %2303 = vst [vmem:[#allocation3 + $0x318] sm:$0xf] %v2283
  %s2304 = scalar_lea.vmem [#allocation2], 9
  %v2305 = vld [vmem:[%s2304] ss:$5 sm:$0xff]
  %s2306 = scalar_lea.vmem [#allocation2], 49
  %v2307 = vld [vmem:[%s2306] ss:$5 sm:$0xff]
  %s2308 = scalar_lea.vmem [#allocation2], 89
  %v2309 = vld [vmem:[%s2308] ss:$5 sm:$0xff]
  %s2310 = scalar_lea.vmem [#allocation2], 129
  %v2311 = vld [vmem:[%s2310] ss:$5 sm:$0xff]
  %s2312 = scalar_lea.vmem [#allocation2], 169
  %v2313 = vld [vmem:[%s2312] ss:$5 sm:$0xff]
  %s2314 = scalar_lea.vmem [#allocation2], 209
  %v2315 = vld [vmem:[%s2314] ss:$5 sm:$0xff]
  %s2316 = scalar_lea.vmem [#allocation2], 249
  %v2317 = vld [vmem:[%s2316] ss:$5 sm:$0xff]
  %s2318 = scalar_lea.vmem [#allocation2], 289
  %v2319 = vld [vmem:[%s2318] ss:$5 sm:$0xff]
  %s2320 = scalar_lea.vmem [#allocation2], 329
  %v2321 = vld [vmem:[%s2320] ss:$5 sm:$0xff]
  %s2322 = scalar_lea.vmem [#allocation2], 369
  %v2323 = vld [vmem:[%s2322] ss:$5 sm:$0xff]
  %s2324 = scalar_lea.vmem [#allocation2], 409
  %v2325 = vld [vmem:[%s2324] ss:$5 sm:$0xff]
  %s2326 = scalar_lea.vmem [#allocation2], 449
  %v2327 = vld [vmem:[%s2326] ss:$5 sm:$0xff]
  %s2328 = scalar_lea.vmem [#allocation2], 489
  %v2329 = vld [vmem:[%s2328] ss:$5 sm:$0xff]
  %s2330 = scalar_lea.vmem [#allocation2], 529
  %v2331 = vld [vmem:[%s2330] ss:$5 sm:$0xff]
  %s2332 = scalar_lea.vmem [#allocation2], 569
  %v2333 = vld [vmem:[%s2332] ss:$5 sm:$0xff]
  %s2334 = scalar_lea.vmem [#allocation2], 609
  %v2335 = vld [vmem:[%s2334] ss:$5 sm:$0xff]
  %s2336 = scalar_lea.vmem [#allocation2], 649
  %v2337 = vld [vmem:[%s2336] ss:$5 sm:$0xff]
  %s2338 = scalar_lea.vmem [#allocation2], 689
  %v2339 = vld [vmem:[%s2338] ss:$5 sm:$0xff]
  %s2340 = scalar_lea.vmem [#allocation2], 729
  %v2341 = vld [vmem:[%s2340] ss:$5 sm:$0xff]
  %s2342 = scalar_lea.vmem [#allocation2], 769
  %v2343 = vld [vmem:[%s2342] ss:$5 sm:$0xff]
  %v2344 = vpack.c.bf16 %v2305, %v2305
  %v2345 = vpack.c.bf16 %v2307, %v2307
  %v2346 = vpack.c.bf16 %v2309, %v2309
  %v2347 = vpack.c.bf16 %v2311, %v2311
  %v2348 = vpack.c.bf16 %v2313, %v2313
  %v2349 = vpack.c.bf16 %v2315, %v2315
  %v2350 = vpack.c.bf16 %v2317, %v2317
  %v2351 = vpack.c.bf16 %v2319, %v2319
  %v2352 = vpack.c.bf16 %v2321, %v2321
  %v2353 = vpack.c.bf16 %v2323, %v2323
  %v2354 = vpack.c.bf16 %v2325, %v2325
  %v2355 = vpack.c.bf16 %v2327, %v2327
  %v2356 = vpack.c.bf16 %v2329, %v2329
  %v2357 = vpack.c.bf16 %v2331, %v2331
  %v2358 = vpack.c.bf16 %v2333, %v2333
  %v2359 = vpack.c.bf16 %v2335, %v2335
  %v2360 = vpack.c.bf16 %v2337, %v2337
  %v2361 = vpack.c.bf16 %v2339, %v2339
  %v2362 = vpack.c.bf16 %v2341, %v2341
  %v2363 = vpack.c.bf16 %v2343, %v2343
  %2364 = vst [vmem:[#allocation3 + $0x24] sm:$0xf] %v2344
  %2365 = vst [vmem:[#allocation3 + $0x4c] sm:$0xf] %v2345
  %2366 = vst [vmem:[#allocation3 + $0x74] sm:$0xf] %v2346
  %2367 = vst [vmem:[#allocation3 + $0x9c] sm:$0xf] %v2347
  %2368 = vst [vmem:[#allocation3 + $0xc4] sm:$0xf] %v2348
  %2369 = vst [vmem:[#allocation3 + $0xec] sm:$0xf] %v2349
  %2370 = vst [vmem:[#allocation3 + $0x114] sm:$0xf] %v2350
  %2371 = vst [vmem:[#allocation3 + $0x13c] sm:$0xf] %v2351
  %2372 = vst [vmem:[#allocation3 + $0x164] sm:$0xf] %v2352
  %2373 = vst [vmem:[#allocation3 + $0x18c] sm:$0xf] %v2353
  %2374 = vst [vmem:[#allocation3 + $0x1b4] sm:$0xf] %v2354
  %2375 = vst [vmem:[#allocation3 + $0x1dc] sm:$0xf] %v2355
  %2376 = vst [vmem:[#allocation3 + $0x204] sm:$0xf] %v2356
  %2377 = vst [vmem:[#allocation3 + $0x22c] sm:$0xf] %v2357
  %2378 = vst [vmem:[#allocation3 + $0x254] sm:$0xf] %v2358
  %2379 = vst [vmem:[#allocation3 + $0x27c] sm:$0xf] %v2359
  %2380 = vst [vmem:[#allocation3 + $0x2a4] sm:$0xf] %v2360
  %2381 = vst [vmem:[#allocation3 + $0x2cc] sm:$0xf] %v2361
  %2382 = vst [vmem:[#allocation3 + $0x2f4] sm:$0xf] %v2362
  %2383 = vst [vmem:[#allocation3 + $0x31c] sm:$0xf] %v2363
  %v2384 = vld [vmem:[#allocation3] sm:$0xff]
  %v2385 = vld [vmem:[#allocation3 + $0x8] sm:$0xff]
  %v2386 = vld [vmem:[#allocation3 + $0x10] sm:$0xff]
  %v2387 = vld [vmem:[#allocation3 + $0x18] sm:$0xff]
  %v2388 = vld [vmem:[#allocation3 + $0x20] sm:$0xff]
  %v2389 = vld [vmem:[#allocation3 + $0x28] sm:$0xff]
  %v2390 = vld [vmem:[#allocation3 + $0x30] sm:$0xff]
  %v2391 = vld [vmem:[#allocation3 + $0x38] sm:$0xff]
  %v2392 = vld [vmem:[#allocation3 + $0x40] sm:$0xff]
  %v2393 = vld [vmem:[#allocation3 + $0x48] sm:$0xff]
  %v2394 = vld [vmem:[#allocation3 + $0x50] sm:$0xff]
  %v2395 = vld [vmem:[#allocation3 + $0x58] sm:$0xff]
  %v2396 = vld [vmem:[#allocation3 + $0x60] sm:$0xff]
  %v2397 = vld [vmem:[#allocation3 + $0x68] sm:$0xff]
  %v2398 = vld [vmem:[#allocation3 + $0x70] sm:$0xff]
  %v2399 = vld [vmem:[#allocation3 + $0x78] sm:$0xff]
  %v2400 = vld [vmem:[#allocation3 + $0x80] sm:$0xff]
  %v2401 = vld [vmem:[#allocation3 + $0x88] sm:$0xff]
  %v2402 = vld [vmem:[#allocation3 + $0x90] sm:$0xff]
  %v2403 = vld [vmem:[#allocation3 + $0x98] sm:$0xff]
  %v2404 = vld [vmem:[#allocation3 + $0xa0] sm:$0xff]
  %v2405 = vld [vmem:[#allocation3 + $0xa8] sm:$0xff]
  %v2406 = vld [vmem:[#allocation3 + $0xb0] sm:$0xff]
  %v2407 = vld [vmem:[#allocation3 + $0xb8] sm:$0xff]
  %v2408 = vld [vmem:[#allocation3 + $0xc0] sm:$0xff]
  %v2409 = vld [vmem:[#allocation3 + $0xc8] sm:$0xff]
  %v2410 = vld [vmem:[#allocation3 + $0xd0] sm:$0xff]
  %v2411 = vld [vmem:[#allocation3 + $0xd8] sm:$0xff]
  %v2412 = vld [vmem:[#allocation3 + $0xe0] sm:$0xff]
  %v2413 = vld [vmem:[#allocation3 + $0xe8] sm:$0xff]
  %v2414 = vld [vmem:[#allocation3 + $0xf0] sm:$0xff]
  %v2415 = vld [vmem:[#allocation3 + $0xf8] sm:$0xff]
  %v2416 = vld [vmem:[#allocation3 + $0x100] sm:$0xff]
  %v2417 = vld [vmem:[#allocation3 + $0x108] sm:$0xff]
  %v2418 = vld [vmem:[#allocation3 + $0x110] sm:$0xff]
  %v2419 = vld [vmem:[#allocation3 + $0x118] sm:$0xff]
  %v2420 = vld [vmem:[#allocation3 + $0x120] sm:$0xff]
  %v2421 = vld [vmem:[#allocation3 + $0x128] sm:$0xff]
  %v2422 = vld [vmem:[#allocation3 + $0x130] sm:$0xff]
  %v2423 = vld [vmem:[#allocation3 + $0x138] sm:$0xff]
  %v2424 = vld [vmem:[#allocation3 + $0x140] sm:$0xff]
  %v2425 = vld [vmem:[#allocation3 + $0x148] sm:$0xff]
  %v2426 = vld [vmem:[#allocation3 + $0x150] sm:$0xff]
  %v2427 = vld [vmem:[#allocation3 + $0x158] sm:$0xff]
  %v2428 = vld [vmem:[#allocation3 + $0x160] sm:$0xff]
  %v2429 = vld [vmem:[#allocation3 + $0x168] sm:$0xff]
  %v2430 = vld [vmem:[#allocation3 + $0x170] sm:$0xff]
  %v2431 = vld [vmem:[#allocation3 + $0x178] sm:$0xff]
  %v2432 = vld [vmem:[#allocation3 + $0x180] sm:$0xff]
  %v2433 = vld [vmem:[#allocation3 + $0x188] sm:$0xff]
  %v2434 = vld [vmem:[#allocation3 + $0x190] sm:$0xff]
  %v2435 = vld [vmem:[#allocation3 + $0x198] sm:$0xff]
  %v2436 = vld [vmem:[#allocation3 + $0x1a0] sm:$0xff]
  %v2437 = vld [vmem:[#allocation3 + $0x1a8] sm:$0xff]
  %v2438 = vld [vmem:[#allocation3 + $0x1b0] sm:$0xff]
  %v2439 = vld [vmem:[#allocation3 + $0x1b8] sm:$0xff]
  %v2440 = vld [vmem:[#allocation3 + $0x1c0] sm:$0xff]
  %v2441 = vld [vmem:[#allocation3 + $0x1c8] sm:$0xff]
  %v2442 = vld [vmem:[#allocation3 + $0x1d0] sm:$0xff]
  %v2443 = vld [vmem:[#allocation3 + $0x1d8] sm:$0xff]
  %v2444 = vld [vmem:[#allocation3 + $0x1e0] sm:$0xff]
  %v2445 = vld [vmem:[#allocation3 + $0x1e8] sm:$0xff]
  %v2446 = vld [vmem:[#allocation3 + $0x1f0] sm:$0xff]
  %v2447 = vld [vmem:[#allocation3 + $0x1f8] sm:$0xff]
  %v2448 = vld [vmem:[#allocation3 + $0x200] sm:$0xff]
  %v2449 = vld [vmem:[#allocation3 + $0x208] sm:$0xff]
  %v2450 = vld [vmem:[#allocation3 + $0x210] sm:$0xff]
  %v2451 = vld [vmem:[#allocation3 + $0x218] sm:$0xff]
  %v2452 = vld [vmem:[#allocation3 + $0x220] sm:$0xff]
  %v2453 = vld [vmem:[#allocation3 + $0x228] sm:$0xff]
  %v2454 = vld [vmem:[#allocation3 + $0x230] sm:$0xff]
  %v2455 = vld [vmem:[#allocation3 + $0x238] sm:$0xff]
  %v2456 = vld [vmem:[#allocation3 + $0x240] sm:$0xff]
  %v2457 = vld [vmem:[#allocation3 + $0x248] sm:$0xff]
  %v2458 = vld [vmem:[#allocation3 + $0x250] sm:$0xff]
  %v2459 = vld [vmem:[#allocation3 + $0x258] sm:$0xff]
  %v2460 = vld [vmem:[#allocation3 + $0x260] sm:$0xff]
  %v2461 = vld [vmem:[#allocation3 + $0x268] sm:$0xff]
  %v2462 = vld [vmem:[#allocation3 + $0x270] sm:$0xff]
  %v2463 = vld [vmem:[#allocation3 + $0x278] sm:$0xff]
  %v2464 = vld [vmem:[#allocation3 + $0x280] sm:$0xff]
  %v2465 = vld [vmem:[#allocation3 + $0x288] sm:$0xff]
  %v2466 = vld [vmem:[#allocation3 + $0x290] sm:$0xff]
  %v2467 = vld [vmem:[#allocation3 + $0x298] sm:$0xff]
  %v2468 = vld [vmem:[#allocation3 + $0x2a0] sm:$0xff]
  %v2469 = vld [vmem:[#allocation3 + $0x2a8] sm:$0xff]
  %v2470 = vld [vmem:[#allocation3 + $0x2b0] sm:$0xff]
  %v2471 = vld [vmem:[#allocation3 + $0x2b8] sm:$0xff]
  %v2472 = vld [vmem:[#allocation3 + $0x2c0] sm:$0xff]
  %v2473 = vld [vmem:[#allocation3 + $0x2c8] sm:$0xff]
  %v2474 = vld [vmem:[#allocation3 + $0x2d0] sm:$0xff]
  %v2475 = vld [vmem:[#allocation3 + $0x2d8] sm:$0xff]
  %v2476 = vld [vmem:[#allocation3 + $0x2e0] sm:$0xff]
  %v2477 = vld [vmem:[#allocation3 + $0x2e8] sm:$0xff]
  %v2478 = vld [vmem:[#allocation3 + $0x2f0] sm:$0xff]
  %v2479 = vld [vmem:[#allocation3 + $0x2f8] sm:$0xff]
  %v2480 = vld [vmem:[#allocation3 + $0x300] sm:$0xff]
  %v2481 = vld [vmem:[#allocation3 + $0x308] sm:$0xff]
  %v2482 = vld [vmem:[#allocation3 + $0x310] sm:$0xff]
  %v2483 = vld [vmem:[#allocation3 + $0x318] sm:$0xff]
  %v2484 = vld [vmem:[%s4] sm:$0xf]
  %v2485 = vld [vmem:[%s4 + $0x4] sm:$0xf]
  %v2486 = vld [vmem:[%s4 + $0x8] sm:$0xf]
  %v2487 = vld [vmem:[%s4 + $0xc] sm:$0xf]
  %v2488 = vld [vmem:[%s4 + $0x10] sm:$0xf]
  %v2489 = vld [vmem:[%s4 + $0x14] sm:$0xf]
  %v2490 = vld [vmem:[%s4 + $0x18] sm:$0xf]
  %v2491 = vld [vmem:[%s4 + $0x1c] sm:$0xf]
  %v2492 = vld [vmem:[%s4 + $0x20] sm:$0xf]
  %v2493 = vld [vmem:[%s4 + $0x24] sm:$0xf]
  %v2494 = vld [vmem:[%s4 + $0x28] sm:$0xf]
  %v2495 = vld [vmem:[%s4 + $0x2c] sm:$0xf]
  %v2496 = vld [vmem:[%s4 + $0x30] sm:$0xf]
  %v2497 = vld [vmem:[%s4 + $0x34] sm:$0xf]
  %v2498 = vld [vmem:[%s4 + $0x38] sm:$0xf]
  %v2499 = vld [vmem:[%s4 + $0x3c] sm:$0xf]
  %v2500 = vld [vmem:[%s4 + $0x40] sm:$0xf]
  %v2501 = vld [vmem:[%s4 + $0x44] sm:$0xf]
  %v2502 = vld [vmem:[%s4 + $0x48] sm:$0xf]
  %v2503 = vld [vmem:[%s4 + $0x4c] sm:$0xf]
  %v2504 = vld [vmem:[%s4 + $0x50] sm:$0xf]
  %v2505 = vld [vmem:[%s4 + $0x54] sm:$0xf]
  %v2506 = vld [vmem:[%s4 + $0x58] sm:$0xf]
  %v2507 = vld [vmem:[%s4 + $0x5c] sm:$0xf]
  %v2508 = vld [vmem:[%s4 + $0x60] sm:$0xf]
  %v2509 = vld [vmem:[%s4 + $0x64] sm:$0xf]
  %v2510 = vld [vmem:[%s4 + $0x68] sm:$0xf]
  %v2511 = vld [vmem:[%s4 + $0x6c] sm:$0xf]
  %v2512 = vld [vmem:[%s4 + $0x70] sm:$0xf]
  %v2513 = vld [vmem:[%s4 + $0x74] sm:$0xf]
  %v2514 = vld [vmem:[%s4 + $0x78] sm:$0xf]
  %v2515 = vld [vmem:[%s4 + $0x7c] sm:$0xf]
  %v2516 = vld [vmem:[%s4 + $0x80] sm:$0xf]
  %v2517 = vld [vmem:[%s4 + $0x84] sm:$0xf]
  %v2518 = vld [vmem:[%s4 + $0x88] sm:$0xf]
  %v2519 = vld [vmem:[%s4 + $0x8c] sm:$0xf]
  %v2520 = vld [vmem:[%s4 + $0x90] sm:$0xf]
  %v2521 = vld [vmem:[%s4 + $0x94] sm:$0xf]
  %v2522 = vld [vmem:[%s4 + $0x98] sm:$0xf]
  %v2523 = vld [vmem:[%s4 + $0x9c] sm:$0xf]
  %v2524 = vld [vmem:[%s4 + $0xa0] sm:$0xf]
  %v2525 = vld [vmem:[%s4 + $0xa4] sm:$0xf]
  %v2526 = vld [vmem:[%s4 + $0xa8] sm:$0xf]
  %v2527 = vld [vmem:[%s4 + $0xac] sm:$0xf]
  %v2528 = vld [vmem:[%s4 + $0xb0] sm:$0xf]
  %v2529 = vld [vmem:[%s4 + $0xb4] sm:$0xf]
  %v2530 = vld [vmem:[%s4 + $0xb8] sm:$0xf]
  %v2531 = vld [vmem:[%s4 + $0xbc] sm:$0xf]
  %v2532 = vld [vmem:[%s4 + $0xc0] sm:$0xf]
  %v2533 = vld [vmem:[%s4 + $0xc4] sm:$0xf]
  %v2534 = vld [vmem:[%s4 + $0xc8] sm:$0xf]
  %v2535 = vld [vmem:[%s4 + $0xcc] sm:$0xf]
  %v2536 = vld [vmem:[%s4 + $0xd0] sm:$0xf]
  %v2537 = vld [vmem:[%s4 + $0xd4] sm:$0xf]
  %v2538 = vld [vmem:[%s4 + $0xd8] sm:$0xf]
  %v2539 = vld [vmem:[%s4 + $0xdc] sm:$0xf]
  %v2540 = vld [vmem:[%s4 + $0xe0] sm:$0xf]
  %v2541 = vld [vmem:[%s4 + $0xe4] sm:$0xf]
  %v2542 = vld [vmem:[%s4 + $0xe8] sm:$0xf]
  %v2543 = vld [vmem:[%s4 + $0xec] sm:$0xf]
  %v2544 = vld [vmem:[%s4 + $0xf0] sm:$0xf]
  %v2545 = vld [vmem:[%s4 + $0xf4] sm:$0xf]
  %v2546 = vld [vmem:[%s4 + $0xf8] sm:$0xf]
  %v2547 = vld [vmem:[%s4 + $0xfc] sm:$0xf]
  %v2548 = vld [vmem:[%s4 + $0x100] sm:$0xf]
  %v2549 = vld [vmem:[%s4 + $0x104] sm:$0xf]
  %v2550 = vld [vmem:[%s4 + $0x108] sm:$0xf]
  %v2551 = vld [vmem:[%s4 + $0x10c] sm:$0xf]
  %v2552 = vld [vmem:[%s4 + $0x110] sm:$0xf]
  %v2553 = vld [vmem:[%s4 + $0x114] sm:$0xf]
  %v2554 = vld [vmem:[%s4 + $0x118] sm:$0xf]
  %v2555 = vld [vmem:[%s4 + $0x11c] sm:$0xf]
  %v2556 = vld [vmem:[%s4 + $0x120] sm:$0xf]
  %v2557 = vld [vmem:[%s4 + $0x124] sm:$0xf]
  %v2558 = vld [vmem:[%s4 + $0x128] sm:$0xf]
  %v2559 = vld [vmem:[%s4 + $0x12c] sm:$0xf]
  %v2560 = vld [vmem:[%s4 + $0x130] sm:$0xf]
  %v2561 = vld [vmem:[%s4 + $0x134] sm:$0xf]
  %v2562 = vld [vmem:[%s4 + $0x138] sm:$0xf]
  %v2563 = vld [vmem:[%s4 + $0x13c] sm:$0xf]
  %v2564 = vld [vmem:[%s4 + $0x140] sm:$0xf]
  %v2565 = vld [vmem:[%s4 + $0x144] sm:$0xf]
  %v2566 = vld [vmem:[%s4 + $0x148] sm:$0xf]
  %v2567 = vld [vmem:[%s4 + $0x14c] sm:$0xf]
  %v2568 = vld [vmem:[%s4 + $0x150] sm:$0xf]
  %v2569 = vld [vmem:[%s4 + $0x154] sm:$0xf]
  %v2570 = vld [vmem:[%s4 + $0x158] sm:$0xf]
  %v2571 = vld [vmem:[%s4 + $0x15c] sm:$0xf]
  %v2572 = vld [vmem:[%s4 + $0x160] sm:$0xf]
  %v2573 = vld [vmem:[%s4 + $0x164] sm:$0xf]
  %v2574 = vld [vmem:[%s4 + $0x168] sm:$0xf]
  %v2575 = vld [vmem:[%s4 + $0x16c] sm:$0xf]
  %v2576 = vld [vmem:[%s4 + $0x170] sm:$0xf]
  %v2577 = vld [vmem:[%s4 + $0x174] sm:$0xf]
  %v2578 = vld [vmem:[%s4 + $0x178] sm:$0xf]
  %v2579 = vld [vmem:[%s4 + $0x17c] sm:$0xf]
  %v2580 = vld [vmem:[%s4 + $0x180] sm:$0xf]
  %v2581 = vld [vmem:[%s4 + $0x184] sm:$0xf]
  %v2582 = vld [vmem:[%s4 + $0x188] sm:$0xf]
  %v2583 = vld [vmem:[%s4 + $0x18c] sm:$0xf]
  %v2584 = vld [vmem:[%s4 + $0x190] sm:$0xf]
  %v2585 = vld [vmem:[%s4 + $0x194] sm:$0xf]
  %v2586 = vld [vmem:[%s4 + $0x198] sm:$0xf]
  %v2587 = vld [vmem:[%s4 + $0x19c] sm:$0xf]
  %v2588 = vld [vmem:[%s4 + $0x1a0] sm:$0xf]
  %v2589 = vld [vmem:[%s4 + $0x1a4] sm:$0xf]
  %v2590 = vld [vmem:[%s4 + $0x1a8] sm:$0xf]
  %v2591 = vld [vmem:[%s4 + $0x1ac] sm:$0xf]
  %v2592 = vld [vmem:[%s4 + $0x1b0] sm:$0xf]
  %v2593 = vld [vmem:[%s4 + $0x1b4] sm:$0xf]
  %v2594 = vld [vmem:[%s4 + $0x1b8] sm:$0xf]
  %v2595 = vld [vmem:[%s4 + $0x1bc] sm:$0xf]
  %v2596 = vld [vmem:[%s4 + $0x1c0] sm:$0xf]
  %v2597 = vld [vmem:[%s4 + $0x1c4] sm:$0xf]
  %v2598 = vld [vmem:[%s4 + $0x1c8] sm:$0xf]
  %v2599 = vld [vmem:[%s4 + $0x1cc] sm:$0xf]
  %v2600 = vld [vmem:[%s4 + $0x1d0] sm:$0xf]
  %v2601 = vld [vmem:[%s4 + $0x1d4] sm:$0xf]
  %v2602 = vld [vmem:[%s4 + $0x1d8] sm:$0xf]
  %v2603 = vld [vmem:[%s4 + $0x1dc] sm:$0xf]
  %v2604 = vld [vmem:[%s4 + $0x1e0] sm:$0xf]
  %v2605 = vld [vmem:[%s4 + $0x1e4] sm:$0xf]
  %v2606 = vld [vmem:[%s4 + $0x1e8] sm:$0xf]
  %v2607 = vld [vmem:[%s4 + $0x1ec] sm:$0xf]
  %v2608 = vld [vmem:[%s4 + $0x1f0] sm:$0xf]
  %v2609 = vld [vmem:[%s4 + $0x1f4] sm:$0xf]
  %v2610 = vld [vmem:[%s4 + $0x1f8] sm:$0xf]
  %v2611 = vld [vmem:[%s4 + $0x1fc] sm:$0xf]
  %v2612 = vld [vmem:[%s4 + $0x200] sm:$0xf]
  %v2613 = vld [vmem:[%s4 + $0x204] sm:$0xf]
  %v2614 = vld [vmem:[%s4 + $0x208] sm:$0xf]
  %v2615 = vld [vmem:[%s4 + $0x20c] sm:$0xf]
  %v2616 = vld [vmem:[%s4 + $0x210] sm:$0xf]
  %v2617 = vld [vmem:[%s4 + $0x214] sm:$0xf]
  %v2618 = vld [vmem:[%s4 + $0x218] sm:$0xf]
  %v2619 = vld [vmem:[%s4 + $0x21c] sm:$0xf]
  %v2620 = vld [vmem:[%s4 + $0x220] sm:$0xf]
  %v2621 = vld [vmem:[%s4 + $0x224] sm:$0xf]
  %v2622 = vld [vmem:[%s4 + $0x228] sm:$0xf]
  %v2623 = vld [vmem:[%s4 + $0x22c] sm:$0xf]
  %v2624 = vld [vmem:[%s4 + $0x230] sm:$0xf]
  %v2625 = vld [vmem:[%s4 + $0x234] sm:$0xf]
  %v2626 = vld [vmem:[%s4 + $0x238] sm:$0xf]
  %v2627 = vld [vmem:[%s4 + $0x23c] sm:$0xf]
  %v2628 = vld [vmem:[%s4 + $0x240] sm:$0xf]
  %v2629 = vld [vmem:[%s4 + $0x244] sm:$0xf]
  %v2630 = vld [vmem:[%s4 + $0x248] sm:$0xf]
  %v2631 = vld [vmem:[%s4 + $0x24c] sm:$0xf]
  %v2632 = vld [vmem:[%s4 + $0x250] sm:$0xf]
  %v2633 = vld [vmem:[%s4 + $0x254] sm:$0xf]
  %v2634 = vld [vmem:[%s4 + $0x258] sm:$0xf]
  %v2635 = vld [vmem:[%s4 + $0x25c] sm:$0xf]
  %v2636 = vld [vmem:[%s4 + $0x260] sm:$0xf]
  %v2637 = vld [vmem:[%s4 + $0x264] sm:$0xf]
  %v2638 = vld [vmem:[%s4 + $0x268] sm:$0xf]
  %v2639 = vld [vmem:[%s4 + $0x26c] sm:$0xf]
  %v2640 = vld [vmem:[%s4 + $0x270] sm:$0xf]
  %v2641 = vld [vmem:[%s4 + $0x274] sm:$0xf]
  %v2642 = vld [vmem:[%s4 + $0x278] sm:$0xf]
  %v2643 = vld [vmem:[%s4 + $0x27c] sm:$0xf]
  %v2644 = vld [vmem:[%s5] sm:$0x1]
  %v2646 = vperm.slane %v2644, 0
  %v2748 = vunpack.c.l.b16 %v2384
  %v2749 = vunpack.c.h.b16 %v2384
  %v2750 = vunpack.c.l.b16 %v2385
  %v2751 = vunpack.c.h.b16 %v2385
  %v2752 = vunpack.c.l.b16 %v2386
  %v2753 = vunpack.c.h.b16 %v2386
  %v2754 = vunpack.c.l.b16 %v2387
  %v2755 = vunpack.c.h.b16 %v2387
  %v2756 = vunpack.c.l.b16 %v2388
  %v2757 = vunpack.c.h.b16 %v2388
  %v2758 = vunpack.c.l.b16 %v2389
  %v2759 = vunpack.c.h.b16 %v2389
  %v2760 = vunpack.c.l.b16 %v2390
  %v2761 = vunpack.c.h.b16 %v2390
  %v2762 = vunpack.c.l.b16 %v2391
  %v2763 = vunpack.c.h.b16 %v2391
  %v2764 = vunpack.c.l.b16 %v2392
  %v2765 = vunpack.c.h.b16 %v2392
  %v2766 = vunpack.c.l.b16 %v2393
  %v2767 = vunpack.c.h.b16 %v2393
  %v2768 = vunpack.c.l.b16 %v2394
  %v2769 = vunpack.c.h.b16 %v2394
  %v2770 = vunpack.c.l.b16 %v2395
  %v2771 = vunpack.c.h.b16 %v2395
  %v2772 = vunpack.c.l.b16 %v2396
  %v2773 = vunpack.c.h.b16 %v2396
  %v2774 = vunpack.c.l.b16 %v2397
  %v2775 = vunpack.c.h.b16 %v2397
  %v2776 = vunpack.c.l.b16 %v2398
  %v2777 = vunpack.c.h.b16 %v2398
  %v2778 = vunpack.c.l.b16 %v2399
  %v2779 = vunpack.c.h.b16 %v2399
  %v2780 = vunpack.c.l.b16 %v2400
  %v2781 = vunpack.c.h.b16 %v2400
  %v2782 = vunpack.c.l.b16 %v2401
  %v2783 = vunpack.c.h.b16 %v2401
  %v2784 = vunpack.c.l.b16 %v2402
  %v2785 = vunpack.c.h.b16 %v2402
  %v2786 = vunpack.c.l.b16 %v2403
  %v2787 = vunpack.c.h.b16 %v2403
  %v2788 = vunpack.c.l.b16 %v2404
  %v2789 = vunpack.c.h.b16 %v2404
  %v2790 = vunpack.c.l.b16 %v2405
  %v2791 = vunpack.c.h.b16 %v2405
  %v2792 = vunpack.c.l.b16 %v2406
  %v2793 = vunpack.c.h.b16 %v2406
  %v2794 = vunpack.c.l.b16 %v2407
  %v2795 = vunpack.c.h.b16 %v2407
  %v2796 = vunpack.c.l.b16 %v2408
  %v2797 = vunpack.c.h.b16 %v2408
  %v2798 = vunpack.c.l.b16 %v2409
  %v2799 = vunpack.c.h.b16 %v2409
  %v2800 = vunpack.c.l.b16 %v2410
  %v2801 = vunpack.c.h.b16 %v2410
  %v2802 = vunpack.c.l.b16 %v2411
  %v2803 = vunpack.c.h.b16 %v2411
  %v2804 = vunpack.c.l.b16 %v2412
  %v2805 = vunpack.c.h.b16 %v2412
  %v2806 = vunpack.c.l.b16 %v2413
  %v2807 = vunpack.c.h.b16 %v2413
  %v2808 = vunpack.c.l.b16 %v2414
  %v2809 = vunpack.c.h.b16 %v2414
  %v2810 = vunpack.c.l.b16 %v2415
  %v2811 = vunpack.c.h.b16 %v2415
  %v2812 = vunpack.c.l.b16 %v2416
  %v2813 = vunpack.c.h.b16 %v2416
  %v2814 = vunpack.c.l.b16 %v2417
  %v2815 = vunpack.c.h.b16 %v2417
  %v2816 = vunpack.c.l.b16 %v2418
  %v2817 = vunpack.c.h.b16 %v2418
  %v2818 = vunpack.c.l.b16 %v2419
  %v2819 = vunpack.c.h.b16 %v2419
  %v2820 = vunpack.c.l.b16 %v2420
  %v2821 = vunpack.c.h.b16 %v2420
  %v2822 = vunpack.c.l.b16 %v2421
  %v2823 = vunpack.c.h.b16 %v2421
  %v2824 = vunpack.c.l.b16 %v2422
  %v2825 = vunpack.c.h.b16 %v2422
  %v2826 = vunpack.c.l.b16 %v2423
  %v2827 = vunpack.c.h.b16 %v2423
  %v2828 = vunpack.c.l.b16 %v2424
  %v2829 = vunpack.c.h.b16 %v2424
  %v2830 = vunpack.c.l.b16 %v2425
  %v2831 = vunpack.c.h.b16 %v2425
  %v2832 = vunpack.c.l.b16 %v2426
  %v2833 = vunpack.c.h.b16 %v2426
  %v2834 = vunpack.c.l.b16 %v2427
  %v2835 = vunpack.c.h.b16 %v2427
  %v2836 = vunpack.c.l.b16 %v2428
  %v2837 = vunpack.c.h.b16 %v2428
  %v2838 = vunpack.c.l.b16 %v2429
  %v2839 = vunpack.c.h.b16 %v2429
  %v2840 = vunpack.c.l.b16 %v2430
  %v2841 = vunpack.c.h.b16 %v2430
  %v2842 = vunpack.c.l.b16 %v2431
  %v2843 = vunpack.c.h.b16 %v2431
  %v2844 = vunpack.c.l.b16 %v2432
  %v2845 = vunpack.c.h.b16 %v2432
  %v2846 = vunpack.c.l.b16 %v2433
  %v2847 = vunpack.c.h.b16 %v2433
  %v2848 = vunpack.c.l.b16 %v2434
  %v2849 = vunpack.c.h.b16 %v2434
  %v2850 = vunpack.c.l.b16 %v2435
  %v2851 = vunpack.c.h.b16 %v2435
  %v2852 = vunpack.c.l.b16 %v2436
  %v2853 = vunpack.c.h.b16 %v2436
  %v2854 = vunpack.c.l.b16 %v2437
  %v2855 = vunpack.c.h.b16 %v2437
  %v2856 = vunpack.c.l.b16 %v2438
  %v2857 = vunpack.c.h.b16 %v2438
  %v2858 = vunpack.c.l.b16 %v2439
  %v2859 = vunpack.c.h.b16 %v2439
  %v2860 = vunpack.c.l.b16 %v2440
  %v2861 = vunpack.c.h.b16 %v2440
  %v2862 = vunpack.c.l.b16 %v2441
  %v2863 = vunpack.c.h.b16 %v2441
  %v2864 = vunpack.c.l.b16 %v2442
  %v2865 = vunpack.c.h.b16 %v2442
  %v2866 = vunpack.c.l.b16 %v2443
  %v2867 = vunpack.c.h.b16 %v2443
  %v2868 = vunpack.c.l.b16 %v2444
  %v2869 = vunpack.c.h.b16 %v2444
  %v2870 = vunpack.c.l.b16 %v2445
  %v2871 = vunpack.c.h.b16 %v2445
  %v2872 = vunpack.c.l.b16 %v2446
  %v2873 = vunpack.c.h.b16 %v2446
  %v2874 = vunpack.c.l.b16 %v2447
  %v2875 = vunpack.c.h.b16 %v2447
  %v2876 = vunpack.c.l.b16 %v2448
  %v2877 = vunpack.c.h.b16 %v2448
  %v2878 = vunpack.c.l.b16 %v2449
  %v2879 = vunpack.c.h.b16 %v2449
  %v2880 = vunpack.c.l.b16 %v2450
  %v2881 = vunpack.c.h.b16 %v2450
  %v2882 = vunpack.c.l.b16 %v2451
  %v2883 = vunpack.c.h.b16 %v2451
  %v2884 = vunpack.c.l.b16 %v2452
  %v2885 = vunpack.c.h.b16 %v2452
  %v2886 = vunpack.c.l.b16 %v2453
  %v2887 = vunpack.c.h.b16 %v2453
  %v2888 = vunpack.c.l.b16 %v2454
  %v2889 = vunpack.c.h.b16 %v2454
  %v2890 = vunpack.c.l.b16 %v2455
  %v2891 = vunpack.c.h.b16 %v2455
  %v2892 = vunpack.c.l.b16 %v2456
  %v2893 = vunpack.c.h.b16 %v2456
  %v2894 = vunpack.c.l.b16 %v2457
  %v2895 = vunpack.c.h.b16 %v2457
  %v2896 = vunpack.c.l.b16 %v2458
  %v2897 = vunpack.c.h.b16 %v2458
  %v2898 = vunpack.c.l.b16 %v2459
  %v2899 = vunpack.c.h.b16 %v2459
  %v2900 = vunpack.c.l.b16 %v2460
  %v2901 = vunpack.c.h.b16 %v2460
  %v2902 = vunpack.c.l.b16 %v2461
  %v2903 = vunpack.c.h.b16 %v2461
  %v2904 = vunpack.c.l.b16 %v2462
  %v2905 = vunpack.c.h.b16 %v2462
  %v2906 = vunpack.c.l.b16 %v2463
  %v2907 = vunpack.c.h.b16 %v2463
  %v2908 = vunpack.c.l.b16 %v2464
  %v2909 = vunpack.c.h.b16 %v2464
  %v2910 = vunpack.c.l.b16 %v2465
  %v2911 = vunpack.c.h.b16 %v2465
  %v2912 = vunpack.c.l.b16 %v2466
  %v2913 = vunpack.c.h.b16 %v2466
  %v2914 = vunpack.c.l.b16 %v2467
  %v2915 = vunpack.c.h.b16 %v2467
  %v2916 = vunpack.c.l.b16 %v2468
  %v2917 = vunpack.c.h.b16 %v2468
  %v2918 = vunpack.c.l.b16 %v2469
  %v2919 = vunpack.c.h.b16 %v2469
  %v2920 = vunpack.c.l.b16 %v2470
  %v2921 = vunpack.c.h.b16 %v2470
  %v2922 = vunpack.c.l.b16 %v2471
  %v2923 = vunpack.c.h.b16 %v2471
  %v2924 = vunpack.c.l.b16 %v2472
  %v2925 = vunpack.c.h.b16 %v2472
  %v2926 = vunpack.c.l.b16 %v2473
  %v2927 = vunpack.c.h.b16 %v2473
  %v2928 = vunpack.c.l.b16 %v2474
  %v2929 = vunpack.c.h.b16 %v2474
  %v2930 = vunpack.c.l.b16 %v2475
  %v2931 = vunpack.c.h.b16 %v2475
  %v2932 = vunpack.c.l.b16 %v2476
  %v2933 = vunpack.c.h.b16 %v2476
  %v2934 = vunpack.c.l.b16 %v2477
  %v2935 = vunpack.c.h.b16 %v2477
  %v2936 = vunpack.c.l.b16 %v2478
  %v2937 = vunpack.c.h.b16 %v2478
  %v2938 = vunpack.c.l.b16 %v2479
  %v2939 = vunpack.c.h.b16 %v2479
  %v2940 = vunpack.c.l.b16 %v2480
  %v2941 = vunpack.c.h.b16 %v2480
  %v2942 = vunpack.c.l.b16 %v2481
  %v2943 = vunpack.c.h.b16 %v2481
  %v2944 = vunpack.c.l.b16 %v2482
  %v2945 = vunpack.c.h.b16 %v2482
  %v2946 = vunpack.c.l.b16 %v2483
  %v2947 = vunpack.c.h.b16 %v2483
  %v2948 = vpack.c.b16 %v2758, %v2748
  %v2949 = vpack.c.b16 %v2759, %v2749
  %v2950 = vpack.c.b16 %v2760, %v2750
  %v2951 = vpack.c.b16 %v2761, %v2751
  %v2952 = vpack.c.b16 %v2762, %v2752
  %v2953 = vpack.c.b16 %v2763, %v2753
  %v2954 = vpack.c.b16 %v2764, %v2754
  %v2955 = vpack.c.b16 %v2765, %v2755
  %v2956 = vpack.c.b16 %v2766, %v2756
  %v2957 = vpack.c.b16 %v2767, %v2757
  %v2958 = vpack.c.b16 %v2778, %v2768
  %v2959 = vpack.c.b16 %v2779, %v2769
  %v2960 = vpack.c.b16 %v2780, %v2770
  %v2961 = vpack.c.b16 %v2781, %v2771
  %v2962 = vpack.c.b16 %v2782, %v2772
  %v2963 = vpack.c.b16 %v2783, %v2773
  %v2964 = vpack.c.b16 %v2784, %v2774
  %v2965 = vpack.c.b16 %v2785, %v2775
  %v2966 = vpack.c.b16 %v2786, %v2776
  %v2967 = vpack.c.b16 %v2787, %v2777
  %v2968 = vpack.c.b16 %v2798, %v2788
  %v2969 = vpack.c.b16 %v2799, %v2789
  %v2970 = vpack.c.b16 %v2800, %v2790
  %v2971 = vpack.c.b16 %v2801, %v2791
  %v2972 = vpack.c.b16 %v2802, %v2792
  %v2973 = vpack.c.b16 %v2803, %v2793
  %v2974 = vpack.c.b16 %v2804, %v2794
  %v2975 = vpack.c.b16 %v2805, %v2795
  %v2976 = vpack.c.b16 %v2806, %v2796
  %v2977 = vpack.c.b16 %v2807, %v2797
  %v2978 = vpack.c.b16 %v2818, %v2808
  %v2979 = vpack.c.b16 %v2819, %v2809
  %v2980 = vpack.c.b16 %v2820, %v2810
  %v2981 = vpack.c.b16 %v2821, %v2811
  %v2982 = vpack.c.b16 %v2822, %v2812
  %v2983 = vpack.c.b16 %v2823, %v2813
  %v2984 = vpack.c.b16 %v2824, %v2814
  %v2985 = vpack.c.b16 %v2825, %v2815
  %v2986 = vpack.c.b16 %v2826, %v2816
  %v2987 = vpack.c.b16 %v2827, %v2817
  %v2988 = vpack.c.b16 %v2838, %v2828
  %v2989 = vpack.c.b16 %v2839, %v2829
  %v2990 = vpack.c.b16 %v2840, %v2830
  %v2991 = vpack.c.b16 %v2841, %v2831
  %v2992 = vpack.c.b16 %v2842, %v2832
  %v2993 = vpack.c.b16 %v2843, %v2833
  %v2994 = vpack.c.b16 %v2844, %v2834
  %v2995 = vpack.c.b16 %v2845, %v2835
  %v2996 = vpack.c.b16 %v2846, %v2836
  %v2997 = vpack.c.b16 %v2847, %v2837
  %v2998 = vpack.c.b16 %v2858, %v2848
  %v2999 = vpack.c.b16 %v2859, %v2849
  %v3000 = vpack.c.b16 %v2860, %v2850
  %v3001 = vpack.c.b16 %v2861, %v2851
  %v3002 = vpack.c.b16 %v2862, %v2852
  %v3003 = vpack.c.b16 %v2863, %v2853
  %v3004 = vpack.c.b16 %v2864, %v2854
  %v3005 = vpack.c.b16 %v2865, %v2855
  %v3006 = vpack.c.b16 %v2866, %v2856
  %v3007 = vpack.c.b16 %v2867, %v2857
  %v3008 = vpack.c.b16 %v2878, %v2868
  %v3009 = vpack.c.b16 %v2879, %v2869
  %v3010 = vpack.c.b16 %v2880, %v2870
  %v3011 = vpack.c.b16 %v2881, %v2871
  %v3012 = vpack.c.b16 %v2882, %v2872
  %v3013 = vpack.c.b16 %v2883, %v2873
  %v3014 = vpack.c.b16 %v2884, %v2874
  %v3015 = vpack.c.b16 %v2885, %v2875
  %v3016 = vpack.c.b16 %v2886, %v2876
  %v3017 = vpack.c.b16 %v2887, %v2877
  %v3018 = vpack.c.b16 %v2898, %v2888
  %v3019 = vpack.c.b16 %v2899, %v2889
  %v3020 = vpack.c.b16 %v2900, %v2890
  %v3021 = vpack.c.b16 %v2901, %v2891
  %v3022 = vpack.c.b16 %v2902, %v2892
  %v3023 = vpack.c.b16 %v2903, %v2893
  %v3024 = vpack.c.b16 %v2904, %v2894
  %v3025 = vpack.c.b16 %v2905, %v2895
  %v3026 = vpack.c.b16 %v2906, %v2896
  %v3027 = vpack.c.b16 %v2907, %v2897
  %v3028 = vpack.c.b16 %v2918, %v2908
  %v3029 = vpack.c.b16 %v2919, %v2909
  %v3030 = vpack.c.b16 %v2920, %v2910
  %v3031 = vpack.c.b16 %v2921, %v2911
  %v3032 = vpack.c.b16 %v2922, %v2912
  %v3033 = vpack.c.b16 %v2923, %v2913
  %v3034 = vpack.c.b16 %v2924, %v2914
  %v3035 = vpack.c.b16 %v2925, %v2915
  %v3036 = vpack.c.b16 %v2926, %v2916
  %v3037 = vpack.c.b16 %v2927, %v2917
  %v3038 = vpack.c.b16 %v2938, %v2928
  %v3039 = vpack.c.b16 %v2939, %v2929
  %v3040 = vpack.c.b16 %v2940, %v2930
  %v3041 = vpack.c.b16 %v2941, %v2931
  %v3042 = vpack.c.b16 %v2942, %v2932
  %v3043 = vpack.c.b16 %v2943, %v2933
  %v3044 = vpack.c.b16 %v2944, %v2934
  %v3045 = vpack.c.b16 %v2945, %v2935
  %v3046 = vpack.c.b16 %v2946, %v2936
  %v3047 = vpack.c.b16 %v2947, %v2937
  %v3308 = vunpack.c.l.b16 %v2484
  %v3309 = vunpack.c.l.b16 %v2485
  %v3310 = vunpack.c.l.b16 %v2486
  %v3311 = vunpack.c.l.b16 %v2487
  %v3312 = vunpack.c.l.b16 %v2488
  %v3313 = vunpack.c.l.b16 %v2489
  %v3314 = vunpack.c.l.b16 %v2490
  %v3315 = vunpack.c.l.b16 %v2491
  %v3316 = vunpack.c.l.b16 %v2492
  %v3317 = vunpack.c.l.b16 %v2493
  %v3318 = vunpack.c.l.b16 %v2494
  %v3319 = vunpack.c.l.b16 %v2495
  %v3320 = vunpack.c.l.b16 %v2496
  %v3321 = vunpack.c.l.b16 %v2497
  %v3322 = vunpack.c.l.b16 %v2498
  %v3323 = vunpack.c.l.b16 %v2499
  %v3324 = vunpack.c.l.b16 %v2500
  %v3325 = vunpack.c.l.b16 %v2501
  %v3326 = vunpack.c.l.b16 %v2502
  %v3327 = vunpack.c.l.b16 %v2503
  %v3328 = vunpack.c.l.b16 %v2504
  %v3329 = vunpack.c.l.b16 %v2505
  %v3330 = vunpack.c.l.b16 %v2506
  %v3331 = vunpack.c.l.b16 %v2507
  %v3332 = vunpack.c.l.b16 %v2508
  %v3333 = vunpack.c.l.b16 %v2509
  %v3334 = vunpack.c.l.b16 %v2510
  %v3335 = vunpack.c.l.b16 %v2511
  %v3336 = vunpack.c.l.b16 %v2512
  %v3337 = vunpack.c.l.b16 %v2513
  %v3338 = vunpack.c.l.b16 %v2514
  %v3339 = vunpack.c.l.b16 %v2515
  %v3340 = vunpack.c.l.b16 %v2516
  %v3341 = vunpack.c.l.b16 %v2517
  %v3342 = vunpack.c.l.b16 %v2518
  %v3343 = vunpack.c.l.b16 %v2519
  %v3344 = vunpack.c.l.b16 %v2520
  %v3345 = vunpack.c.l.b16 %v2521
  %v3346 = vunpack.c.l.b16 %v2522
  %v3347 = vunpack.c.l.b16 %v2523
  %v3348 = vunpack.c.l.b16 %v2524
  %v3349 = vunpack.c.l.b16 %v2525
  %v3350 = vunpack.c.l.b16 %v2526
  %v3351 = vunpack.c.l.b16 %v2527
  %v3352 = vunpack.c.l.b16 %v2528
  %v3353 = vunpack.c.l.b16 %v2529
  %v3354 = vunpack.c.l.b16 %v2530
  %v3355 = vunpack.c.l.b16 %v2531
  %v3356 = vunpack.c.l.b16 %v2532
  %v3357 = vunpack.c.l.b16 %v2533
  %v3358 = vunpack.c.l.b16 %v2534
  %v3359 = vunpack.c.l.b16 %v2535
  %v3360 = vunpack.c.l.b16 %v2536
  %v3361 = vunpack.c.l.b16 %v2537
  %v3362 = vunpack.c.l.b16 %v2538
  %v3363 = vunpack.c.l.b16 %v2539
  %v3364 = vunpack.c.l.b16 %v2540
  %v3365 = vunpack.c.l.b16 %v2541
  %v3366 = vunpack.c.l.b16 %v2542
  %v3367 = vunpack.c.l.b16 %v2543
  %v3368 = vunpack.c.l.b16 %v2544
  %v3369 = vunpack.c.l.b16 %v2545
  %v3370 = vunpack.c.l.b16 %v2546
  %v3371 = vunpack.c.l.b16 %v2547
  %v3372 = vunpack.c.l.b16 %v2548
  %v3373 = vunpack.c.l.b16 %v2549
  %v3374 = vunpack.c.l.b16 %v2550
  %v3375 = vunpack.c.l.b16 %v2551
  %v3376 = vunpack.c.l.b16 %v2552
  %v3377 = vunpack.c.l.b16 %v2553
  %v3378 = vunpack.c.l.b16 %v2554
  %v3379 = vunpack.c.l.b16 %v2555
  %v3380 = vunpack.c.l.b16 %v2556
  %v3381 = vunpack.c.l.b16 %v2557
  %v3382 = vunpack.c.l.b16 %v2558
  %v3383 = vunpack.c.l.b16 %v2559
  %v3384 = vunpack.c.l.b16 %v2560
  %v3385 = vunpack.c.l.b16 %v2561
  %v3386 = vunpack.c.l.b16 %v2562
  %v3387 = vunpack.c.l.b16 %v2563
  %v3388 = vunpack.c.l.b16 %v2564
  %v3389 = vunpack.c.l.b16 %v2565
  %v3390 = vunpack.c.l.b16 %v2566
  %v3391 = vunpack.c.l.b16 %v2567
  %v3392 = vunpack.c.l.b16 %v2568
  %v3393 = vunpack.c.l.b16 %v2569
  %v3394 = vunpack.c.l.b16 %v2570
  %v3395 = vunpack.c.l.b16 %v2571
  %v3396 = vunpack.c.l.b16 %v2572
  %v3397 = vunpack.c.l.b16 %v2573
  %v3398 = vunpack.c.l.b16 %v2574
  %v3399 = vunpack.c.l.b16 %v2575
  %v3400 = vunpack.c.l.b16 %v2576
  %v3401 = vunpack.c.l.b16 %v2577
  %v3402 = vunpack.c.l.b16 %v2578
  %v3403 = vunpack.c.l.b16 %v2579
  %v3404 = vunpack.c.l.b16 %v2580
  %v3405 = vunpack.c.l.b16 %v2581
  %v3406 = vunpack.c.l.b16 %v2582
  %v3407 = vunpack.c.l.b16 %v2583
  %v3408 = vunpack.c.l.b16 %v2584
  %v3409 = vunpack.c.l.b16 %v2585
  %v3410 = vunpack.c.l.b16 %v2586
  %v3411 = vunpack.c.l.b16 %v2587
  %v3412 = vunpack.c.l.b16 %v2588
  %v3413 = vunpack.c.l.b16 %v2589
  %v3414 = vunpack.c.l.b16 %v2590
  %v3415 = vunpack.c.l.b16 %v2591
  %v3416 = vunpack.c.l.b16 %v2592
  %v3417 = vunpack.c.l.b16 %v2593
  %v3418 = vunpack.c.l.b16 %v2594
  %v3419 = vunpack.c.l.b16 %v2595
  %v3420 = vunpack.c.l.b16 %v2596
  %v3421 = vunpack.c.l.b16 %v2597
  %v3422 = vunpack.c.l.b16 %v2598
  %v3423 = vunpack.c.l.b16 %v2599
  %v3424 = vunpack.c.l.b16 %v2600
  %v3425 = vunpack.c.l.b16 %v2601
  %v3426 = vunpack.c.l.b16 %v2602
  %v3427 = vunpack.c.l.b16 %v2603
  %v3428 = vunpack.c.l.b16 %v2604
  %v3429 = vunpack.c.l.b16 %v2605
  %v3430 = vunpack.c.l.b16 %v2606
  %v3431 = vunpack.c.l.b16 %v2607
  %v3432 = vunpack.c.l.b16 %v2608
  %v3433 = vunpack.c.l.b16 %v2609
  %v3434 = vunpack.c.l.b16 %v2610
  %v3435 = vunpack.c.l.b16 %v2611
  %v3436 = vunpack.c.l.b16 %v2612
  %v3437 = vunpack.c.l.b16 %v2613
  %v3438 = vunpack.c.l.b16 %v2614
  %v3439 = vunpack.c.l.b16 %v2615
  %v3440 = vunpack.c.l.b16 %v2616
  %v3441 = vunpack.c.l.b16 %v2617
  %v3442 = vunpack.c.l.b16 %v2618
  %v3443 = vunpack.c.l.b16 %v2619
  %v3444 = vunpack.c.l.b16 %v2620
  %v3445 = vunpack.c.l.b16 %v2621
  %v3446 = vunpack.c.l.b16 %v2622
  %v3447 = vunpack.c.l.b16 %v2623
  %v3448 = vunpack.c.l.b16 %v2624
  %v3449 = vunpack.c.l.b16 %v2625
  %v3450 = vunpack.c.l.b16 %v2626
  %v3451 = vunpack.c.l.b16 %v2627
  %v3452 = vunpack.c.l.b16 %v2628
  %v3453 = vunpack.c.l.b16 %v2629
  %v3454 = vunpack.c.l.b16 %v2630
  %v3455 = vunpack.c.l.b16 %v2631
  %v3456 = vunpack.c.l.b16 %v2632
  %v3457 = vunpack.c.l.b16 %v2633
  %v3458 = vunpack.c.l.b16 %v2634
  %v3459 = vunpack.c.l.b16 %v2635
  %v3460 = vunpack.c.l.b16 %v2636
  %v3461 = vunpack.c.l.b16 %v2637
  %v3462 = vunpack.c.l.b16 %v2638
  %v3463 = vunpack.c.l.b16 %v2639
  %v3464 = vunpack.c.l.b16 %v2640
  %v3465 = vunpack.c.l.b16 %v2641
  %v3466 = vunpack.c.l.b16 %v2642
  %v3467 = vunpack.c.l.b16 %v2643
  %v3468 = vpack.c.b16 %v3309, %v3308
  %v3469 = vpack.c.b16 %v3311, %v3310
  %v3470 = vpack.c.b16 %v3313, %v3312
  %v3471 = vpack.c.b16 %v3315, %v3314
  %v3472 = vpack.c.b16 %v3317, %v3316
  %v3473 = vpack.c.b16 %v3319, %v3318
  %v3474 = vpack.c.b16 %v3321, %v3320
  %v3475 = vpack.c.b16 %v3323, %v3322
  %v3476 = vpack.c.b16 %v3325, %v3324
  %v3477 = vpack.c.b16 %v3327, %v3326
  %v3478 = vpack.c.b16 %v3329, %v3328
  %v3479 = vpack.c.b16 %v3331, %v3330
  %v3480 = vpack.c.b16 %v3333, %v3332
  %v3481 = vpack.c.b16 %v3335, %v3334
  %v3482 = vpack.c.b16 %v3337, %v3336
  %v3483 = vpack.c.b16 %v3339, %v3338
  %v3484 = vpack.c.b16 %v3341, %v3340
  %v3485 = vpack.c.b16 %v3343, %v3342
  %v3486 = vpack.c.b16 %v3345, %v3344
  %v3487 = vpack.c.b16 %v3347, %v3346
  %v3488 = vpack.c.b16 %v3349, %v3348
  %v3489 = vpack.c.b16 %v3351, %v3350
  %v3490 = vpack.c.b16 %v3353, %v3352
  %v3491 = vpack.c.b16 %v3355, %v3354
  %v3492 = vpack.c.b16 %v3357, %v3356
  %v3493 = vpack.c.b16 %v3359, %v3358
  %v3494 = vpack.c.b16 %v3361, %v3360
  %v3495 = vpack.c.b16 %v3363, %v3362
  %v3496 = vpack.c.b16 %v3365, %v3364
  %v3497 = vpack.c.b16 %v3367, %v3366
  %v3498 = vpack.c.b16 %v3369, %v3368
  %v3499 = vpack.c.b16 %v3371, %v3370
  %v3500 = vpack.c.b16 %v3373, %v3372
  %v3501 = vpack.c.b16 %v3375, %v3374
  %v3502 = vpack.c.b16 %v3377, %v3376
  %v3503 = vpack.c.b16 %v3379, %v3378
  %v3504 = vpack.c.b16 %v3381, %v3380
  %v3505 = vpack.c.b16 %v3383, %v3382
  %v3506 = vpack.c.b16 %v3385, %v3384
  %v3507 = vpack.c.b16 %v3387, %v3386
  %v3508 = vpack.c.b16 %v3389, %v3388
  %v3509 = vpack.c.b16 %v3391, %v3390
  %v3510 = vpack.c.b16 %v3393, %v3392
  %v3511 = vpack.c.b16 %v3395, %v3394
  %v3512 = vpack.c.b16 %v3397, %v3396
  %v3513 = vpack.c.b16 %v3399, %v3398
  %v3514 = vpack.c.b16 %v3401, %v3400
  %v3515 = vpack.c.b16 %v3403, %v3402
  %v3516 = vpack.c.b16 %v3405, %v3404
  %v3517 = vpack.c.b16 %v3407, %v3406
  %v3518 = vpack.c.b16 %v3409, %v3408
  %v3519 = vpack.c.b16 %v3411, %v3410
  %v3520 = vpack.c.b16 %v3413, %v3412
  %v3521 = vpack.c.b16 %v3415, %v3414
  %v3522 = vpack.c.b16 %v3417, %v3416
  %v3523 = vpack.c.b16 %v3419, %v3418
  %v3524 = vpack.c.b16 %v3421, %v3420
  %v3525 = vpack.c.b16 %v3423, %v3422
  %v3526 = vpack.c.b16 %v3425, %v3424
  %v3527 = vpack.c.b16 %v3427, %v3426
  %v3528 = vpack.c.b16 %v3429, %v3428
  %v3529 = vpack.c.b16 %v3431, %v3430
  %v3530 = vpack.c.b16 %v3433, %v3432
  %v3531 = vpack.c.b16 %v3435, %v3434
  %v3532 = vpack.c.b16 %v3437, %v3436
  %v3533 = vpack.c.b16 %v3439, %v3438
  %v3534 = vpack.c.b16 %v3441, %v3440
  %v3535 = vpack.c.b16 %v3443, %v3442
  %v3536 = vpack.c.b16 %v3445, %v3444
  %v3537 = vpack.c.b16 %v3447, %v3446
  %v3538 = vpack.c.b16 %v3449, %v3448
  %v3539 = vpack.c.b16 %v3451, %v3450
  %v3540 = vpack.c.b16 %v3453, %v3452
  %v3541 = vpack.c.b16 %v3455, %v3454
  %v3542 = vpack.c.b16 %v3457, %v3456
  %v3543 = vpack.c.b16 %v3459, %v3458
  %v3544 = vpack.c.b16 %v3461, %v3460
  %v3545 = vpack.c.b16 %v3463, %v3462
  %v3546 = vpack.c.b16 %v3465, %v3464
  %v3547 = vpack.c.b16 %v3467, %v3466
  %3628 = vmatpush.bf16.msra.mxu0 %v3475
  %3629 = vmatpush.bf16.msra.mxu0 %v3474
  %3630 = vmatpush.bf16.msra.mxu0 %v3473
  %3631 = vmatpush.bf16.msra.mxu0 %v3472
  %3632 = vmatpush.bf16.msra.mxu0 %v3471
  %3633 = vmatpush.bf16.msra.mxu0 %v3470
  %3634 = vmatpush.bf16.msra.mxu0 %v3469
  %3635 = vmatpush.bf16.msra.mxu0 %v3468
  %3636 = vmatmul.bf16.gmra.mxu0 %v2948
  %v3637 = vpop.f32.mrf.mxu0
  %v3638 = vadd.f32 %v2646, %v3637
  %v3639 = vpop.f32.mrf.mxu0
  %v3640 = vadd.f32 %v2646, %v3639
  %3641 = vmatmul.bf16.gmra.mxu0 %v2958
  %v3642 = vpop.f32.mrf.mxu0
  %v3643 = vadd.f32 %v2646, %v3642
  %v3644 = vpop.f32.mrf.mxu0
  %v3645 = vadd.f32 %v2646, %v3644
  %3646 = vmatmul.bf16.gmra.mxu0 %v2968
  %v3647 = vpop.f32.mrf.mxu0
  %v3648 = vadd.f32 %v2646, %v3647
  %v3649 = vpop.f32.mrf.mxu0
  %v3650 = vadd.f32 %v2646, %v3649
  %3651 = vmatmul.bf16.gmra.mxu0 %v2978
  %v3652 = vpop.f32.mrf.mxu0
  %v3653 = vadd.f32 %v2646, %v3652
  %v3654 = vpop.f32.mrf.mxu0
  %v3655 = vadd.f32 %v2646, %v3654
  %3656 = vmatmul.bf16.gmra.mxu0 %v2988
  %v3657 = vpop.f32.mrf.mxu0
  %v3658 = vadd.f32 %v2646, %v3657
  %v3659 = vpop.f32.mrf.mxu0
  %v3660 = vadd.f32 %v2646, %v3659
  %3661 = vmatmul.bf16.gmra.mxu0 %v2998
  %v3662 = vpop.f32.mrf.mxu0
  %v3663 = vadd.f32 %v2646, %v3662
  %v3664 = vpop.f32.mrf.mxu0
  %v3665 = vadd.f32 %v2646, %v3664
  %3666 = vmatmul.bf16.gmra.mxu0 %v3008
  %v3667 = vpop.f32.mrf.mxu0
  %v3668 = vadd.f32 %v2646, %v3667
  %v3669 = vpop.f32.mrf.mxu0
  %v3670 = vadd.f32 %v2646, %v3669
  %3671 = vmatmul.bf16.gmra.mxu0 %v3018
  %v3672 = vpop.f32.mrf.mxu0
  %v3673 = vadd.f32 %v2646, %v3672
  %v3674 = vpop.f32.mrf.mxu0
  %v3675 = vadd.f32 %v2646, %v3674
  %3676 = vmatmul.bf16.gmra.mxu0 %v3028
  %v3677 = vpop.f32.mrf.mxu0
  %v3678 = vadd.f32 %v2646, %v3677
  %v3679 = vpop.f32.mrf.mxu0
  %v3680 = vadd.f32 %v2646, %v3679
  %3681 = vmatmul.bf16.gmra.mxu0 %v3038
  %v3682 = vpop.f32.mrf.mxu0
  %v3683 = vadd.f32 %v2646, %v3682
  %v3684 = vpop.f32.mrf.mxu0
  %v3685 = vadd.f32 %v2646, %v3684
  %3686 = vdwg.mxu0
  %3687 = vmatpush.bf16.msra.mxu0 %v3483
  %3688 = vmatpush.bf16.msra.mxu0 %v3482
  %3689 = vmatpush.bf16.msra.mxu0 %v3481
  %3690 = vmatpush.bf16.msra.mxu0 %v3480
  %3691 = vmatpush.bf16.msra.mxu0 %v3479
  %3692 = vmatpush.bf16.msra.mxu0 %v3478
  %3693 = vmatpush.bf16.msra.mxu0 %v3477
  %3694 = vmatpush.bf16.msra.mxu0 %v3476
  %3695 = vmatmul.bf16.gmra.mxu0 %v2949
  %v3696 = vpop.f32.mrf.mxu0
  %v3697 = vadd.f32 %v3638, %v3696
  %v3698 = vpop.f32.mrf.mxu0
  %v3699 = vadd.f32 %v3640, %v3698
  %3700 = vmatmul.bf16.gmra.mxu0 %v2959
  %v3701 = vpop.f32.mrf.mxu0
  %v3702 = vadd.f32 %v3643, %v3701
  %v3703 = vpop.f32.mrf.mxu0
  %v3704 = vadd.f32 %v3645, %v3703
  %3705 = vmatmul.bf16.gmra.mxu0 %v2969
  %v3706 = vpop.f32.mrf.mxu0
  %v3707 = vadd.f32 %v3648, %v3706
  %v3708 = vpop.f32.mrf.mxu0
  %v3709 = vadd.f32 %v3650, %v3708
  %3710 = vmatmul.bf16.gmra.mxu0 %v2979
  %v3711 = vpop.f32.mrf.mxu0
  %v3712 = vadd.f32 %v3653, %v3711
  %v3713 = vpop.f32.mrf.mxu0
  %v3714 = vadd.f32 %v3655, %v3713
  %3715 = vmatmul.bf16.gmra.mxu0 %v2989
  %v3716 = vpop.f32.mrf.mxu0
  %v3717 = vadd.f32 %v3658, %v3716
  %v3718 = vpop.f32.mrf.mxu0
  %v3719 = vadd.f32 %v3660, %v3718
  %3720 = vmatmul.bf16.gmra.mxu0 %v2999
  %v3721 = vpop.f32.mrf.mxu0
  %v3722 = vadd.f32 %v3663, %v3721
  %v3723 = vpop.f32.mrf.mxu0
  %v3724 = vadd.f32 %v3665, %v3723
  %3725 = vmatmul.bf16.gmra.mxu0 %v3009
  %v3726 = vpop.f32.mrf.mxu0
  %v3727 = vadd.f32 %v3668, %v3726
  %v3728 = vpop.f32.mrf.mxu0
  %v3729 = vadd.f32 %v3670, %v3728
  %3730 = vmatmul.bf16.gmra.mxu0 %v3019
  %v3731 = vpop.f32.mrf.mxu0
  %v3732 = vadd.f32 %v3673, %v3731
  %v3733 = vpop.f32.mrf.mxu0
  %v3734 = vadd.f32 %v3675, %v3733
  %3735 = vmatmul.bf16.gmra.mxu0 %v3029
  %v3736 = vpop.f32.mrf.mxu0
  %v3737 = vadd.f32 %v3678, %v3736
  %v3738 = vpop.f32.mrf.mxu0
  %v3739 = vadd.f32 %v3680, %v3738
  %3740 = vmatmul.bf16.gmra.mxu0 %v3039
  %v3741 = vpop.f32.mrf.mxu0
  %v3742 = vadd.f32 %v3683, %v3741
  %v3743 = vpop.f32.mrf.mxu0
  %v3744 = vadd.f32 %v3685, %v3743
  %3745 = vdwg.mxu0
  %3746 = vmatpush.bf16.msra.mxu0 %v3491
  %3747 = vmatpush.bf16.msra.mxu0 %v3490
  %3748 = vmatpush.bf16.msra.mxu0 %v3489
  %3749 = vmatpush.bf16.msra.mxu0 %v3488
  %3750 = vmatpush.bf16.msra.mxu0 %v3487
  %3751 = vmatpush.bf16.msra.mxu0 %v3486
  %3752 = vmatpush.bf16.msra.mxu0 %v3485
  %3753 = vmatpush.bf16.msra.mxu0 %v3484
  %3754 = vmatmul.bf16.gmra.mxu0 %v2950
  %v3755 = vpop.f32.mrf.mxu0
  %v3756 = vadd.f32 %v3697, %v3755
  %v3757 = vpop.f32.mrf.mxu0
  %v3758 = vadd.f32 %v3699, %v3757
  %3759 = vmatmul.bf16.gmra.mxu0 %v2960
  %v3760 = vpop.f32.mrf.mxu0
  %v3761 = vadd.f32 %v3702, %v3760
  %v3762 = vpop.f32.mrf.mxu0
  %v3763 = vadd.f32 %v3704, %v3762
  %3764 = vmatmul.bf16.gmra.mxu0 %v2970
  %v3765 = vpop.f32.mrf.mxu0
  %v3766 = vadd.f32 %v3707, %v3765
  %v3767 = vpop.f32.mrf.mxu0
  %v3768 = vadd.f32 %v3709, %v3767
  %3769 = vmatmul.bf16.gmra.mxu0 %v2980
  %v3770 = vpop.f32.mrf.mxu0
  %v3771 = vadd.f32 %v3712, %v3770
  %v3772 = vpop.f32.mrf.mxu0
  %v3773 = vadd.f32 %v3714, %v3772
  %3774 = vmatmul.bf16.gmra.mxu0 %v2990
  %v3775 = vpop.f32.mrf.mxu0
  %v3776 = vadd.f32 %v3717, %v3775
  %v3777 = vpop.f32.mrf.mxu0
  %v3778 = vadd.f32 %v3719, %v3777
  %3779 = vmatmul.bf16.gmra.mxu0 %v3000
  %v3780 = vpop.f32.mrf.mxu0
  %v3781 = vadd.f32 %v3722, %v3780
  %v3782 = vpop.f32.mrf.mxu0
  %v3783 = vadd.f32 %v3724, %v3782
  %3784 = vmatmul.bf16.gmra.mxu0 %v3010
  %v3785 = vpop.f32.mrf.mxu0
  %v3786 = vadd.f32 %v3727, %v3785
  %v3787 = vpop.f32.mrf.mxu0
  %v3788 = vadd.f32 %v3729, %v3787
  %3789 = vmatmul.bf16.gmra.mxu0 %v3020
  %v3790 = vpop.f32.mrf.mxu0
  %v3791 = vadd.f32 %v3732, %v3790
  %v3792 = vpop.f32.mrf.mxu0
  %v3793 = vadd.f32 %v3734, %v3792
  %3794 = vmatmul.bf16.gmra.mxu0 %v3030
  %v3795 = vpop.f32.mrf.mxu0
  %v3796 = vadd.f32 %v3737, %v3795
  %v3797 = vpop.f32.mrf.mxu0
  %v3798 = vadd.f32 %v3739, %v3797
  %3799 = vmatmul.bf16.gmra.mxu0 %v3040
  %v3800 = vpop.f32.mrf.mxu0
  %v3801 = vadd.f32 %v3742, %v3800
  %v3802 = vpop.f32.mrf.mxu0
  %v3803 = vadd.f32 %v3744, %v3802
  %3804 = vdwg.mxu0
  %3805 = vmatpush.bf16.msra.mxu0 %v3499
  %3806 = vmatpush.bf16.msra.mxu0 %v3498
  %3807 = vmatpush.bf16.msra.mxu0 %v3497
  %3808 = vmatpush.bf16.msra.mxu0 %v3496
  %3809 = vmatpush.bf16.msra.mxu0 %v3495
  %3810 = vmatpush.bf16.msra.mxu0 %v3494
  %3811 = vmatpush.bf16.msra.mxu0 %v3493
  %3812 = vmatpush.bf16.msra.mxu0 %v3492
  %3813 = vmatmul.bf16.gmra.mxu0 %v2951
  %v3814 = vpop.f32.mrf.mxu0
  %v3815 = vadd.f32 %v3756, %v3814
  %v3816 = vpop.f32.mrf.mxu0
  %v3817 = vadd.f32 %v3758, %v3816
  %3818 = vmatmul.bf16.gmra.mxu0 %v2961
  %v3819 = vpop.f32.mrf.mxu0
  %v3820 = vadd.f32 %v3761, %v3819
  %v3821 = vpop.f32.mrf.mxu0
  %v3822 = vadd.f32 %v3763, %v3821
  %3823 = vmatmul.bf16.gmra.mxu0 %v2971
  %v3824 = vpop.f32.mrf.mxu0
  %v3825 = vadd.f32 %v3766, %v3824
  %v3826 = vpop.f32.mrf.mxu0
  %v3827 = vadd.f32 %v3768, %v3826
  %3828 = vmatmul.bf16.gmra.mxu0 %v2981
  %v3829 = vpop.f32.mrf.mxu0
  %v3830 = vadd.f32 %v3771, %v3829
  %v3831 = vpop.f32.mrf.mxu0
  %v3832 = vadd.f32 %v3773, %v3831
  %3833 = vmatmul.bf16.gmra.mxu0 %v2991
  %v3834 = vpop.f32.mrf.mxu0
  %v3835 = vadd.f32 %v3776, %v3834
  %v3836 = vpop.f32.mrf.mxu0
  %v3837 = vadd.f32 %v3778, %v3836
  %3838 = vmatmul.bf16.gmra.mxu0 %v3001
  %v3839 = vpop.f32.mrf.mxu0
  %v3840 = vadd.f32 %v3781, %v3839
  %v3841 = vpop.f32.mrf.mxu0
  %v3842 = vadd.f32 %v3783, %v3841
  %3843 = vmatmul.bf16.gmra.mxu0 %v3011
  %v3844 = vpop.f32.mrf.mxu0
  %v3845 = vadd.f32 %v3786, %v3844
  %v3846 = vpop.f32.mrf.mxu0
  %v3847 = vadd.f32 %v3788, %v3846
  %3848 = vmatmul.bf16.gmra.mxu0 %v3021
  %v3849 = vpop.f32.mrf.mxu0
  %v3850 = vadd.f32 %v3791, %v3849
  %v3851 = vpop.f32.mrf.mxu0
  %v3852 = vadd.f32 %v3793, %v3851
  %3853 = vmatmul.bf16.gmra.mxu0 %v3031
  %v3854 = vpop.f32.mrf.mxu0
  %v3855 = vadd.f32 %v3796, %v3854
  %v3856 = vpop.f32.mrf.mxu0
  %v3857 = vadd.f32 %v3798, %v3856
  %3858 = vmatmul.bf16.gmra.mxu0 %v3041
  %v3859 = vpop.f32.mrf.mxu0
  %v3860 = vadd.f32 %v3801, %v3859
  %v3861 = vpop.f32.mrf.mxu0
  %v3862 = vadd.f32 %v3803, %v3861
  %3863 = vdwg.mxu0
  %3864 = vmatpush.bf16.msra.mxu0 %v3507
  %3865 = vmatpush.bf16.msra.mxu0 %v3506
  %3866 = vmatpush.bf16.msra.mxu0 %v3505
  %3867 = vmatpush.bf16.msra.mxu0 %v3504
  %3868 = vmatpush.bf16.msra.mxu0 %v3503
  %3869 = vmatpush.bf16.msra.mxu0 %v3502
  %3870 = vmatpush.bf16.msra.mxu0 %v3501
  %3871 = vmatpush.bf16.msra.mxu0 %v3500
  %3872 = vmatmul.bf16.gmra.mxu0 %v2952
  %v3873 = vpop.f32.mrf.mxu0
  %v3874 = vadd.f32 %v3815, %v3873
  %v3875 = vpop.f32.mrf.mxu0
  %v3876 = vadd.f32 %v3817, %v3875
  %3877 = vmatmul.bf16.gmra.mxu0 %v2962
  %v3878 = vpop.f32.mrf.mxu0
  %v3879 = vadd.f32 %v3820, %v3878
  %v3880 = vpop.f32.mrf.mxu0
  %v3881 = vadd.f32 %v3822, %v3880
  %3882 = vmatmul.bf16.gmra.mxu0 %v2972
  %v3883 = vpop.f32.mrf.mxu0
  %v3884 = vadd.f32 %v3825, %v3883
  %v3885 = vpop.f32.mrf.mxu0
  %v3886 = vadd.f32 %v3827, %v3885
  %3887 = vmatmul.bf16.gmra.mxu0 %v2982
  %v3888 = vpop.f32.mrf.mxu0
  %v3889 = vadd.f32 %v3830, %v3888
  %v3890 = vpop.f32.mrf.mxu0
  %v3891 = vadd.f32 %v3832, %v3890
  %3892 = vmatmul.bf16.gmra.mxu0 %v2992
  %v3893 = vpop.f32.mrf.mxu0
  %v3894 = vadd.f32 %v3835, %v3893
  %v3895 = vpop.f32.mrf.mxu0
  %v3896 = vadd.f32 %v3837, %v3895
  %3897 = vmatmul.bf16.gmra.mxu0 %v3002
  %v3898 = vpop.f32.mrf.mxu0
  %v3899 = vadd.f32 %v3840, %v3898
  %v3900 = vpop.f32.mrf.mxu0
  %v3901 = vadd.f32 %v3842, %v3900
  %3902 = vmatmul.bf16.gmra.mxu0 %v3012
  %v3903 = vpop.f32.mrf.mxu0
  %v3904 = vadd.f32 %v3845, %v3903
  %v3905 = vpop.f32.mrf.mxu0
  %v3906 = vadd.f32 %v3847, %v3905
  %3907 = vmatmul.bf16.gmra.mxu0 %v3022
  %v3908 = vpop.f32.mrf.mxu0
  %v3909 = vadd.f32 %v3850, %v3908
  %v3910 = vpop.f32.mrf.mxu0
  %v3911 = vadd.f32 %v3852, %v3910
  %3912 = vmatmul.bf16.gmra.mxu0 %v3032
  %v3913 = vpop.f32.mrf.mxu0
  %v3914 = vadd.f32 %v3855, %v3913
  %v3915 = vpop.f32.mrf.mxu0
  %v3916 = vadd.f32 %v3857, %v3915
  %3917 = vmatmul.bf16.gmra.mxu0 %v3042
  %v3918 = vpop.f32.mrf.mxu0
  %v3919 = vadd.f32 %v3860, %v3918
  %v3920 = vpop.f32.mrf.mxu0
  %v3921 = vadd.f32 %v3862, %v3920
  %3922 = vdwg.mxu0
  %3923 = vmatpush.bf16.msra.mxu0 %v3515
  %3924 = vmatpush.bf16.msra.mxu0 %v3514
  %3925 = vmatpush.bf16.msra.mxu0 %v3513
  %3926 = vmatpush.bf16.msra.mxu0 %v3512
  %3927 = vmatpush.bf16.msra.mxu0 %v3511
  %3928 = vmatpush.bf16.msra.mxu0 %v3510
  %3929 = vmatpush.bf16.msra.mxu0 %v3509
  %3930 = vmatpush.bf16.msra.mxu0 %v3508
  %3931 = vmatmul.bf16.gmra.mxu0 %v2953
  %v3932 = vpop.f32.mrf.mxu0
  %v3933 = vadd.f32 %v3874, %v3932
  %v3934 = vpop.f32.mrf.mxu0
  %v3935 = vadd.f32 %v3876, %v3934
  %3936 = vmatmul.bf16.gmra.mxu0 %v2963
  %v3937 = vpop.f32.mrf.mxu0
  %v3938 = vadd.f32 %v3879, %v3937
  %v3939 = vpop.f32.mrf.mxu0
  %v3940 = vadd.f32 %v3881, %v3939
  %3941 = vmatmul.bf16.gmra.mxu0 %v2973
  %v3942 = vpop.f32.mrf.mxu0
  %v3943 = vadd.f32 %v3884, %v3942
  %v3944 = vpop.f32.mrf.mxu0
  %v3945 = vadd.f32 %v3886, %v3944
  %3946 = vmatmul.bf16.gmra.mxu0 %v2983
  %v3947 = vpop.f32.mrf.mxu0
  %v3948 = vadd.f32 %v3889, %v3947
  %v3949 = vpop.f32.mrf.mxu0
  %v3950 = vadd.f32 %v3891, %v3949
  %3951 = vmatmul.bf16.gmra.mxu0 %v2993
  %v3952 = vpop.f32.mrf.mxu0
  %v3953 = vadd.f32 %v3894, %v3952
  %v3954 = vpop.f32.mrf.mxu0
  %v3955 = vadd.f32 %v3896, %v3954
  %3956 = vmatmul.bf16.gmra.mxu0 %v3003
  %v3957 = vpop.f32.mrf.mxu0
  %v3958 = vadd.f32 %v3899, %v3957
  %v3959 = vpop.f32.mrf.mxu0
  %v3960 = vadd.f32 %v3901, %v3959
  %3961 = vmatmul.bf16.gmra.mxu0 %v3013
  %v3962 = vpop.f32.mrf.mxu0
  %v3963 = vadd.f32 %v3904, %v3962
  %v3964 = vpop.f32.mrf.mxu0
  %v3965 = vadd.f32 %v3906, %v3964
  %3966 = vmatmul.bf16.gmra.mxu0 %v3023
  %v3967 = vpop.f32.mrf.mxu0
  %v3968 = vadd.f32 %v3909, %v3967
  %v3969 = vpop.f32.mrf.mxu0
  %v3970 = vadd.f32 %v3911, %v3969
  %3971 = vmatmul.bf16.gmra.mxu0 %v3033
  %v3972 = vpop.f32.mrf.mxu0
  %v3973 = vadd.f32 %v3914, %v3972
  %v3974 = vpop.f32.mrf.mxu0
  %v3975 = vadd.f32 %v3916, %v3974
  %3976 = vmatmul.bf16.gmra.mxu0 %v3043
  %v3977 = vpop.f32.mrf.mxu0
  %v3978 = vadd.f32 %v3919, %v3977
  %v3979 = vpop.f32.mrf.mxu0
  %v3980 = vadd.f32 %v3921, %v3979
  %3981 = vdwg.mxu0
  %3982 = vmatpush.bf16.msra.mxu0 %v3523
  %3983 = vmatpush.bf16.msra.mxu0 %v3522
  %3984 = vmatpush.bf16.msra.mxu0 %v3521
  %3985 = vmatpush.bf16.msra.mxu0 %v3520
  %3986 = vmatpush.bf16.msra.mxu0 %v3519
  %3987 = vmatpush.bf16.msra.mxu0 %v3518
  %3988 = vmatpush.bf16.msra.mxu0 %v3517
  %3989 = vmatpush.bf16.msra.mxu0 %v3516
  %3990 = vmatmul.bf16.gmra.mxu0 %v2954
  %v3991 = vpop.f32.mrf.mxu0
  %v3992 = vadd.f32 %v3933, %v3991
  %v3993 = vpop.f32.mrf.mxu0
  %v3994 = vadd.f32 %v3935, %v3993
  %3995 = vmatmul.bf16.gmra.mxu0 %v2964
  %v3996 = vpop.f32.mrf.mxu0
  %v3997 = vadd.f32 %v3938, %v3996
  %v3998 = vpop.f32.mrf.mxu0
  %v3999 = vadd.f32 %v3940, %v3998
  %4000 = vmatmul.bf16.gmra.mxu0 %v2974
  %v4001 = vpop.f32.mrf.mxu0
  %v4002 = vadd.f32 %v3943, %v4001
  %v4003 = vpop.f32.mrf.mxu0
  %v4004 = vadd.f32 %v3945, %v4003
  %4005 = vmatmul.bf16.gmra.mxu0 %v2984
  %v4006 = vpop.f32.mrf.mxu0
  %v4007 = vadd.f32 %v3948, %v4006
  %v4008 = vpop.f32.mrf.mxu0
  %v4009 = vadd.f32 %v3950, %v4008
  %4010 = vmatmul.bf16.gmra.mxu0 %v2994
  %v4011 = vpop.f32.mrf.mxu0
  %v4012 = vadd.f32 %v3953, %v4011
  %v4013 = vpop.f32.mrf.mxu0
  %v4014 = vadd.f32 %v3955, %v4013
  %4015 = vmatmul.bf16.gmra.mxu0 %v3004
  %v4016 = vpop.f32.mrf.mxu0
  %v4017 = vadd.f32 %v3958, %v4016
  %v4018 = vpop.f32.mrf.mxu0
  %v4019 = vadd.f32 %v3960, %v4018
  %4020 = vmatmul.bf16.gmra.mxu0 %v3014
  %v4021 = vpop.f32.mrf.mxu0
  %v4022 = vadd.f32 %v3963, %v4021
  %v4023 = vpop.f32.mrf.mxu0
  %v4024 = vadd.f32 %v3965, %v4023
  %4025 = vmatmul.bf16.gmra.mxu0 %v3024
  %v4026 = vpop.f32.mrf.mxu0
  %v4027 = vadd.f32 %v3968, %v4026
  %v4028 = vpop.f32.mrf.mxu0
  %v4029 = vadd.f32 %v3970, %v4028
  %4030 = vmatmul.bf16.gmra.mxu0 %v3034
  %v4031 = vpop.f32.mrf.mxu0
  %v4032 = vadd.f32 %v3973, %v4031
  %v4033 = vpop.f32.mrf.mxu0
  %v4034 = vadd.f32 %v3975, %v4033
  %4035 = vmatmul.bf16.gmra.mxu0 %v3044
  %v4036 = vpop.f32.mrf.mxu0
  %v4037 = vadd.f32 %v3978, %v4036
  %v4038 = vpop.f32.mrf.mxu0
  %v4039 = vadd.f32 %v3980, %v4038
  %4040 = vdwg.mxu0
  %4041 = vmatpush.bf16.msra.mxu0 %v3531
  %4042 = vmatpush.bf16.msra.mxu0 %v3530
  %4043 = vmatpush.bf16.msra.mxu0 %v3529
  %4044 = vmatpush.bf16.msra.mxu0 %v3528
  %4045 = vmatpush.bf16.msra.mxu0 %v3527
  %4046 = vmatpush.bf16.msra.mxu0 %v3526
  %4047 = vmatpush.bf16.msra.mxu0 %v3525
  %4048 = vmatpush.bf16.msra.mxu0 %v3524
  %4049 = vmatmul.bf16.gmra.mxu0 %v2955
  %v4050 = vpop.f32.mrf.mxu0
  %v4051 = vadd.f32 %v3992, %v4050
  %v4052 = vpop.f32.mrf.mxu0
  %v4053 = vadd.f32 %v3994, %v4052
  %4054 = vmatmul.bf16.gmra.mxu0 %v2965
  %v4055 = vpop.f32.mrf.mxu0
  %v4056 = vadd.f32 %v3997, %v4055
  %v4057 = vpop.f32.mrf.mxu0
  %v4058 = vadd.f32 %v3999, %v4057
  %4059 = vmatmul.bf16.gmra.mxu0 %v2975
  %v4060 = vpop.f32.mrf.mxu0
  %v4061 = vadd.f32 %v4002, %v4060
  %v4062 = vpop.f32.mrf.mxu0
  %v4063 = vadd.f32 %v4004, %v4062
  %4064 = vmatmul.bf16.gmra.mxu0 %v2985
  %v4065 = vpop.f32.mrf.mxu0
  %v4066 = vadd.f32 %v4007, %v4065
  %v4067 = vpop.f32.mrf.mxu0
  %v4068 = vadd.f32 %v4009, %v4067
  %4069 = vmatmul.bf16.gmra.mxu0 %v2995
  %v4070 = vpop.f32.mrf.mxu0
  %v4071 = vadd.f32 %v4012, %v4070
  %v4072 = vpop.f32.mrf.mxu0
  %v4073 = vadd.f32 %v4014, %v4072
  %4074 = vmatmul.bf16.gmra.mxu0 %v3005
  %v4075 = vpop.f32.mrf.mxu0
  %v4076 = vadd.f32 %v4017, %v4075
  %v4077 = vpop.f32.mrf.mxu0
  %v4078 = vadd.f32 %v4019, %v4077
  %4079 = vmatmul.bf16.gmra.mxu0 %v3015
  %v4080 = vpop.f32.mrf.mxu0
  %v4081 = vadd.f32 %v4022, %v4080
  %v4082 = vpop.f32.mrf.mxu0
  %v4083 = vadd.f32 %v4024, %v4082
  %4084 = vmatmul.bf16.gmra.mxu0 %v3025
  %v4085 = vpop.f32.mrf.mxu0
  %v4086 = vadd.f32 %v4027, %v4085
  %v4087 = vpop.f32.mrf.mxu0
  %v4088 = vadd.f32 %v4029, %v4087
  %4089 = vmatmul.bf16.gmra.mxu0 %v3035
  %v4090 = vpop.f32.mrf.mxu0
  %v4091 = vadd.f32 %v4032, %v4090
  %v4092 = vpop.f32.mrf.mxu0
  %v4093 = vadd.f32 %v4034, %v4092
  %4094 = vmatmul.bf16.gmra.mxu0 %v3045
  %v4095 = vpop.f32.mrf.mxu0
  %v4096 = vadd.f32 %v4037, %v4095
  %v4097 = vpop.f32.mrf.mxu0
  %v4098 = vadd.f32 %v4039, %v4097
  %4099 = vdwg.mxu0
  %4100 = vmatpush.bf16.msra.mxu0 %v3539
  %4101 = vmatpush.bf16.msra.mxu0 %v3538
  %4102 = vmatpush.bf16.msra.mxu0 %v3537
  %4103 = vmatpush.bf16.msra.mxu0 %v3536
  %4104 = vmatpush.bf16.msra.mxu0 %v3535
  %4105 = vmatpush.bf16.msra.mxu0 %v3534
  %4106 = vmatpush.bf16.msra.mxu0 %v3533
  %4107 = vmatpush.bf16.msra.mxu0 %v3532
  %4108 = vmatmul.bf16.gmra.mxu0 %v2956
  %v4109 = vpop.f32.mrf.mxu0
  %v4110 = vadd.f32 %v4051, %v4109
  %v4111 = vpop.f32.mrf.mxu0
  %v4112 = vadd.f32 %v4053, %v4111
  %4113 = vmatmul.bf16.gmra.mxu0 %v2966
  %v4114 = vpop.f32.mrf.mxu0
  %v4115 = vadd.f32 %v4056, %v4114
  %v4116 = vpop.f32.mrf.mxu0
  %v4117 = vadd.f32 %v4058, %v4116
  %4118 = vmatmul.bf16.gmra.mxu0 %v2976
  %v4119 = vpop.f32.mrf.mxu0
  %v4120 = vadd.f32 %v4061, %v4119
  %v4121 = vpop.f32.mrf.mxu0
  %v4122 = vadd.f32 %v4063, %v4121
  %4123 = vmatmul.bf16.gmra.mxu0 %v2986
  %v4124 = vpop.f32.mrf.mxu0
  %v4125 = vadd.f32 %v4066, %v4124
  %v4126 = vpop.f32.mrf.mxu0
  %v4127 = vadd.f32 %v4068, %v4126
  %4128 = vmatmul.bf16.gmra.mxu0 %v2996
  %v4129 = vpop.f32.mrf.mxu0
  %v4130 = vadd.f32 %v4071, %v4129
  %v4131 = vpop.f32.mrf.mxu0
  %v4132 = vadd.f32 %v4073, %v4131
  %4133 = vmatmul.bf16.gmra.mxu0 %v3006
  %v4134 = vpop.f32.mrf.mxu0
  %v4135 = vadd.f32 %v4076, %v4134
  %v4136 = vpop.f32.mrf.mxu0
  %v4137 = vadd.f32 %v4078, %v4136
  %4138 = vmatmul.bf16.gmra.mxu0 %v3016
  %v4139 = vpop.f32.mrf.mxu0
  %v4140 = vadd.f32 %v4081, %v4139
  %v4141 = vpop.f32.mrf.mxu0
  %v4142 = vadd.f32 %v4083, %v4141
  %4143 = vmatmul.bf16.gmra.mxu0 %v3026
  %v4144 = vpop.f32.mrf.mxu0
  %v4145 = vadd.f32 %v4086, %v4144
  %v4146 = vpop.f32.mrf.mxu0
  %v4147 = vadd.f32 %v4088, %v4146
  %4148 = vmatmul.bf16.gmra.mxu0 %v3036
  %v4149 = vpop.f32.mrf.mxu0
  %v4150 = vadd.f32 %v4091, %v4149
  %v4151 = vpop.f32.mrf.mxu0
  %v4152 = vadd.f32 %v4093, %v4151
  %4153 = vmatmul.bf16.gmra.mxu0 %v3046
  %v4154 = vpop.f32.mrf.mxu0
  %v4155 = vadd.f32 %v4096, %v4154
  %v4156 = vpop.f32.mrf.mxu0
  %v4157 = vadd.f32 %v4098, %v4156
  %4158 = vdwg.mxu0
  %4159 = vmatpush.bf16.msra.mxu0 %v3547
  %4160 = vmatpush.bf16.msra.mxu0 %v3546
  %4161 = vmatpush.bf16.msra.mxu0 %v3545
  %4162 = vmatpush.bf16.msra.mxu0 %v3544
  %4163 = vmatpush.bf16.msra.mxu0 %v3543
  %4164 = vmatpush.bf16.msra.mxu0 %v3542
  %4165 = vmatpush.bf16.msra.mxu0 %v3541
  %4166 = vmatpush.bf16.msra.mxu0 %v3540
  %4167 = vmatmul.bf16.gmra.mxu0 %v2957
  %v4168 = vpop.f32.mrf.mxu0
  %v4169 = vadd.f32 %v4110, %v4168
  %v4170 = vpop.f32.mrf.mxu0
  %v4171 = vadd.f32 %v4112, %v4170
  %4172 = vmatmul.bf16.gmra.mxu0 %v2967
  %v4173 = vpop.f32.mrf.mxu0
  %v4174 = vadd.f32 %v4115, %v4173
  %v4175 = vpop.f32.mrf.mxu0
  %v4176 = vadd.f32 %v4117, %v4175
  %4177 = vmatmul.bf16.gmra.mxu0 %v2977
  %v4178 = vpop.f32.mrf.mxu0
  %v4179 = vadd.f32 %v4120, %v4178
  %v4180 = vpop.f32.mrf.mxu0
  %v4181 = vadd.f32 %v4122, %v4180
  %4182 = vmatmul.bf16.gmra.mxu0 %v2987
  %v4183 = vpop.f32.mrf.mxu0
  %v4184 = vadd.f32 %v4125, %v4183
  %v4185 = vpop.f32.mrf.mxu0
  %v4186 = vadd.f32 %v4127, %v4185
  %4187 = vmatmul.bf16.gmra.mxu0 %v2997
  %v4188 = vpop.f32.mrf.mxu0
  %v4189 = vadd.f32 %v4130, %v4188
  %v4190 = vpop.f32.mrf.mxu0
  %v4191 = vadd.f32 %v4132, %v4190
  %4192 = vmatmul.bf16.gmra.mxu0 %v3007
  %v4193 = vpop.f32.mrf.mxu0
  %v4194 = vadd.f32 %v4135, %v4193
  %v4195 = vpop.f32.mrf.mxu0
  %v4196 = vadd.f32 %v4137, %v4195
  %4197 = vmatmul.bf16.gmra.mxu0 %v3017
  %v4198 = vpop.f32.mrf.mxu0
  %v4199 = vadd.f32 %v4140, %v4198
  %v4200 = vpop.f32.mrf.mxu0
  %v4201 = vadd.f32 %v4142, %v4200
  %4202 = vmatmul.bf16.gmra.mxu0 %v3027
  %v4203 = vpop.f32.mrf.mxu0
  %v4204 = vadd.f32 %v4145, %v4203
  %v4205 = vpop.f32.mrf.mxu0
  %v4206 = vadd.f32 %v4147, %v4205
  %4207 = vmatmul.bf16.gmra.mxu0 %v3037
  %v4208 = vpop.f32.mrf.mxu0
  %v4209 = vadd.f32 %v4150, %v4208
  %v4210 = vpop.f32.mrf.mxu0
  %v4211 = vadd.f32 %v4152, %v4210
  %4212 = vmatmul.bf16.gmra.mxu0 %v3047
  %v4213 = vpop.f32.mrf.mxu0
  %v4214 = vadd.f32 %v4155, %v4213
  %v4215 = vpop.f32.mrf.mxu0
  %v4216 = vadd.f32 %v4157, %v4215
  %4217 = vdwg.mxu0
  %4218 = vst [vmem:[#allocation4] sm:$0xff] %v4169
  %4219 = vst [vmem:[#allocation4 + $0x8] sm:$0xff] %v4171
  %4220 = vst [vmem:[#allocation4 + $0x10] sm:$0xff] %v4174
  %4221 = vst [vmem:[#allocation4 + $0x18] sm:$0xff] %v4176
  %4222 = vst [vmem:[#allocation4 + $0x20] sm:$0xff] %v4179
  %4223 = vst [vmem:[#allocation4 + $0x28] sm:$0xff] %v4181
  %4224 = vst [vmem:[#allocation4 + $0x30] sm:$0xff] %v4184
  %4225 = vst [vmem:[#allocation4 + $0x38] sm:$0xff] %v4186
  %4226 = vst [vmem:[#allocation4 + $0x40] sm:$0xff] %v4189
  %4227 = vst [vmem:[#allocation4 + $0x48] sm:$0xff] %v4191
  %4228 = vst [vmem:[#allocation4 + $0x50] sm:$0xff] %v4194
  %4229 = vst [vmem:[#allocation4 + $0x58] sm:$0xff] %v4196
  %4230 = vst [vmem:[#allocation4 + $0x60] sm:$0xff] %v4199
  %4231 = vst [vmem:[#allocation4 + $0x68] sm:$0xff] %v4201
  %4232 = vst [vmem:[#allocation4 + $0x70] sm:$0xff] %v4204
  %4233 = vst [vmem:[#allocation4 + $0x78] sm:$0xff] %v4206
  %4234 = vst [vmem:[#allocation4 + $0x80] sm:$0xff] %v4209
  %4235 = vst [vmem:[#allocation4 + $0x88] sm:$0xff] %v4211
  %4236 = vst [vmem:[#allocation4 + $0x90] sm:$0xff] %v4214
  %4237 = vst [vmem:[#allocation4 + $0x98] sm:$0xff] %v4216
  %v4238 = vld [vmem:[#allocation4] ss:$10 sm:$0xff]
  %s4239 = scalar_lea.vmem [#allocation4], 80
  %v4240 = vld [vmem:[%s4239] ss:$10 sm:$0xff]
  %v4241 = vpack.c.bf16 %v4238, %v4238
  %v4242 = vpack.c.bf16 %v4240, %v4240
  %4243 = vst [vmem:[#allocation5] sm:$0xf] %v4241
  %4244 = vst [vmem:[#allocation5 + $0x24] sm:$0xf] %v4242
  %s4245 = scalar_lea.vmem [#allocation4], 1
  %v4246 = vld [vmem:[%s4245] ss:$10 sm:$0xff]
  %s4247 = scalar_lea.vmem [#allocation4], 81
  %v4248 = vld [vmem:[%s4247] ss:$10 sm:$0xff]
  %v4249 = vpack.c.bf16 %v4246, %v4246
  %v4250 = vpack.c.bf16 %v4248, %v4248
  %4251 = vst [vmem:[#allocation5 + $0x4] sm:$0xf] %v4249
  %4252 = vst [vmem:[#allocation5 + $0x28] sm:$0xf] %v4250
  %s4253 = scalar_lea.vmem [#allocation4], 2
  %v4254 = vld [vmem:[%s4253] ss:$10 sm:$0xff]
  %s4255 = scalar_lea.vmem [#allocation4], 82
  %v4256 = vld [vmem:[%s4255] ss:$10 sm:$0xff]
  %v4257 = vpack.c.bf16 %v4254, %v4254
  %v4258 = vpack.c.bf16 %v4256, %v4256
  %4259 = vst [vmem:[#allocation5 + $0x8] sm:$0xf] %v4257
  %4260 = vst [vmem:[#allocation5 + $0x2c] sm:$0xf] %v4258
  %s4261 = scalar_lea.vmem [#allocation4], 3
  %v4262 = vld [vmem:[%s4261] ss:$10 sm:$0xff]
  %s4263 = scalar_lea.vmem [#allocation4], 83
  %v4264 = vld [vmem:[%s4263] ss:$10 sm:$0xff]
  %v4265 = vpack.c.bf16 %v4262, %v4262
  %v4266 = vpack.c.bf16 %v4264, %v4264
  %4267 = vst [vmem:[#allocation5 + $0xc] sm:$0xf] %v4265
  %4268 = vst [vmem:[#allocation5 + $0x30] sm:$0xf] %v4266
  %s4269 = scalar_lea.vmem [#allocation4], 4
  %v4270 = vld [vmem:[%s4269] ss:$10 sm:$0xff]
  %s4271 = scalar_lea.vmem [#allocation4], 84
  %v4272 = vld [vmem:[%s4271] ss:$10 sm:$0xff]
  %v4273 = vpack.c.bf16 %v4270, %v4270
  %v4274 = vpack.c.bf16 %v4272, %v4272
  %4275 = vst [vmem:[#allocation5 + $0x10] sm:$0xf] %v4273
  %4276 = vst [vmem:[#allocation5 + $0x34] sm:$0xf] %v4274
  %s4277 = scalar_lea.vmem [#allocation4], 5
  %v4278 = vld [vmem:[%s4277] ss:$10 sm:$0xff]
  %s4279 = scalar_lea.vmem [#allocation4], 85
  %v4280 = vld [vmem:[%s4279] ss:$10 sm:$0xff]
  %v4281 = vpack.c.bf16 %v4278, %v4278
  %v4282 = vpack.c.bf16 %v4280, %v4280
  %4283 = vst [vmem:[#allocation5 + $0x14] sm:$0xf] %v4281
  %4284 = vst [vmem:[#allocation5 + $0x38] sm:$0xf] %v4282
  %s4285 = scalar_lea.vmem [#allocation4], 6
  %v4286 = vld [vmem:[%s4285] ss:$10 sm:$0xff]
  %s4287 = scalar_lea.vmem [#allocation4], 86
  %v4288 = vld [vmem:[%s4287] ss:$10 sm:$0xff]
  %v4289 = vpack.c.bf16 %v4286, %v4286
  %v4290 = vpack.c.bf16 %v4288, %v4288
  %4291 = vst [vmem:[#allocation5 + $0x18] sm:$0xf] %v4289
  %4292 = vst [vmem:[#allocation5 + $0x3c] sm:$0xf] %v4290
  %s4293 = scalar_lea.vmem [#allocation4], 7
  %v4294 = vld [vmem:[%s4293] ss:$10 sm:$0xff]
  %s4295 = scalar_lea.vmem [#allocation4], 87
  %v4296 = vld [vmem:[%s4295] ss:$10 sm:$0xff]
  %v4297 = vpack.c.bf16 %v4294, %v4294
  %v4298 = vpack.c.bf16 %v4296, %v4296
  %4299 = vst [vmem:[#allocation5 + $0x1c] sm:$0xf] %v4297
  %4300 = vst [vmem:[#allocation5 + $0x40] sm:$0xf] %v4298
  %s4301 = scalar_lea.vmem [#allocation4], 8
  %v4302 = vld [vmem:[%s4301] ss:$10 sm:$0xff]
  %s4303 = scalar_lea.vmem [#allocation4], 88
  %v4304 = vld [vmem:[%s4303] ss:$10 sm:$0xff]
  %v4305 = vpack.c.bf16 %v4302, %v4302
  %v4306 = vpack.c.bf16 %v4304, %v4304
  %4307 = vst [vmem:[#allocation5 + $0x20] sm:$0xf] %v4305
  %4308 = vst [vmem:[#allocation5 + $0x44] sm:$0xf] %v4306
  %v4309 = vld [vmem:[#allocation5] sm:$0xff]
  %v4310 = vld [vmem:[#allocation5 + $0x8] sm:$0xff]
  %v4311 = vld [vmem:[#allocation5 + $0x10] sm:$0xff]
  %v4312 = vld [vmem:[#allocation5 + $0x18] sm:$0xff]
  %v4313 = vld [vmem:[#allocation5 + $0x20] sm:$0xf]
  %v4314 = vld [vmem:[#allocation5 + $0x24] sm:$0xff]
  %v4315 = vld [vmem:[#allocation5 + $0x2c] sm:$0xff]
  %v4316 = vld [vmem:[#allocation5 + $0x34] sm:$0xff]
  %v4317 = vld [vmem:[#allocation5 + $0x3c] sm:$0xff]
  %v4318 = vld [vmem:[#allocation5 + $0x44] sm:$0xf]
  %v4319 = vld [vmem:[%s6] sm:$0xff]
  %v4320 = vld [vmem:[%s6 + $0x8] sm:$0xff]
  %v4321 = vld [vmem:[%s6 + $0x10] sm:$0xff]
  %v4322 = vld [vmem:[%s6 + $0x18] sm:$0xff]
  %v4323 = vld [vmem:[%s6 + $0x20] sm:$0xff]
  %v4324 = vld [vmem:[%s6 + $0x28] sm:$0xff]
  %v4325 = vld [vmem:[%s6 + $0x30] sm:$0xff]
  %v4326 = vld [vmem:[%s6 + $0x38] sm:$0xff]
  %v4327 = vld [vmem:[%s6 + $0x40] sm:$0xff]
  %v4328 = vld [vmem:[%s6 + $0x48] sm:$0xff]
  %v4329 = vld [vmem:[%s6 + $0x50] sm:$0xff]
  %v4330 = vld [vmem:[%s6 + $0x58] sm:$0xff]
  %v4331 = vld [vmem:[%s6 + $0x60] sm:$0xff]
  %v4332 = vld [vmem:[%s6 + $0x68] sm:$0xff]
  %v4333 = vld [vmem:[%s6 + $0x70] sm:$0xff]
  %v4334 = vld [vmem:[%s6 + $0x78] sm:$0xff]
  %v4335 = vld [vmem:[%s6 + $0x80] sm:$0xff]
  %v4336 = vld [vmem:[%s6 + $0x88] sm:$0xff]
  %v4337 = vld [vmem:[%s6 + $0x90] sm:$0xff]
  %v4338 = vld [vmem:[%s6 + $0x98] sm:$0xff]
  %v4339 = vld [vmem:[%s6 + $0xa0] sm:$0xff]
  %v4340 = vld [vmem:[%s6 + $0xa8] sm:$0xff]
  %v4341 = vld [vmem:[%s6 + $0xb0] sm:$0xff]
  %v4342 = vld [vmem:[%s6 + $0xb8] sm:$0xff]
  %v4343 = vld [vmem:[%s6 + $0xc0] sm:$0xff]
  %v4344 = vld [vmem:[%s6 + $0xc8] sm:$0xff]
  %v4345 = vld [vmem:[%s6 + $0xd0] sm:$0xff]
  %v4346 = vld [vmem:[%s6 + $0xd8] sm:$0xff]
  %v4347 = vld [vmem:[%s6 + $0xe0] sm:$0xff]
  %v4348 = vld [vmem:[%s6 + $0xe8] sm:$0xff]
  %v4349 = vld [vmem:[%s6 + $0xf0] sm:$0xff]
  %v4350 = vld [vmem:[%s6 + $0xf8] sm:$0xff]
  %v4351 = vld [vmem:[%s6 + $0x100] sm:$0xff]
  %v4352 = vld [vmem:[%s6 + $0x108] sm:$0xff]
  %v4353 = vld [vmem:[%s6 + $0x110] sm:$0xff]
  %v4354 = vld [vmem:[%s6 + $0x118] sm:$0xff]
  %v4355 = vld [vmem:[%s6 + $0x120] sm:$0xff]
  %v4356 = vld [vmem:[%s6 + $0x128] sm:$0xff]
  %v4357 = vld [vmem:[%s6 + $0x130] sm:$0xff]
  %v4358 = vld [vmem:[%s6 + $0x138] sm:$0xff]
  %v4359 = vld [vmem:[%s6 + $0x140] sm:$0xff]
  %v4360 = vld [vmem:[%s6 + $0x148] sm:$0xff]
  %v4361 = vld [vmem:[%s6 + $0x150] sm:$0xff]
  %v4362 = vld [vmem:[%s6 + $0x158] sm:$0xff]
  %v4363 = vld [vmem:[%s6 + $0x160] sm:$0xff]
  %v4364 = vld [vmem:[%s6 + $0x168] sm:$0xff]
  %v4365 = vld [vmem:[%s6 + $0x170] sm:$0xff]
  %v4366 = vld [vmem:[%s6 + $0x178] sm:$0xff]
  %v4367 = vld [vmem:[%s6 + $0x180] sm:$0xff]
  %v4368 = vld [vmem:[%s6 + $0x188] sm:$0xff]
  %v4369 = vld [vmem:[%s6 + $0x190] sm:$0xff]
  %v4370 = vld [vmem:[%s6 + $0x198] sm:$0xff]
  %v4371 = vld [vmem:[%s6 + $0x1a0] sm:$0xff]
  %v4372 = vld [vmem:[%s6 + $0x1a8] sm:$0xff]
  %v4373 = vld [vmem:[%s6 + $0x1b0] sm:$0xff]
  %v4374 = vld [vmem:[%s6 + $0x1b8] sm:$0xff]
  %v4375 = vld [vmem:[%s6 + $0x1c0] sm:$0xff]
  %v4376 = vld [vmem:[%s6 + $0x1c8] sm:$0xff]
  %v4377 = vld [vmem:[%s6 + $0x1d0] sm:$0xff]
  %v4378 = vld [vmem:[%s6 + $0x1d8] sm:$0xff]
  %v4379 = vld [vmem:[%s6 + $0x1e0] sm:$0xff]
  %v4380 = vld [vmem:[%s6 + $0x1e8] sm:$0xff]
  %v4381 = vld [vmem:[%s6 + $0x1f0] sm:$0xff]
  %v4382 = vld [vmem:[%s6 + $0x1f8] sm:$0xff]
  %v4383 = vld [vmem:[%s6 + $0x200] sm:$0xff]
  %v4384 = vld [vmem:[%s6 + $0x208] sm:$0xff]
  %v4385 = vld [vmem:[%s6 + $0x210] sm:$0xff]
  %v4386 = vld [vmem:[%s6 + $0x218] sm:$0xff]
  %v4387 = vld [vmem:[%s6 + $0x220] sm:$0xff]
  %v4388 = vld [vmem:[%s6 + $0x228] sm:$0xff]
  %v4389 = vld [vmem:[%s6 + $0x230] sm:$0xff]
  %v4390 = vld [vmem:[%s6 + $0x238] sm:$0xff]
  %v4391 = vld [vmem:[%s6 + $0x240] sm:$0xff]
  %v4392 = vld [vmem:[%s6 + $0x248] sm:$0xff]
  %v4393 = vld [vmem:[%s6 + $0x250] sm:$0xff]
  %v4394 = vld [vmem:[%s6 + $0x258] sm:$0xff]
  %v4395 = vld [vmem:[%s6 + $0x260] sm:$0xff]
  %v4396 = vld [vmem:[%s6 + $0x268] sm:$0xff]
  %v4397 = vld [vmem:[%s6 + $0x270] sm:$0xff]
  %v4398 = vld [vmem:[%s6 + $0x278] sm:$0xff]
  %v4399 = vld [vmem:[%s6 + $0x280] sm:$0xff]
  %v4400 = vld [vmem:[%s6 + $0x288] sm:$0xff]
  %v4401 = vld [vmem:[%s6 + $0x290] sm:$0xff]
  %v4402 = vld [vmem:[%s6 + $0x298] sm:$0xff]
  %v4403 = vld [vmem:[%s6 + $0x2a0] sm:$0xff]
  %v4404 = vld [vmem:[%s6 + $0x2a8] sm:$0xff]
  %v4405 = vld [vmem:[%s6 + $0x2b0] sm:$0xff]
  %v4406 = vld [vmem:[%s6 + $0x2b8] sm:$0xff]
  %v4407 = vld [vmem:[%s6 + $0x2c0] sm:$0xff]
  %v4408 = vld [vmem:[%s6 + $0x2c8] sm:$0xff]
  %v4409 = vld [vmem:[%s6 + $0x2d0] sm:$0xff]
  %v4410 = vld [vmem:[%s6 + $0x2d8] sm:$0xff]
  %v4411 = vld [vmem:[%s6 + $0x2e0] sm:$0xff]
  %v4412 = vld [vmem:[%s6 + $0x2e8] sm:$0xff]
  %v4413 = vld [vmem:[%s6 + $0x2f0] sm:$0xff]
  %v4414 = vld [vmem:[%s6 + $0x2f8] sm:$0xff]
  %v4415 = vld [vmem:[%s6 + $0x300] sm:$0xff]
  %v4416 = vld [vmem:[%s6 + $0x308] sm:$0xff]
  %v4417 = vld [vmem:[%s6 + $0x310] sm:$0xff]
  %v4418 = vld [vmem:[%s6 + $0x318] sm:$0xff]
  %v4419 = vld [vmem:[%s6 + $0x320] sm:$0xff]
  %v4420 = vld [vmem:[%s6 + $0x328] sm:$0xff]
  %v4421 = vld [vmem:[%s6 + $0x330] sm:$0xff]
  %v4422 = vld [vmem:[%s6 + $0x338] sm:$0xff]
  %v4423 = vld [vmem:[%s6 + $0x340] sm:$0xff]
  %v4424 = vld [vmem:[%s6 + $0x348] sm:$0xff]
  %v4425 = vld [vmem:[%s6 + $0x350] sm:$0xff]
  %v4426 = vld [vmem:[%s6 + $0x358] sm:$0xff]
  %v4427 = vld [vmem:[%s6 + $0x360] sm:$0xff]
  %v4428 = vld [vmem:[%s6 + $0x368] sm:$0xff]
  %v4429 = vld [vmem:[%s6 + $0x370] sm:$0xff]
  %v4430 = vld [vmem:[%s6 + $0x378] sm:$0xff]
  %v4431 = vld [vmem:[%s6 + $0x380] sm:$0xff]
  %v4432 = vld [vmem:[%s6 + $0x388] sm:$0xff]
  %v4433 = vld [vmem:[%s6 + $0x390] sm:$0xff]
  %v4434 = vld [vmem:[%s6 + $0x398] sm:$0xff]
  %v4435 = vld [vmem:[%s6 + $0x3a0] sm:$0xff]
  %v4436 = vld [vmem:[%s6 + $0x3a8] sm:$0xff]
  %v4437 = vld [vmem:[%s6 + $0x3b0] sm:$0xff]
  %v4438 = vld [vmem:[%s6 + $0x3b8] sm:$0xff]
  %v4439 = vld [vmem:[%s6 + $0x3c0] sm:$0xff]
  %v4440 = vld [vmem:[%s6 + $0x3c8] sm:$0xff]
  %v4441 = vld [vmem:[%s6 + $0x3d0] sm:$0xff]
  %v4442 = vld [vmem:[%s6 + $0x3d8] sm:$0xff]
  %v4443 = vld [vmem:[%s6 + $0x3e0] sm:$0xff]
  %v4444 = vld [vmem:[%s6 + $0x3e8] sm:$0xff]
  %v4445 = vld [vmem:[%s6 + $0x3f0] sm:$0xff]
  %v4446 = vld [vmem:[%s6 + $0x3f8] sm:$0xff]
  %v4447 = vld [vmem:[%s6 + $0x400] sm:$0xff]
  %v4448 = vld [vmem:[%s6 + $0x408] sm:$0xff]
  %v4449 = vld [vmem:[%s6 + $0x410] sm:$0xff]
  %v4450 = vld [vmem:[%s6 + $0x418] sm:$0xff]
  %v4451 = vld [vmem:[%s6 + $0x420] sm:$0xff]
  %v4452 = vld [vmem:[%s6 + $0x428] sm:$0xff]
  %v4453 = vld [vmem:[%s6 + $0x430] sm:$0xff]
  %v4454 = vld [vmem:[%s6 + $0x438] sm:$0xff]
  %v4455 = vld [vmem:[%s6 + $0x440] sm:$0xff]
  %v4456 = vld [vmem:[%s6 + $0x448] sm:$0xff]
  %v4457 = vld [vmem:[%s6 + $0x450] sm:$0xff]
  %v4458 = vld [vmem:[%s6 + $0x458] sm:$0xff]
  %v4459 = vld [vmem:[%s6 + $0x460] sm:$0xff]
  %v4460 = vld [vmem:[%s6 + $0x468] sm:$0xff]
  %v4461 = vld [vmem:[%s6 + $0x470] sm:$0xff]
  %v4462 = vld [vmem:[%s6 + $0x478] sm:$0xff]
  %v4463 = vld [vmem:[%s7] sm:$0x3]
  %v4465 = vperm.slane %v4463, 0
  %v4466 = vperm.slane %v4463, 1
  %v4479 = vunpack.c.l.b16 %v4309
  %v4480 = vunpack.c.h.b16 %v4309
  %v4481 = vunpack.c.l.b16 %v4310
  %v4482 = vunpack.c.h.b16 %v4310
  %v4483 = vunpack.c.l.b16 %v4311
  %v4484 = vunpack.c.h.b16 %v4311
  %v4485 = vunpack.c.l.b16 %v4312
  %v4486 = vunpack.c.h.b16 %v4312
  %v4487 = vunpack.c.l.b16 %v4313
  %v4488 = vunpack.c.l.b16 %v4314
  %v4489 = vunpack.c.h.b16 %v4314
  %v4490 = vunpack.c.l.b16 %v4315
  %v4491 = vunpack.c.h.b16 %v4315
  %v4492 = vunpack.c.l.b16 %v4316
  %v4493 = vunpack.c.h.b16 %v4316
  %v4494 = vunpack.c.l.b16 %v4317
  %v4495 = vunpack.c.h.b16 %v4317
  %v4496 = vunpack.c.l.b16 %v4318
  %v4497 = vpack.c.b16 %v4488, %v4479
  %v4498 = vpack.c.b16 %v4489, %v4480
  %v4499 = vpack.c.b16 %v4490, %v4481
  %v4500 = vpack.c.b16 %v4491, %v4482
  %v4501 = vpack.c.b16 %v4492, %v4483
  %v4502 = vpack.c.b16 %v4493, %v4484
  %v4503 = vpack.c.b16 %v4494, %v4485
  %v4504 = vpack.c.b16 %v4495, %v4486
  %v4505 = vpack.c.b16 %v4496, %v4487
  %v4659 = vunpack.c.l.b16 %v4319
  %v4660 = vunpack.c.h.b16 %v4319
  %v4661 = vunpack.c.l.b16 %v4320
  %v4662 = vunpack.c.h.b16 %v4320
  %v4663 = vunpack.c.l.b16 %v4321
  %v4664 = vunpack.c.h.b16 %v4321
  %v4665 = vunpack.c.l.b16 %v4322
  %v4666 = vunpack.c.h.b16 %v4322
  %v4667 = vunpack.c.l.b16 %v4323
  %v4668 = vunpack.c.h.b16 %v4323
  %v4669 = vunpack.c.l.b16 %v4324
  %v4670 = vunpack.c.h.b16 %v4324
  %v4671 = vunpack.c.l.b16 %v4325
  %v4672 = vunpack.c.h.b16 %v4325
  %v4673 = vunpack.c.l.b16 %v4326
  %v4674 = vunpack.c.h.b16 %v4326
  %v4675 = vunpack.c.l.b16 %v4327
  %v4676 = vunpack.c.h.b16 %v4327
  %v4677 = vunpack.c.l.b16 %v4328
  %v4678 = vunpack.c.h.b16 %v4328
  %v4679 = vunpack.c.l.b16 %v4329
  %v4680 = vunpack.c.h.b16 %v4329
  %v4681 = vunpack.c.l.b16 %v4330
  %v4682 = vunpack.c.h.b16 %v4330
  %v4683 = vunpack.c.l.b16 %v4331
  %v4684 = vunpack.c.h.b16 %v4331
  %v4685 = vunpack.c.l.b16 %v4332
  %v4686 = vunpack.c.h.b16 %v4332
  %v4687 = vunpack.c.l.b16 %v4333
  %v4688 = vunpack.c.h.b16 %v4333
  %v4689 = vunpack.c.l.b16 %v4334
  %v4690 = vunpack.c.h.b16 %v4334
  %v4691 = vunpack.c.l.b16 %v4335
  %v4692 = vunpack.c.h.b16 %v4335
  %v4693 = vunpack.c.l.b16 %v4336
  %v4694 = vunpack.c.h.b16 %v4336
  %v4695 = vunpack.c.l.b16 %v4337
  %v4696 = vunpack.c.h.b16 %v4337
  %v4697 = vunpack.c.l.b16 %v4338
  %v4698 = vunpack.c.h.b16 %v4338
  %v4699 = vunpack.c.l.b16 %v4339
  %v4700 = vunpack.c.h.b16 %v4339
  %v4701 = vunpack.c.l.b16 %v4340
  %v4702 = vunpack.c.h.b16 %v4340
  %v4703 = vunpack.c.l.b16 %v4341
  %v4704 = vunpack.c.h.b16 %v4341
  %v4705 = vunpack.c.l.b16 %v4342
  %v4706 = vunpack.c.h.b16 %v4342
  %v4707 = vunpack.c.l.b16 %v4343
  %v4708 = vunpack.c.h.b16 %v4343
  %v4709 = vunpack.c.l.b16 %v4344
  %v4710 = vunpack.c.h.b16 %v4344
  %v4711 = vunpack.c.l.b16 %v4345
  %v4712 = vunpack.c.h.b16 %v4345
  %v4713 = vunpack.c.l.b16 %v4346
  %v4714 = vunpack.c.h.b16 %v4346
  %v4715 = vunpack.c.l.b16 %v4347
  %v4716 = vunpack.c.h.b16 %v4347
  %v4717 = vunpack.c.l.b16 %v4348
  %v4718 = vunpack.c.h.b16 %v4348
  %v4719 = vunpack.c.l.b16 %v4349
  %v4720 = vunpack.c.h.b16 %v4349
  %v4721 = vunpack.c.l.b16 %v4350
  %v4722 = vunpack.c.h.b16 %v4350
  %v4723 = vunpack.c.l.b16 %v4351
  %v4724 = vunpack.c.h.b16 %v4351
  %v4725 = vunpack.c.l.b16 %v4352
  %v4726 = vunpack.c.h.b16 %v4352
  %v4727 = vunpack.c.l.b16 %v4353
  %v4728 = vunpack.c.h.b16 %v4353
  %v4729 = vunpack.c.l.b16 %v4354
  %v4730 = vunpack.c.h.b16 %v4354
  %v4731 = vunpack.c.l.b16 %v4355
  %v4732 = vunpack.c.h.b16 %v4355
  %v4733 = vunpack.c.l.b16 %v4356
  %v4734 = vunpack.c.h.b16 %v4356
  %v4735 = vunpack.c.l.b16 %v4357
  %v4736 = vunpack.c.h.b16 %v4357
  %v4737 = vunpack.c.l.b16 %v4358
  %v4738 = vunpack.c.h.b16 %v4358
  %v4739 = vunpack.c.l.b16 %v4359
  %v4740 = vunpack.c.h.b16 %v4359
  %v4741 = vunpack.c.l.b16 %v4360
  %v4742 = vunpack.c.h.b16 %v4360
  %v4743 = vunpack.c.l.b16 %v4361
  %v4744 = vunpack.c.h.b16 %v4361
  %v4745 = vunpack.c.l.b16 %v4362
  %v4746 = vunpack.c.h.b16 %v4362
  %v4747 = vunpack.c.l.b16 %v4363
  %v4748 = vunpack.c.h.b16 %v4363
  %v4749 = vunpack.c.l.b16 %v4364
  %v4750 = vunpack.c.h.b16 %v4364
  %v4751 = vunpack.c.l.b16 %v4365
  %v4752 = vunpack.c.h.b16 %v4365
  %v4753 = vunpack.c.l.b16 %v4366
  %v4754 = vunpack.c.h.b16 %v4366
  %v4755 = vunpack.c.l.b16 %v4367
  %v4756 = vunpack.c.h.b16 %v4367
  %v4757 = vunpack.c.l.b16 %v4368
  %v4758 = vunpack.c.h.b16 %v4368
  %v4759 = vunpack.c.l.b16 %v4369
  %v4760 = vunpack.c.h.b16 %v4369
  %v4761 = vunpack.c.l.b16 %v4370
  %v4762 = vunpack.c.h.b16 %v4370
  %v4763 = vunpack.c.l.b16 %v4371
  %v4764 = vunpack.c.h.b16 %v4371
  %v4765 = vunpack.c.l.b16 %v4372
  %v4766 = vunpack.c.h.b16 %v4372
  %v4767 = vunpack.c.l.b16 %v4373
  %v4768 = vunpack.c.h.b16 %v4373
  %v4769 = vunpack.c.l.b16 %v4374
  %v4770 = vunpack.c.h.b16 %v4374
  %v4771 = vunpack.c.l.b16 %v4375
  %v4772 = vunpack.c.h.b16 %v4375
  %v4773 = vunpack.c.l.b16 %v4376
  %v4774 = vunpack.c.h.b16 %v4376
  %v4775 = vunpack.c.l.b16 %v4377
  %v4776 = vunpack.c.h.b16 %v4377
  %v4777 = vunpack.c.l.b16 %v4378
  %v4778 = vunpack.c.h.b16 %v4378
  %v4779 = vunpack.c.l.b16 %v4379
  %v4780 = vunpack.c.h.b16 %v4379
  %v4781 = vunpack.c.l.b16 %v4380
  %v4782 = vunpack.c.h.b16 %v4380
  %v4783 = vunpack.c.l.b16 %v4381
  %v4784 = vunpack.c.h.b16 %v4381
  %v4785 = vunpack.c.l.b16 %v4382
  %v4786 = vunpack.c.h.b16 %v4382
  %v4787 = vunpack.c.l.b16 %v4383
  %v4788 = vunpack.c.h.b16 %v4383
  %v4789 = vunpack.c.l.b16 %v4384
  %v4790 = vunpack.c.h.b16 %v4384
  %v4791 = vunpack.c.l.b16 %v4385
  %v4792 = vunpack.c.h.b16 %v4385
  %v4793 = vunpack.c.l.b16 %v4386
  %v4794 = vunpack.c.h.b16 %v4386
  %v4795 = vunpack.c.l.b16 %v4387
  %v4796 = vunpack.c.h.b16 %v4387
  %v4797 = vunpack.c.l.b16 %v4388
  %v4798 = vunpack.c.h.b16 %v4388
  %v4799 = vunpack.c.l.b16 %v4389
  %v4800 = vunpack.c.h.b16 %v4389
  %v4801 = vunpack.c.l.b16 %v4390
  %v4802 = vunpack.c.h.b16 %v4390
  %v4803 = vunpack.c.l.b16 %v4391
  %v4804 = vunpack.c.h.b16 %v4391
  %v4805 = vunpack.c.l.b16 %v4392
  %v4806 = vunpack.c.h.b16 %v4392
  %v4807 = vunpack.c.l.b16 %v4393
  %v4808 = vunpack.c.h.b16 %v4393
  %v4809 = vunpack.c.l.b16 %v4394
  %v4810 = vunpack.c.h.b16 %v4394
  %v4811 = vunpack.c.l.b16 %v4395
  %v4812 = vunpack.c.h.b16 %v4395
  %v4813 = vunpack.c.l.b16 %v4396
  %v4814 = vunpack.c.h.b16 %v4396
  %v4815 = vunpack.c.l.b16 %v4397
  %v4816 = vunpack.c.h.b16 %v4397
  %v4817 = vunpack.c.l.b16 %v4398
  %v4818 = vunpack.c.h.b16 %v4398
  %v4819 = vunpack.c.l.b16 %v4399
  %v4820 = vunpack.c.h.b16 %v4399
  %v4821 = vunpack.c.l.b16 %v4400
  %v4822 = vunpack.c.h.b16 %v4400
  %v4823 = vunpack.c.l.b16 %v4401
  %v4824 = vunpack.c.h.b16 %v4401
  %v4825 = vunpack.c.l.b16 %v4402
  %v4826 = vunpack.c.h.b16 %v4402
  %v4827 = vunpack.c.l.b16 %v4403
  %v4828 = vunpack.c.h.b16 %v4403
  %v4829 = vunpack.c.l.b16 %v4404
  %v4830 = vunpack.c.h.b16 %v4404
  %v4831 = vunpack.c.l.b16 %v4405
  %v4832 = vunpack.c.h.b16 %v4405
  %v4833 = vunpack.c.l.b16 %v4406
  %v4834 = vunpack.c.h.b16 %v4406
  %v4835 = vunpack.c.l.b16 %v4407
  %v4836 = vunpack.c.h.b16 %v4407
  %v4837 = vunpack.c.l.b16 %v4408
  %v4838 = vunpack.c.h.b16 %v4408
  %v4839 = vunpack.c.l.b16 %v4409
  %v4840 = vunpack.c.h.b16 %v4409
  %v4841 = vunpack.c.l.b16 %v4410
  %v4842 = vunpack.c.h.b16 %v4410
  %v4843 = vunpack.c.l.b16 %v4411
  %v4844 = vunpack.c.h.b16 %v4411
  %v4845 = vunpack.c.l.b16 %v4412
  %v4846 = vunpack.c.h.b16 %v4412
  %v4847 = vunpack.c.l.b16 %v4413
  %v4848 = vunpack.c.h.b16 %v4413
  %v4849 = vunpack.c.l.b16 %v4414
  %v4850 = vunpack.c.h.b16 %v4414
  %v4851 = vunpack.c.l.b16 %v4415
  %v4852 = vunpack.c.h.b16 %v4415
  %v4853 = vunpack.c.l.b16 %v4416
  %v4854 = vunpack.c.h.b16 %v4416
  %v4855 = vunpack.c.l.b16 %v4417
  %v4856 = vunpack.c.h.b16 %v4417
  %v4857 = vunpack.c.l.b16 %v4418
  %v4858 = vunpack.c.h.b16 %v4418
  %v4859 = vunpack.c.l.b16 %v4419
  %v4860 = vunpack.c.h.b16 %v4419
  %v4861 = vunpack.c.l.b16 %v4420
  %v4862 = vunpack.c.h.b16 %v4420
  %v4863 = vunpack.c.l.b16 %v4421
  %v4864 = vunpack.c.h.b16 %v4421
  %v4865 = vunpack.c.l.b16 %v4422
  %v4866 = vunpack.c.h.b16 %v4422
  %v4867 = vunpack.c.l.b16 %v4423
  %v4868 = vunpack.c.h.b16 %v4423
  %v4869 = vunpack.c.l.b16 %v4424
  %v4870 = vunpack.c.h.b16 %v4424
  %v4871 = vunpack.c.l.b16 %v4425
  %v4872 = vunpack.c.h.b16 %v4425
  %v4873 = vunpack.c.l.b16 %v4426
  %v4874 = vunpack.c.h.b16 %v4426
  %v4875 = vunpack.c.l.b16 %v4427
  %v4876 = vunpack.c.h.b16 %v4427
  %v4877 = vunpack.c.l.b16 %v4428
  %v4878 = vunpack.c.h.b16 %v4428
  %v4879 = vunpack.c.l.b16 %v4429
  %v4880 = vunpack.c.h.b16 %v4429
  %v4881 = vunpack.c.l.b16 %v4430
  %v4882 = vunpack.c.h.b16 %v4430
  %v4883 = vunpack.c.l.b16 %v4431
  %v4884 = vunpack.c.h.b16 %v4431
  %v4885 = vunpack.c.l.b16 %v4432
  %v4886 = vunpack.c.h.b16 %v4432
  %v4887 = vunpack.c.l.b16 %v4433
  %v4888 = vunpack.c.h.b16 %v4433
  %v4889 = vunpack.c.l.b16 %v4434
  %v4890 = vunpack.c.h.b16 %v4434
  %v4891 = vunpack.c.l.b16 %v4435
  %v4892 = vunpack.c.h.b16 %v4435
  %v4893 = vunpack.c.l.b16 %v4436
  %v4894 = vunpack.c.h.b16 %v4436
  %v4895 = vunpack.c.l.b16 %v4437
  %v4896 = vunpack.c.h.b16 %v4437
  %v4897 = vunpack.c.l.b16 %v4438
  %v4898 = vunpack.c.h.b16 %v4438
  %v4899 = vunpack.c.l.b16 %v4439
  %v4900 = vunpack.c.h.b16 %v4439
  %v4901 = vunpack.c.l.b16 %v4440
  %v4902 = vunpack.c.h.b16 %v4440
  %v4903 = vunpack.c.l.b16 %v4441
  %v4904 = vunpack.c.h.b16 %v4441
  %v4905 = vunpack.c.l.b16 %v4442
  %v4906 = vunpack.c.h.b16 %v4442
  %v4907 = vunpack.c.l.b16 %v4443
  %v4908 = vunpack.c.h.b16 %v4443
  %v4909 = vunpack.c.l.b16 %v4444
  %v4910 = vunpack.c.h.b16 %v4444
  %v4911 = vunpack.c.l.b16 %v4445
  %v4912 = vunpack.c.h.b16 %v4445
  %v4913 = vunpack.c.l.b16 %v4446
  %v4914 = vunpack.c.h.b16 %v4446
  %v4915 = vunpack.c.l.b16 %v4447
  %v4916 = vunpack.c.h.b16 %v4447
  %v4917 = vunpack.c.l.b16 %v4448
  %v4918 = vunpack.c.h.b16 %v4448
  %v4919 = vunpack.c.l.b16 %v4449
  %v4920 = vunpack.c.h.b16 %v4449
  %v4921 = vunpack.c.l.b16 %v4450
  %v4922 = vunpack.c.h.b16 %v4450
  %v4923 = vunpack.c.l.b16 %v4451
  %v4924 = vunpack.c.h.b16 %v4451
  %v4925 = vunpack.c.l.b16 %v4452
  %v4926 = vunpack.c.h.b16 %v4452
  %v4927 = vunpack.c.l.b16 %v4453
  %v4928 = vunpack.c.h.b16 %v4453
  %v4929 = vunpack.c.l.b16 %v4454
  %v4930 = vunpack.c.h.b16 %v4454
  %v4931 = vunpack.c.l.b16 %v4455
  %v4932 = vunpack.c.h.b16 %v4455
  %v4933 = vunpack.c.l.b16 %v4456
  %v4934 = vunpack.c.h.b16 %v4456
  %v4935 = vunpack.c.l.b16 %v4457
  %v4936 = vunpack.c.h.b16 %v4457
  %v4937 = vunpack.c.l.b16 %v4458
  %v4938 = vunpack.c.h.b16 %v4458
  %v4939 = vunpack.c.l.b16 %v4459
  %v4940 = vunpack.c.h.b16 %v4459
  %v4941 = vunpack.c.l.b16 %v4460
  %v4942 = vunpack.c.h.b16 %v4460
  %v4943 = vunpack.c.l.b16 %v4461
  %v4944 = vunpack.c.h.b16 %v4461
  %v4945 = vunpack.c.l.b16 %v4462
  %v4946 = vunpack.c.h.b16 %v4462
  %v4947 = vpack.c.b16 %v4661, %v4659
  %v4948 = vpack.c.b16 %v4662, %v4660
  %v4949 = vpack.c.b16 %v4665, %v4663
  %v4950 = vpack.c.b16 %v4666, %v4664
  %v4951 = vpack.c.b16 %v4669, %v4667
  %v4952 = vpack.c.b16 %v4670, %v4668
  %v4953 = vpack.c.b16 %v4673, %v4671
  %v4954 = vpack.c.b16 %v4674, %v4672
  %v4955 = vpack.c.b16 %v4677, %v4675
  %v4956 = vpack.c.b16 %v4678, %v4676
  %v4957 = vpack.c.b16 %v4681, %v4679
  %v4958 = vpack.c.b16 %v4682, %v4680
  %v4959 = vpack.c.b16 %v4685, %v4683
  %v4960 = vpack.c.b16 %v4686, %v4684
  %v4961 = vpack.c.b16 %v4689, %v4687
  %v4962 = vpack.c.b16 %v4690, %v4688
  %v4963 = vpack.c.b16 %v4693, %v4691
  %v4964 = vpack.c.b16 %v4694, %v4692
  %v4965 = vpack.c.b16 %v4697, %v4695
  %v4966 = vpack.c.b16 %v4698, %v4696
  %v4967 = vpack.c.b16 %v4701, %v4699
  %v4968 = vpack.c.b16 %v4702, %v4700
  %v4969 = vpack.c.b16 %v4705, %v4703
  %v4970 = vpack.c.b16 %v4706, %v4704
  %v4971 = vpack.c.b16 %v4709, %v4707
  %v4972 = vpack.c.b16 %v4710, %v4708
  %v4973 = vpack.c.b16 %v4713, %v4711
  %v4974 = vpack.c.b16 %v4714, %v4712
  %v4975 = vpack.c.b16 %v4717, %v4715
  %v4976 = vpack.c.b16 %v4718, %v4716
  %v4977 = vpack.c.b16 %v4721, %v4719
  %v4978 = vpack.c.b16 %v4722, %v4720
  %v4979 = vpack.c.b16 %v4725, %v4723
  %v4980 = vpack.c.b16 %v4726, %v4724
  %v4981 = vpack.c.b16 %v4729, %v4727
  %v4982 = vpack.c.b16 %v4730, %v4728
  %v4983 = vpack.c.b16 %v4733, %v4731
  %v4984 = vpack.c.b16 %v4734, %v4732
  %v4985 = vpack.c.b16 %v4737, %v4735
  %v4986 = vpack.c.b16 %v4738, %v4736
  %v4987 = vpack.c.b16 %v4741, %v4739
  %v4988 = vpack.c.b16 %v4742, %v4740
  %v4989 = vpack.c.b16 %v4745, %v4743
  %v4990 = vpack.c.b16 %v4746, %v4744
  %v4991 = vpack.c.b16 %v4749, %v4747
  %v4992 = vpack.c.b16 %v4750, %v4748
  %v4993 = vpack.c.b16 %v4753, %v4751
  %v4994 = vpack.c.b16 %v4754, %v4752
  %v4995 = vpack.c.b16 %v4757, %v4755
  %v4996 = vpack.c.b16 %v4758, %v4756
  %v4997 = vpack.c.b16 %v4761, %v4759
  %v4998 = vpack.c.b16 %v4762, %v4760
  %v4999 = vpack.c.b16 %v4765, %v4763
  %v5000 = vpack.c.b16 %v4766, %v4764
  %v5001 = vpack.c.b16 %v4769, %v4767
  %v5002 = vpack.c.b16 %v4770, %v4768
  %v5003 = vpack.c.b16 %v4773, %v4771
  %v5004 = vpack.c.b16 %v4774, %v4772
  %v5005 = vpack.c.b16 %v4777, %v4775
  %v5006 = vpack.c.b16 %v4778, %v4776
  %v5007 = vpack.c.b16 %v4781, %v4779
  %v5008 = vpack.c.b16 %v4782, %v4780
  %v5009 = vpack.c.b16 %v4785, %v4783
  %v5010 = vpack.c.b16 %v4786, %v4784
  %v5011 = vpack.c.b16 %v4789, %v4787
  %v5012 = vpack.c.b16 %v4790, %v4788
  %v5013 = vpack.c.b16 %v4793, %v4791
  %v5014 = vpack.c.b16 %v4794, %v4792
  %v5015 = vpack.c.b16 %v4797, %v4795
  %v5016 = vpack.c.b16 %v4798, %v4796
  %v5017 = vpack.c.b16 %v4801, %v4799
  %v5018 = vpack.c.b16 %v4802, %v4800
  %v5019 = vpack.c.b16 %v4805, %v4803
  %v5020 = vpack.c.b16 %v4806, %v4804
  %v5021 = vpack.c.b16 %v4809, %v4807
  %v5022 = vpack.c.b16 %v4810, %v4808
  %v5023 = vpack.c.b16 %v4813, %v4811
  %v5024 = vpack.c.b16 %v4814, %v4812
  %v5025 = vpack.c.b16 %v4817, %v4815
  %v5026 = vpack.c.b16 %v4818, %v4816
  %v5027 = vpack.c.b16 %v4821, %v4819
  %v5028 = vpack.c.b16 %v4822, %v4820
  %v5029 = vpack.c.b16 %v4825, %v4823
  %v5030 = vpack.c.b16 %v4826, %v4824
  %v5031 = vpack.c.b16 %v4829, %v4827
  %v5032 = vpack.c.b16 %v4830, %v4828
  %v5033 = vpack.c.b16 %v4833, %v4831
  %v5034 = vpack.c.b16 %v4834, %v4832
  %v5035 = vpack.c.b16 %v4837, %v4835
  %v5036 = vpack.c.b16 %v4838, %v4836
  %v5037 = vpack.c.b16 %v4841, %v4839
  %v5038 = vpack.c.b16 %v4842, %v4840
  %v5039 = vpack.c.b16 %v4845, %v4843
  %v5040 = vpack.c.b16 %v4846, %v4844
  %v5041 = vpack.c.b16 %v4849, %v4847
  %v5042 = vpack.c.b16 %v4850, %v4848
  %v5043 = vpack.c.b16 %v4853, %v4851
  %v5044 = vpack.c.b16 %v4854, %v4852
  %v5045 = vpack.c.b16 %v4857, %v4855
  %v5046 = vpack.c.b16 %v4858, %v4856
  %v5047 = vpack.c.b16 %v4861, %v4859
  %v5048 = vpack.c.b16 %v4862, %v4860
  %v5049 = vpack.c.b16 %v4865, %v4863
  %v5050 = vpack.c.b16 %v4866, %v4864
  %v5051 = vpack.c.b16 %v4869, %v4867
  %v5052 = vpack.c.b16 %v4870, %v4868
  %v5053 = vpack.c.b16 %v4873, %v4871
  %v5054 = vpack.c.b16 %v4874, %v4872
  %v5055 = vpack.c.b16 %v4877, %v4875
  %v5056 = vpack.c.b16 %v4878, %v4876
  %v5057 = vpack.c.b16 %v4881, %v4879
  %v5058 = vpack.c.b16 %v4882, %v4880
  %v5059 = vpack.c.b16 %v4885, %v4883
  %v5060 = vpack.c.b16 %v4886, %v4884
  %v5061 = vpack.c.b16 %v4889, %v4887
  %v5062 = vpack.c.b16 %v4890, %v4888
  %v5063 = vpack.c.b16 %v4893, %v4891
  %v5064 = vpack.c.b16 %v4894, %v4892
  %v5065 = vpack.c.b16 %v4897, %v4895
  %v5066 = vpack.c.b16 %v4898, %v4896
  %v5067 = vpack.c.b16 %v4901, %v4899
  %v5068 = vpack.c.b16 %v4902, %v4900
  %v5069 = vpack.c.b16 %v4905, %v4903
  %v5070 = vpack.c.b16 %v4906, %v4904
  %v5071 = vpack.c.b16 %v4909, %v4907
  %v5072 = vpack.c.b16 %v4910, %v4908
  %v5073 = vpack.c.b16 %v4913, %v4911
  %v5074 = vpack.c.b16 %v4914, %v4912
  %v5075 = vpack.c.b16 %v4917, %v4915
  %v5076 = vpack.c.b16 %v4918, %v4916
  %v5077 = vpack.c.b16 %v4921, %v4919
  %v5078 = vpack.c.b16 %v4922, %v4920
  %v5079 = vpack.c.b16 %v4925, %v4923
  %v5080 = vpack.c.b16 %v4926, %v4924
  %v5081 = vpack.c.b16 %v4929, %v4927
  %v5082 = vpack.c.b16 %v4930, %v4928
  %v5083 = vpack.c.b16 %v4933, %v4931
  %v5084 = vpack.c.b16 %v4934, %v4932
  %v5085 = vpack.c.b16 %v4937, %v4935
  %v5086 = vpack.c.b16 %v4938, %v4936
  %v5087 = vpack.c.b16 %v4941, %v4939
  %v5088 = vpack.c.b16 %v4942, %v4940
  %v5089 = vpack.c.b16 %v4945, %v4943
  %v5090 = vpack.c.b16 %v4946, %v4944
  %5235 = vmatpush.bf16.msra.mxu0 %v4961
  %5236 = vmatpush.bf16.msra.mxu0 %v4959
  %5237 = vmatpush.bf16.msra.mxu0 %v4957
  %5238 = vmatpush.bf16.msra.mxu0 %v4955
  %5239 = vmatpush.bf16.msra.mxu0 %v4953
  %5240 = vmatpush.bf16.msra.mxu0 %v4951
  %5241 = vmatpush.bf16.msra.mxu0 %v4949
  %5242 = vmatpush.bf16.msra.mxu0 %v4947
  %5243 = vmatmul.bf16.gmra.mxu0 %v4497
  %v5244 = vpop.f32.mrf.mxu0
  %v5245 = vadd.f32 %v4465, %v5244
  %v5246 = vpop.f32.mrf.mxu0
  %v5247 = vadd.f32 %v4465, %v5246
  %5248 = vdwg.mxu0
  %5249 = vmatpush.bf16.msra.mxu0 %v4977
  %5250 = vmatpush.bf16.msra.mxu0 %v4975
  %5251 = vmatpush.bf16.msra.mxu0 %v4973
  %5252 = vmatpush.bf16.msra.mxu0 %v4971
  %5253 = vmatpush.bf16.msra.mxu0 %v4969
  %5254 = vmatpush.bf16.msra.mxu0 %v4967
  %5255 = vmatpush.bf16.msra.mxu0 %v4965
  %5256 = vmatpush.bf16.msra.mxu0 %v4963
  %5257 = vmatmul.bf16.gmra.mxu0 %v4498
  %v5258 = vpop.f32.mrf.mxu0
  %v5259 = vadd.f32 %v5245, %v5258
  %v5260 = vpop.f32.mrf.mxu0
  %v5261 = vadd.f32 %v5247, %v5260
  %5262 = vdwg.mxu0
  %5263 = vmatpush.bf16.msra.mxu0 %v4993
  %5264 = vmatpush.bf16.msra.mxu0 %v4991
  %5265 = vmatpush.bf16.msra.mxu0 %v4989
  %5266 = vmatpush.bf16.msra.mxu0 %v4987
  %5267 = vmatpush.bf16.msra.mxu0 %v4985
  %5268 = vmatpush.bf16.msra.mxu0 %v4983
  %5269 = vmatpush.bf16.msra.mxu0 %v4981
  %5270 = vmatpush.bf16.msra.mxu0 %v4979
  %5271 = vmatmul.bf16.gmra.mxu0 %v4499
  %v5272 = vpop.f32.mrf.mxu0
  %v5273 = vadd.f32 %v5259, %v5272
  %v5274 = vpop.f32.mrf.mxu0
  %v5275 = vadd.f32 %v5261, %v5274
  %5276 = vdwg.mxu0
  %5277 = vmatpush.bf16.msra.mxu0 %v5009
  %5278 = vmatpush.bf16.msra.mxu0 %v5007
  %5279 = vmatpush.bf16.msra.mxu0 %v5005
  %5280 = vmatpush.bf16.msra.mxu0 %v5003
  %5281 = vmatpush.bf16.msra.mxu0 %v5001
  %5282 = vmatpush.bf16.msra.mxu0 %v4999
  %5283 = vmatpush.bf16.msra.mxu0 %v4997
  %5284 = vmatpush.bf16.msra.mxu0 %v4995
  %5285 = vmatmul.bf16.gmra.mxu0 %v4500
  %v5286 = vpop.f32.mrf.mxu0
  %v5287 = vadd.f32 %v5273, %v5286
  %v5288 = vpop.f32.mrf.mxu0
  %v5289 = vadd.f32 %v5275, %v5288
  %5290 = vdwg.mxu0
  %5291 = vmatpush.bf16.msra.mxu0 %v5025
  %5292 = vmatpush.bf16.msra.mxu0 %v5023
  %5293 = vmatpush.bf16.msra.mxu0 %v5021
  %5294 = vmatpush.bf16.msra.mxu0 %v5019
  %5295 = vmatpush.bf16.msra.mxu0 %v5017
  %5296 = vmatpush.bf16.msra.mxu0 %v5015
  %5297 = vmatpush.bf16.msra.mxu0 %v5013
  %5298 = vmatpush.bf16.msra.mxu0 %v5011
  %5299 = vmatmul.bf16.gmra.mxu0 %v4501
  %v5300 = vpop.f32.mrf.mxu0
  %v5301 = vadd.f32 %v5287, %v5300
  %v5302 = vpop.f32.mrf.mxu0
  %v5303 = vadd.f32 %v5289, %v5302
  %5304 = vdwg.mxu0
  %5305 = vmatpush.bf16.msra.mxu0 %v5041
  %5306 = vmatpush.bf16.msra.mxu0 %v5039
  %5307 = vmatpush.bf16.msra.mxu0 %v5037
  %5308 = vmatpush.bf16.msra.mxu0 %v5035
  %5309 = vmatpush.bf16.msra.mxu0 %v5033
  %5310 = vmatpush.bf16.msra.mxu0 %v5031
  %5311 = vmatpush.bf16.msra.mxu0 %v5029
  %5312 = vmatpush.bf16.msra.mxu0 %v5027
  %5313 = vmatmul.bf16.gmra.mxu0 %v4502
  %v5314 = vpop.f32.mrf.mxu0
  %v5315 = vadd.f32 %v5301, %v5314
  %v5316 = vpop.f32.mrf.mxu0
  %v5317 = vadd.f32 %v5303, %v5316
  %5318 = vdwg.mxu0
  %5319 = vmatpush.bf16.msra.mxu0 %v5057
  %5320 = vmatpush.bf16.msra.mxu0 %v5055
  %5321 = vmatpush.bf16.msra.mxu0 %v5053
  %5322 = vmatpush.bf16.msra.mxu0 %v5051
  %5323 = vmatpush.bf16.msra.mxu0 %v5049
  %5324 = vmatpush.bf16.msra.mxu0 %v5047
  %5325 = vmatpush.bf16.msra.mxu0 %v5045
  %5326 = vmatpush.bf16.msra.mxu0 %v5043
  %5327 = vmatmul.bf16.gmra.mxu0 %v4503
  %v5328 = vpop.f32.mrf.mxu0
  %v5329 = vadd.f32 %v5315, %v5328
  %v5330 = vpop.f32.mrf.mxu0
  %v5331 = vadd.f32 %v5317, %v5330
  %5332 = vdwg.mxu0
  %5333 = vmatpush.bf16.msra.mxu0 %v5073
  %5334 = vmatpush.bf16.msra.mxu0 %v5071
  %5335 = vmatpush.bf16.msra.mxu0 %v5069
  %5336 = vmatpush.bf16.msra.mxu0 %v5067
  %5337 = vmatpush.bf16.msra.mxu0 %v5065
  %5338 = vmatpush.bf16.msra.mxu0 %v5063
  %5339 = vmatpush.bf16.msra.mxu0 %v5061
  %5340 = vmatpush.bf16.msra.mxu0 %v5059
  %5341 = vmatmul.bf16.gmra.mxu0 %v4504
  %v5342 = vpop.f32.mrf.mxu0
  %v5343 = vadd.f32 %v5329, %v5342
  %v5344 = vpop.f32.mrf.mxu0
  %v5345 = vadd.f32 %v5331, %v5344
  %5346 = vdwg.mxu0
  %5347 = vmatpush.bf16.msra.mxu0 %v5089
  %5348 = vmatpush.bf16.msra.mxu0 %v5087
  %5349 = vmatpush.bf16.msra.mxu0 %v5085
  %5350 = vmatpush.bf16.msra.mxu0 %v5083
  %5351 = vmatpush.bf16.msra.mxu0 %v5081
  %5352 = vmatpush.bf16.msra.mxu0 %v5079
  %5353 = vmatpush.bf16.msra.mxu0 %v5077
  %5354 = vmatpush.bf16.msra.mxu0 %v5075
  %5355 = vmatmul.bf16.gmra.mxu0 %v4505
  %v5356 = vpop.f32.mrf.mxu0
  %v5357 = vadd.f32 %v5343, %v5356
  %v5358 = vpop.f32.mrf.mxu0
  %v5359 = vadd.f32 %v5345, %v5358
  %5360 = vdwg.mxu0
  %5361 = vmatpush.bf16.msra.mxu0 %v4962
  %5362 = vmatpush.bf16.msra.mxu0 %v4960
  %5363 = vmatpush.bf16.msra.mxu0 %v4958
  %5364 = vmatpush.bf16.msra.mxu0 %v4956
  %5365 = vmatpush.bf16.msra.mxu0 %v4954
  %5366 = vmatpush.bf16.msra.mxu0 %v4952
  %5367 = vmatpush.bf16.msra.mxu0 %v4950
  %5368 = vmatpush.bf16.msra.mxu0 %v4948
  %5369 = vmatmul.bf16.gmra.mxu0 %v4497
  %v5370 = vpop.f32.mrf.mxu0
  %v5371 = vadd.f32 %v4466, %v5370
  %v5372 = vpop.f32.mrf.mxu0
  %v5373 = vadd.f32 %v4466, %v5372
  %5374 = vdwg.mxu0
  %5375 = vmatpush.bf16.msra.mxu0 %v4978
  %5376 = vmatpush.bf16.msra.mxu0 %v4976
  %5377 = vmatpush.bf16.msra.mxu0 %v4974
  %5378 = vmatpush.bf16.msra.mxu0 %v4972
  %5379 = vmatpush.bf16.msra.mxu0 %v4970
  %5380 = vmatpush.bf16.msra.mxu0 %v4968
  %5381 = vmatpush.bf16.msra.mxu0 %v4966
  %5382 = vmatpush.bf16.msra.mxu0 %v4964
  %5383 = vmatmul.bf16.gmra.mxu0 %v4498
  %v5384 = vpop.f32.mrf.mxu0
  %v5385 = vadd.f32 %v5371, %v5384
  %v5386 = vpop.f32.mrf.mxu0
  %v5387 = vadd.f32 %v5373, %v5386
  %5388 = vdwg.mxu0
  %5389 = vmatpush.bf16.msra.mxu0 %v4994
  %5390 = vmatpush.bf16.msra.mxu0 %v4992
  %5391 = vmatpush.bf16.msra.mxu0 %v4990
  %5392 = vmatpush.bf16.msra.mxu0 %v4988
  %5393 = vmatpush.bf16.msra.mxu0 %v4986
  %5394 = vmatpush.bf16.msra.mxu0 %v4984
  %5395 = vmatpush.bf16.msra.mxu0 %v4982
  %5396 = vmatpush.bf16.msra.mxu0 %v4980
  %5397 = vmatmul.bf16.gmra.mxu0 %v4499
  %v5398 = vpop.f32.mrf.mxu0
  %v5399 = vadd.f32 %v5385, %v5398
  %v5400 = vpop.f32.mrf.mxu0
  %v5401 = vadd.f32 %v5387, %v5400
  %5402 = vdwg.mxu0
  %5403 = vmatpush.bf16.msra.mxu0 %v5010
  %5404 = vmatpush.bf16.msra.mxu0 %v5008
  %5405 = vmatpush.bf16.msra.mxu0 %v5006
  %5406 = vmatpush.bf16.msra.mxu0 %v5004
  %5407 = vmatpush.bf16.msra.mxu0 %v5002
  %5408 = vmatpush.bf16.msra.mxu0 %v5000
  %5409 = vmatpush.bf16.msra.mxu0 %v4998
  %5410 = vmatpush.bf16.msra.mxu0 %v4996
  %5411 = vmatmul.bf16.gmra.mxu0 %v4500
  %v5412 = vpop.f32.mrf.mxu0
  %v5413 = vadd.f32 %v5399, %v5412
  %v5414 = vpop.f32.mrf.mxu0
  %v5415 = vadd.f32 %v5401, %v5414
  %5416 = vdwg.mxu0
  %5417 = vmatpush.bf16.msra.mxu0 %v5026
  %5418 = vmatpush.bf16.msra.mxu0 %v5024
  %5419 = vmatpush.bf16.msra.mxu0 %v5022
  %5420 = vmatpush.bf16.msra.mxu0 %v5020
  %5421 = vmatpush.bf16.msra.mxu0 %v5018
  %5422 = vmatpush.bf16.msra.mxu0 %v5016
  %5423 = vmatpush.bf16.msra.mxu0 %v5014
  %5424 = vmatpush.bf16.msra.mxu0 %v5012
  %5425 = vmatmul.bf16.gmra.mxu0 %v4501
  %v5426 = vpop.f32.mrf.mxu0
  %v5427 = vadd.f32 %v5413, %v5426
  %v5428 = vpop.f32.mrf.mxu0
  %v5429 = vadd.f32 %v5415, %v5428
  %5430 = vdwg.mxu0
  %5431 = vmatpush.bf16.msra.mxu0 %v5042
  %5432 = vmatpush.bf16.msra.mxu0 %v5040
  %5433 = vmatpush.bf16.msra.mxu0 %v5038
  %5434 = vmatpush.bf16.msra.mxu0 %v5036
  %5435 = vmatpush.bf16.msra.mxu0 %v5034
  %5436 = vmatpush.bf16.msra.mxu0 %v5032
  %5437 = vmatpush.bf16.msra.mxu0 %v5030
  %5438 = vmatpush.bf16.msra.mxu0 %v5028
  %5439 = vmatmul.bf16.gmra.mxu0 %v4502
  %v5440 = vpop.f32.mrf.mxu0
  %v5441 = vadd.f32 %v5427, %v5440
  %v5442 = vpop.f32.mrf.mxu0
  %v5443 = vadd.f32 %v5429, %v5442
  %5444 = vdwg.mxu0
  %5445 = vmatpush.bf16.msra.mxu0 %v5058
  %5446 = vmatpush.bf16.msra.mxu0 %v5056
  %5447 = vmatpush.bf16.msra.mxu0 %v5054
  %5448 = vmatpush.bf16.msra.mxu0 %v5052
  %5449 = vmatpush.bf16.msra.mxu0 %v5050
  %5450 = vmatpush.bf16.msra.mxu0 %v5048
  %5451 = vmatpush.bf16.msra.mxu0 %v5046
  %5452 = vmatpush.bf16.msra.mxu0 %v5044
  %5453 = vmatmul.bf16.gmra.mxu0 %v4503
  %v5454 = vpop.f32.mrf.mxu0
  %v5455 = vadd.f32 %v5441, %v5454
  %v5456 = vpop.f32.mrf.mxu0
  %v5457 = vadd.f32 %v5443, %v5456
  %5458 = vdwg.mxu0
  %5459 = vmatpush.bf16.msra.mxu0 %v5074
  %5460 = vmatpush.bf16.msra.mxu0 %v5072
  %5461 = vmatpush.bf16.msra.mxu0 %v5070
  %5462 = vmatpush.bf16.msra.mxu0 %v5068
  %5463 = vmatpush.bf16.msra.mxu0 %v5066
  %5464 = vmatpush.bf16.msra.mxu0 %v5064
  %5465 = vmatpush.bf16.msra.mxu0 %v5062
  %5466 = vmatpush.bf16.msra.mxu0 %v5060
  %5467 = vmatmul.bf16.gmra.mxu0 %v4504
  %v5468 = vpop.f32.mrf.mxu0
  %v5469 = vadd.f32 %v5455, %v5468
  %v5470 = vpop.f32.mrf.mxu0
  %v5471 = vadd.f32 %v5457, %v5470
  %5472 = vdwg.mxu0
  %5473 = vmatpush.bf16.msra.mxu0 %v5090
  %5474 = vmatpush.bf16.msra.mxu0 %v5088
  %5475 = vmatpush.bf16.msra.mxu0 %v5086
  %5476 = vmatpush.bf16.msra.mxu0 %v5084
  %5477 = vmatpush.bf16.msra.mxu0 %v5082
  %5478 = vmatpush.bf16.msra.mxu0 %v5080
  %5479 = vmatpush.bf16.msra.mxu0 %v5078
  %5480 = vmatpush.bf16.msra.mxu0 %v5076
  %5481 = vmatmul.bf16.gmra.mxu0 %v4505
  %v5482 = vpop.f32.mrf.mxu0
  %v5483 = vadd.f32 %v5469, %v5482
  %v5484 = vpop.f32.mrf.mxu0
  %v5485 = vadd.f32 %v5471, %v5484
  %5486 = vdwg.mxu0
  %5487 = vst [vmem:[%s8] sm:$0xff] %v5357
  %vm5488 = vcmask 523264
  %5489 = vst.msk [vmem:[%s8 + $0x8] sm:$0xff] %vm5488, %v5483
  %5490 = vst [vmem:[%s8 + $0x10] sm:$0xff] %v5359
  %5491 = vst.msk [vmem:[%s8 + $0x18] sm:$0xff] %vm5488, %v5485
  // Predicated region
  $region34: #{model_forward.1} parent=0 // pred_check
    _
  $region35: #{model_forward.1} parent=0 // pred_check_branch
    %5493 = sbr.rel (0) target = $region37
  $region36: #{model_forward.1} parent=0 // pred_region
    _
  $region37: #{model_forward.1} parent=0 // pred_fallthru
    _
  // Predicated region
  $region38: #{model_forward.1} parent=0 // pred_check
    _
  $region39: #{model_forward.1} parent=0 // pred_check_branch
    %5495 = sbr.rel (0) target = $region41
  $region40: #{model_forward.1} parent=0 // pred_region
    _
  $region41: #{model_forward.1} parent=0 // pred_fallthru
    _

</llo_original>
